<compile_context>
chip_gen: v7x
topology: tpu7x:2x2x1
jax: 0.10.0
libtpu: 0.0.40
codegen_flags: <defaults>
</compile_context>

<pallas_src>
import jax
import jax.numpy as jnp
from jax.experimental import pallas as pl
from jax.experimental.pallas import tpu as pltpu


def lstm_classifier_kernel(text_ref, emb_ref,
                           w_ih0_ref, w_hh0_ref, b0_ref,
                           w_ih1_ref, w_hh1_ref, b1_ref,
                           w_li_ref, b_li_ref,
                           w_l1_ref, b_l1_ref,
                           w_fc_ref, b_fc_ref,
                           out_ref, proj_ref):
    # text_ref: SMEM (B, T) int32; emb_ref: VMEM (V, E); weights: (in, out) f32.
    B, T = text_ref.shape
    H = w_hh0_ref.shape[0]

    # Hoisted layer-0 input projection: one (V,E)x(E,4H) MXU matmul over the
    # whole (tiny) vocab, bias folded in. Per-timestep layer-0 input work then
    # becomes a lane-dense (1, 4H) row gather from VMEM.
    proj_ref[...] = (jnp.dot(emb_ref[...], w_ih0_ref[...],
                             preferred_element_type=jnp.float32)
                     + b0_ref[...])

    w_hh0 = w_hh0_ref[...]
    w_ih1 = w_ih1_ref[...]
    w_hh1 = w_hh1_ref[...]
    # Pre-broadcast layer-1 bias once (not re-emitted every unrolled step).
    b1 = jnp.broadcast_to(b1_ref[...], (B, 4 * H))

    def gate_split(gates):
        # One sigmoid + one tanh pass over the full (B, 4H) vreg (EUP slot),
        # then cheap lane slices -- instead of 4 quarter-lane transcendental
        # passes per cell.
        sig = jax.nn.sigmoid(gates)
        th = jnp.tanh(gates)
        i = sig[:, 0 * H:1 * H]
        f = sig[:, 1 * H:2 * H]
        g = th[:, 2 * H:3 * H]
        o = sig[:, 3 * H:4 * H]
        return i, f, g, o

    h0 = c0 = h1 = c1 = jnp.zeros((B, H), jnp.float32)

    # T is a small compile-time constant: fully unroll the serial recurrence.
    for t in range(T):
        # layer 0: gather the precomputed (x_t @ w_ih0 + b0) rows for step t.
        rows = []
        for b in range(B):
            idx = text_ref[b, t]
            rows.append(proj_ref[pl.ds(idx, 1), :])          # (1, 4H), lane-dense
        gx0 = jnp.concatenate(rows, axis=0)                   # (B, 4H)

        gates0 = gx0 + jnp.dot(h0, w_hh0, preferred_element_type=jnp.float32)
        i, f, g, o = gate_split(gates0)
        c0 = f * c0 + i * g
        h0 = o * jnp.tanh(c0)

        # layer 1 (stacked): input is h0.
        gates1 = (jnp.dot(h0, w_ih1, preferred_element_type=jnp.float32)
                  + jnp.dot(h1, w_hh1, preferred_element_type=jnp.float32)
                  + b1)
        i, f, g, o = gate_split(gates1)
        c1 = f * c1 + i * g
        h1 = o * jnp.tanh(c1)

    # torch.cat((hidden[-1], hidden[-2]), dim=1) == cat(layer-1 final h, layer-0 final h)
    hid = jnp.concatenate([h1, h0], axis=1)                                       # (B, 2H)
    hid = jnp.dot(hid, w_li_ref[...], preferred_element_type=jnp.float32) + b_li_ref[...]
    hid = jnp.dot(hid, w_l1_ref[...], preferred_element_type=jnp.float32) + b_l1_ref[...]
    out_ref[...] = (jnp.dot(hid, w_fc_ref[...], preferred_element_type=jnp.float32)
                    + b_fc_ref[...])


def rnn_classifier_forward(text, params):
    # Single pallas_call: embedding lookup, 2-layer LSTM recurrence, and the
    # 3-layer MLP head are all fused in the kernel. Dropout (p=0.0) is identity.
    B, _ = text.shape
    V = params['embedding'].shape[0]
    H = params['w_hh0'].shape[0]
    out_dim = params['b_fc'].shape[-1]

    args = (text.astype(jnp.int32),
            params['embedding'],
            params['w_ih0'], params['w_hh0'], params['b0'],
            params['w_ih1'], params['w_hh1'], params['b1'],
            params['w_li'], params['b_li'],
            params['w_l1'], params['b_l1'],
            params['w_fc'], params['b_fc'])

    vmem = pl.BlockSpec(memory_space=pltpu.MemorySpace.VMEM)
    smem = pl.BlockSpec(memory_space=pltpu.MemorySpace.SMEM)

    return pl.pallas_call(
        lstm_classifier_kernel,
        out_shape=jax.ShapeDtypeStruct((B, out_dim), jnp.float32),
        in_specs=[smem] + [vmem] * (len(args) - 1),
        out_specs=vmem,
        scratch_shapes=[pltpu.VMEM((V, 4 * H), jnp.float32)],   # hoisted vocab projection
    )(*args)


def init_params(key, vocab_size, E, H, hidden_dim_linear, output_dim):
    ks = jax.random.split(key, 13)

    def w(k, shape, scale=0.1):
        return (scale * jax.random.normal(k, shape)).astype(jnp.float32)

    # PyTorch LSTM has separate b_ih/b_hh per layer; semantically they only
    # appear summed, so a single combined bias per layer is used here.
    return dict(
        embedding=w(ks[0], (vocab_size, E)),
        w_ih0=w(ks[1], (E, 4 * H)), w_hh0=w(ks[2], (H, 4 * H)), b0=w(ks[3], (1, 4 * H)),
        w_ih1=w(ks[4], (H, 4 * H)), w_hh1=w(ks[5], (H, 4 * H)), b1=w(ks[6], (1, 4 * H)),
        w_li=w(ks[7], (2 * H, hidden_dim_linear[0])), b_li=w(ks[8], (1, hidden_dim_linear[0])),
        w_l1=w(ks[9], (hidden_dim_linear[0], hidden_dim_linear[1])),
        b_l1=w(ks[10], (1, hidden_dim_linear[1])),
        w_fc=w(ks[11], (hidden_dim_linear[1], output_dim)), b_fc=w(ks[12], (1, output_dim)),
    )


def reference_forward(text, params):
    # Pure-JAX reference mirroring the PyTorch forward (eval mode).
    emb = params['embedding'][text]                 # (B, T, E)
    B, T, _ = emb.shape
    H = params['w_hh0'].shape[0]

    def cell(x_t, h, c, w_ih, w_hh, b):
        g = x_t @ w_ih + h @ w_hh + b
        i = jax.nn.sigmoid(g[:, :H])
        f = jax.nn.sigmoid(g[:, H:2 * H])
        gg = jnp.tanh(g[:, 2 * H:3 * H])
        o = jax.nn.sigmoid(g[:, 3 * H:])
        c = f * c + i * gg
        return o * jnp.tanh(c), c

    h0 = c0 = h1 = c1 = jnp.zeros((B, H), jnp.float32)
    for t in range(T):
        x_t = emb[:, t, :]
        h0, c0 = cell(x_t, h0, c0, params['w_ih0'], params['w_hh0'], params['b0'])
        h1, c1 = cell(h0, h1, c1, params['w_ih1'], params['w_hh1'], params['b1'])
    hid = jnp.concatenate([h1, h0], axis=1)
    hid = hid @ params['w_li'] + params['b_li']
    hid = hid @ params['w_l1'] + params['b_l1']
    return hid @ params['w_fc'] + params['b_fc']


if __name__ == "__main__":
    # Module hyperparameters: rnn_type='LSTM', vocab_size=50, embedding_dim=16,
    # hidden_dim_rnn=32, hidden_dim_linear=[32, 16], output_dim=4,
    # n_rnn_layers=2, bidirectional=False, dropout=0.0
    vocab_size, E, H = 50, 16, 32
    hidden_dim_linear = [32, 16]
    output_dim = 4
    B, T = 2, 8

    key = jax.random.PRNGKey(0)
    kp, kt = jax.random.split(key)
    params = init_params(kp, vocab_size, E, H, hidden_dim_linear, output_dim)
    text = jax.random.randint(kt, (B, T), 0, vocab_size, dtype=jnp.int32)

    out = rnn_classifier_forward(text, params)
    jax.block_until_ready(out)

    ref = reference_forward(text, params)
    assert out.shape == (B, output_dim)
    assert jnp.allclose(out, ref, atol=1e-4), (out, ref)
    print("KERNEL_OK")
</pallas_src>

<mosaic_0001>
module attributes {stable_mosaic.version = 11 : i64} {
  func.func @lstm_classifier_kernel(%arg0: memref<2x8xi32, #tpu.memory_space<smem>>, %arg1: memref<50x16xf32, #tpu.memory_space<vmem>>, %arg2: memref<16x128xf32, #tpu.memory_space<vmem>>, %arg3: memref<32x128xf32, #tpu.memory_space<vmem>>, %arg4: memref<1x128xf32, #tpu.memory_space<vmem>>, %arg5: memref<32x128xf32, #tpu.memory_space<vmem>>, %arg6: memref<32x128xf32, #tpu.memory_space<vmem>>, %arg7: memref<1x128xf32, #tpu.memory_space<vmem>>, %arg8: memref<64x32xf32, #tpu.memory_space<vmem>>, %arg9: memref<1x32xf32, #tpu.memory_space<vmem>>, %arg10: memref<32x16xf32, #tpu.memory_space<vmem>>, %arg11: memref<1x16xf32, #tpu.memory_space<vmem>>, %arg12: memref<16x4xf32, #tpu.memory_space<vmem>>, %arg13: memref<1x4xf32, #tpu.memory_space<vmem>>, %arg14: memref<2x4xf32, #tpu.memory_space<vmem>>, %arg15: memref<50x128xf32, #tpu.memory_space<vmem>>) attributes {dimension_semantics = [], scalar_prefetch = 0 : i64, scratch_operands = 1 : i64, tpu.core_type = #tpu.core_type<tc>} {
    %c0 = arith.constant 0 : index
    %c0_0 = arith.constant 0 : index
    %0 = vector.load %arg1[%c0, %c0_0] : memref<50x16xf32, #tpu.memory_space<vmem>>, vector<50x16xf32>
    %c0_1 = arith.constant 0 : index
    %c0_2 = arith.constant 0 : index
    %1 = vector.load %arg2[%c0_1, %c0_2] : memref<16x128xf32, #tpu.memory_space<vmem>>, vector<16x128xf32>
    %cst = arith.constant dense<0.000000e+00> : vector<50x128xf32>
    %2 = tpu.matmul %0, %1, %cst {dimension_numbers = #tpu.dot_dimension_numbers<[1], [0], [0], [1], [0, 0, 1, 1], [], []>} : vector<50x16xf32>, vector<16x128xf32>, vector<50x128xf32> -> vector<50x128xf32>
    %c0_3 = arith.constant 0 : index
    %c0_4 = arith.constant 0 : index
    %3 = vector.load %arg4[%c0_3, %c0_4] : memref<1x128xf32, #tpu.memory_space<vmem>>, vector<1x128xf32>
    %4 = vector.broadcast %3 : vector<1x128xf32> to vector<50x128xf32>
    %5 = arith.addf %2, %4 : vector<50x128xf32>
    %c0_5 = arith.constant 0 : index
    %c0_6 = arith.constant 0 : index
    %6 = vector.load %arg15[%c0_5, %c0_6] : memref<50x128xf32, #tpu.memory_space<vmem>>, vector<50x128xf32>
    tpu.vector_store %arg15[%c0_5, %c0_6], %5 {strides = array<i32>} : memref<50x128xf32, #tpu.memory_space<vmem>>, vector<50x128xf32>,
    %c0_7 = arith.constant 0 : index
    %c0_8 = arith.constant 0 : index
    %7 = vector.load %arg3[%c0_7, %c0_8] : memref<32x128xf32, #tpu.memory_space<vmem>>, vector<32x128xf32>
    %c0_9 = arith.constant 0 : index
    %c0_10 = arith.constant 0 : index
    %8 = vector.load %arg5[%c0_9, %c0_10] : memref<32x128xf32, #tpu.memory_space<vmem>>, vector<32x128xf32>
    %c0_11 = arith.constant 0 : index
    %c0_12 = arith.constant 0 : index
    %9 = vector.load %arg6[%c0_11, %c0_12] : memref<32x128xf32, #tpu.memory_space<vmem>>, vector<32x128xf32>
    %c0_13 = arith.constant 0 : index
    %c0_14 = arith.constant 0 : index
    %10 = vector.load %arg7[%c0_13, %c0_14] : memref<1x128xf32, #tpu.memory_space<vmem>>, vector<1x128xf32>
    %11 = vector.shape_cast %10 : vector<1x128xf32> to vector<1x128xf32>
    %12 = vector.broadcast %11 : vector<1x128xf32> to vector<2x128xf32>
    %cst_15 = arith.constant 0.000000e+00 : f32
    %13 = vector.broadcast %cst_15 : f32 to vector<2x32xf32>
    %c0_16 = arith.constant 0 : index
    %c0_17 = arith.constant 0 : index
    %14 = memref.load %arg0[%c0_16, %c0_17] : memref<2x8xi32, #tpu.memory_space<smem>>
    %15 = arith.index_cast %14 : i32 to index
    %c0_18 = arith.constant 0 : index
    %16 = vector.load %arg15[%15, %c0_18] : memref<50x128xf32, #tpu.memory_space<vmem>>, vector<1x128xf32>
    %c1 = arith.constant 1 : index
    %c0_19 = arith.constant 0 : index
    %17 = memref.load %arg0[%c1, %c0_19] : memref<2x8xi32, #tpu.memory_space<smem>>
    %18 = arith.index_cast %17 : i32 to index
    %c0_20 = arith.constant 0 : index
    %19 = vector.load %arg15[%18, %c0_20] : memref<50x128xf32, #tpu.memory_space<vmem>>, vector<1x128xf32>
    %20 = tpu.concatenate %16, %19 in 0 : vector<1x128xf32>, vector<1x128xf32> -> vector<2x128xf32>
    %cst_21 = arith.constant dense<0.000000e+00> : vector<2x128xf32>
    %21 = tpu.matmul %13, %7, %cst_21 {dimension_numbers = #tpu.dot_dimension_numbers<[1], [0], [0], [1], [0, 0, 1, 1], [], []>} : vector<2x32xf32>, vector<32x128xf32>, vector<2x128xf32> -> vector<2x128xf32>
    %22 = arith.addf %20, %21 : vector<2x128xf32>
    %23 = arith.negf %22 : vector<2x128xf32>
    %24 = math.exp %23 : vector<2x128xf32>
    %cst_22 = arith.constant 1.000000e+00 : f32
    %25 = vector.broadcast %cst_22 : f32 to vector<2x128xf32>
    %26 = arith.addf %25, %24 : vector<2x128xf32>
    %27 = arith.divf %25, %26 : vector<2x128xf32>
    %28 = math.tanh %22 : vector<2x128xf32>
    %29 = vector.extract_strided_slice %27 {offsets = [0, 0], sizes = [2, 32], strides = [1, 1]} : vector<2x128xf32> to vector<2x32xf32>
    %30 = vector.extract_strided_slice %27 {offsets = [0, 32], sizes = [2, 32], strides = [1, 1]} : vector<2x128xf32> to vector<2x32xf32>
    %31 = vector.extract_strided_slice %28 {offsets = [0, 64], sizes = [2, 32], strides = [1, 1]} : vector<2x128xf32> to vector<2x32xf32>
    %32 = vector.extract_strided_slice %27 {offsets = [0, 96], sizes = [2, 32], strides = [1, 1]} : vector<2x128xf32> to vector<2x32xf32>
    %33 = arith.mulf %30, %13 : vector<2x32xf32>
    %34 = arith.mulf %29, %31 : vector<2x32xf32>
    %35 = arith.addf %33, %34 : vector<2x32xf32>
    %36 = math.tanh %35 : vector<2x32xf32>
    %37 = arith.mulf %32, %36 : vector<2x32xf32>
    %cst_23 = arith.constant dense<0.000000e+00> : vector<2x128xf32>
    %38 = tpu.matmul %37, %8, %cst_23 {dimension_numbers = #tpu.dot_dimension_numbers<[1], [0], [0], [1], [0, 0, 1, 1], [], []>} : vector<2x32xf32>, vector<32x128xf32>, vector<2x128xf32> -> vector<2x128xf32>
    %cst_24 = arith.constant dense<0.000000e+00> : vector<2x128xf32>
    %39 = tpu.matmul %13, %9, %cst_24 {dimension_numbers = #tpu.dot_dimension_numbers<[1], [0], [0], [1], [0, 0, 1, 1], [], []>} : vector<2x32xf32>, vector<32x128xf32>, vector<2x128xf32> -> vector<2x128xf32>
    %40 = arith.addf %38, %39 : vector<2x128xf32>
    %41 = arith.addf %40, %12 : vector<2x128xf32>
    %42 = arith.negf %41 : vector<2x128xf32>
    %43 = math.exp %42 : vector<2x128xf32>
    %cst_25 = arith.constant 1.000000e+00 : f32
    %44 = vector.broadcast %cst_25 : f32 to vector<2x128xf32>
    %45 = arith.addf %44, %43 : vector<2x128xf32>
    %46 = arith.divf %44, %45 : vector<2x128xf32>
    %47 = math.tanh %41 : vector<2x128xf32>
    %48 = vector.extract_strided_slice %46 {offsets = [0, 0], sizes = [2, 32], strides = [1, 1]} : vector<2x128xf32> to vector<2x32xf32>
    %49 = vector.extract_strided_slice %46 {offsets = [0, 32], sizes = [2, 32], strides = [1, 1]} : vector<2x128xf32> to vector<2x32xf32>
    %50 = vector.extract_strided_slice %47 {offsets = [0, 64], sizes = [2, 32], strides = [1, 1]} : vector<2x128xf32> to vector<2x32xf32>
    %51 = vector.extract_strided_slice %46 {offsets = [0, 96], sizes = [2, 32], strides = [1, 1]} : vector<2x128xf32> to vector<2x32xf32>
    %52 = arith.mulf %49, %13 : vector<2x32xf32>
    %53 = arith.mulf %48, %50 : vector<2x32xf32>
    %54 = arith.addf %52, %53 : vector<2x32xf32>
    %55 = math.tanh %54 : vector<2x32xf32>
    %56 = arith.mulf %51, %55 : vector<2x32xf32>
    %c0_26 = arith.constant 0 : index
    %c1_27 = arith.constant 1 : index
    %57 = memref.load %arg0[%c0_26, %c1_27] : memref<2x8xi32, #tpu.memory_space<smem>>
    %58 = arith.index_cast %57 : i32 to index
    %c0_28 = arith.constant 0 : index
    %59 = vector.load %arg15[%58, %c0_28] : memref<50x128xf32, #tpu.memory_space<vmem>>, vector<1x128xf32>
    %c1_29 = arith.constant 1 : index
    %c1_30 = arith.constant 1 : index
    %60 = memref.load %arg0[%c1_29, %c1_30] : memref<2x8xi32, #tpu.memory_space<smem>>
    %61 = arith.index_cast %60 : i32 to index
    %c0_31 = arith.constant 0 : index
    %62 = vector.load %arg15[%61, %c0_31] : memref<50x128xf32, #tpu.memory_space<vmem>>, vector<1x128xf32>
    %63 = tpu.concatenate %59, %62 in 0 : vector<1x128xf32>, vector<1x128xf32> -> vector<2x128xf32>
    %cst_32 = arith.constant dense<0.000000e+00> : vector<2x128xf32>
    %64 = tpu.matmul %37, %7, %cst_32 {dimension_numbers = #tpu.dot_dimension_numbers<[1], [0], [0], [1], [0, 0, 1, 1], [], []>} : vector<2x32xf32>, vector<32x128xf32>, vector<2x128xf32> -> vector<2x128xf32>
    %65 = arith.addf %63, %64 : vector<2x128xf32>
    %66 = arith.negf %65 : vector<2x128xf32>
    %67 = math.exp %66 : vector<2x128xf32>
    %cst_33 = arith.constant 1.000000e+00 : f32
    %68 = vector.broadcast %cst_33 : f32 to vector<2x128xf32>
    %69 = arith.addf %68, %67 : vector<2x128xf32>
    %70 = arith.divf %68, %69 : vector<2x128xf32>
    %71 = math.tanh %65 : vector<2x128xf32>
    %72 = vector.extract_strided_slice %70 {offsets = [0, 0], sizes = [2, 32], strides = [1, 1]} : vector<2x128xf32> to vector<2x32xf32>
    %73 = vector.extract_strided_slice %70 {offsets = [0, 32], sizes = [2, 32], strides = [1, 1]} : vector<2x128xf32> to vector<2x32xf32>
    %74 = vector.extract_strided_slice %71 {offsets = [0, 64], sizes = [2, 32], strides = [1, 1]} : vector<2x128xf32> to vector<2x32xf32>
    %75 = vector.extract_strided_slice %70 {offsets = [0, 96], sizes = [2, 32], strides = [1, 1]} : vector<2x128xf32> to vector<2x32xf32>
    %76 = arith.mulf %73, %35 : vector<2x32xf32>
    %77 = arith.mulf %72, %74 : vector<2x32xf32>
    %78 = arith.addf %76, %77 : vector<2x32xf32>
    %79 = math.tanh %78 : vector<2x32xf32>
    %80 = arith.mulf %75, %79 : vector<2x32xf32>
    %cst_34 = arith.constant dense<0.000000e+00> : vector<2x128xf32>
    %81 = tpu.matmul %80, %8, %cst_34 {dimension_numbers = #tpu.dot_dimension_numbers<[1], [0], [0], [1], [0, 0, 1, 1], [], []>} : vector<2x32xf32>, vector<32x128xf32>, vector<2x128xf32> -> vector<2x128xf32>
    %cst_35 = arith.constant dense<0.000000e+00> : vector<2x128xf32>
    %82 = tpu.matmul %56, %9, %cst_35 {dimension_numbers = #tpu.dot_dimension_numbers<[1], [0], [0], [1], [0, 0, 1, 1], [], []>} : vector<2x32xf32>, vector<32x128xf32>, vector<2x128xf32> -> vector<2x128xf32>
    %83 = arith.addf %81, %82 : vector<2x128xf32>
    %84 = arith.addf %83, %12 : vector<2x128xf32>
    %85 = arith.negf %84 : vector<2x128xf32>
    %86 = math.exp %85 : vector<2x128xf32>
    %cst_36 = arith.constant 1.000000e+00 : f32
    %87 = vector.broadcast %cst_36 : f32 to vector<2x128xf32>
    %88 = arith.addf %87, %86 : vector<2x128xf32>
    %89 = arith.divf %87, %88 : vector<2x128xf32>
    %90 = math.tanh %84 : vector<2x128xf32>
    %91 = vector.extract_strided_slice %89 {offsets = [0, 0], sizes = [2, 32], strides = [1, 1]} : vector<2x128xf32> to vector<2x32xf32>
    %92 = vector.extract_strided_slice %89 {offsets = [0, 32], sizes = [2, 32], strides = [1, 1]} : vector<2x128xf32> to vector<2x32xf32>
    %93 = vector.extract_strided_slice %90 {offsets = [0, 64], sizes = [2, 32], strides = [1, 1]} : vector<2x128xf32> to vector<2x32xf32>
    %94 = vector.extract_strided_slice %89 {offsets = [0, 96], sizes = [2, 32], strides = [1, 1]} : vector<2x128xf32> to vector<2x32xf32>
    %95 = arith.mulf %92, %54 : vector<2x32xf32>
    %96 = arith.mulf %91, %93 : vector<2x32xf32>
    %97 = arith.addf %95, %96 : vector<2x32xf32>
    %98 = math.tanh %97 : vector<2x32xf32>
    %99 = arith.mulf %94, %98 : vector<2x32xf32>
    %c0_37 = arith.constant 0 : index
    %c2 = arith.constant 2 : index
    %100 = memref.load %arg0[%c0_37, %c2] : memref<2x8xi32, #tpu.memory_space<smem>>
    %101 = arith.index_cast %100 : i32 to index
    %c0_38 = arith.constant 0 : index
    %102 = vector.load %arg15[%101, %c0_38] : memref<50x128xf32, #tpu.memory_space<vmem>>, vector<1x128xf32>
    %c1_39 = arith.constant 1 : index
    %c2_40 = arith.constant 2 : index
    %103 = memref.load %arg0[%c1_39, %c2_40] : memref<2x8xi32, #tpu.memory_space<smem>>
    %104 = arith.index_cast %103 : i32 to index
    %c0_41 = arith.constant 0 : index
    %105 = vector.load %arg15[%104, %c0_41] : memref<50x128xf32, #tpu.memory_space<vmem>>, vector<1x128xf32>
    %106 = tpu.concatenate %102, %105 in 0 : vector<1x128xf32>, vector<1x128xf32> -> vector<2x128xf32>
    %cst_42 = arith.constant dense<0.000000e+00> : vector<2x128xf32>
    %107 = tpu.matmul %80, %7, %cst_42 {dimension_numbers = #tpu.dot_dimension_numbers<[1], [0], [0], [1], [0, 0, 1, 1], [], []>} : vector<2x32xf32>, vector<32x128xf32>, vector<2x128xf32> -> vector<2x128xf32>
    %108 = arith.addf %106, %107 : vector<2x128xf32>
    %109 = arith.negf %108 : vector<2x128xf32>
    %110 = math.exp %109 : vector<2x128xf32>
    %cst_43 = arith.constant 1.000000e+00 : f32
    %111 = vector.broadcast %cst_43 : f32 to vector<2x128xf32>
    %112 = arith.addf %111, %110 : vector<2x128xf32>
    %113 = arith.divf %111, %112 : vector<2x128xf32>
    %114 = math.tanh %108 : vector<2x128xf32>
    %115 = vector.extract_strided_slice %113 {offsets = [0, 0], sizes = [2, 32], strides = [1, 1]} : vector<2x128xf32> to vector<2x32xf32>
    %116 = vector.extract_strided_slice %113 {offsets = [0, 32], sizes = [2, 32], strides = [1, 1]} : vector<2x128xf32> to vector<2x32xf32>
    %117 = vector.extract_strided_slice %114 {offsets = [0, 64], sizes = [2, 32], strides = [1, 1]} : vector<2x128xf32> to vector<2x32xf32>
    %118 = vector.extract_strided_slice %113 {offsets = [0, 96], sizes = [2, 32], strides = [1, 1]} : vector<2x128xf32> to vector<2x32xf32>
    %119 = arith.mulf %116, %78 : vector<2x32xf32>
    %120 = arith.mulf %115, %117 : vector<2x32xf32>
    %121 = arith.addf %119, %120 : vector<2x32xf32>
    %122 = math.tanh %121 : vector<2x32xf32>
    %123 = arith.mulf %118, %122 : vector<2x32xf32>
    %cst_44 = arith.constant dense<0.000000e+00> : vector<2x128xf32>
    %124 = tpu.matmul %123, %8, %cst_44 {dimension_numbers = #tpu.dot_dimension_numbers<[1], [0], [0], [1], [0, 0, 1, 1], [], []>} : vector<2x32xf32>, vector<32x128xf32>, vector<2x128xf32> -> vector<2x128xf32>
    %cst_45 = arith.constant dense<0.000000e+00> : vector<2x128xf32>
    %125 = tpu.matmul %99, %9, %cst_45 {dimension_numbers = #tpu.dot_dimension_numbers<[1], [0], [0], [1], [0, 0, 1, 1], [], []>} : vector<2x32xf32>, vector<32x128xf32>, vector<2x128xf32> -> vector<2x128xf32>
    %126 = arith.addf %124, %125 : vector<2x128xf32>
    %127 = arith.addf %126, %12 : vector<2x128xf32>
    %128 = arith.negf %127 : vector<2x128xf32>
    %129 = math.exp %128 : vector<2x128xf32>
    %cst_46 = arith.constant 1.000000e+00 : f32
    %130 = vector.broadcast %cst_46 : f32 to vector<2x128xf32>
    %131 = arith.addf %130, %129 : vector<2x128xf32>
    %132 = arith.divf %130, %131 : vector<2x128xf32>
    %133 = math.tanh %127 : vector<2x128xf32>
    %134 = vector.extract_strided_slice %132 {offsets = [0, 0], sizes = [2, 32], strides = [1, 1]} : vector<2x128xf32> to vector<2x32xf32>
    %135 = vector.extract_strided_slice %132 {offsets = [0, 32], sizes = [2, 32], strides = [1, 1]} : vector<2x128xf32> to vector<2x32xf32>
    %136 = vector.extract_strided_slice %133 {offsets = [0, 64], sizes = [2, 32], strides = [1, 1]} : vector<2x128xf32> to vector<2x32xf32>
    %137 = vector.extract_strided_slice %132 {offsets = [0, 96], sizes = [2, 32], strides = [1, 1]} : vector<2x128xf32> to vector<2x32xf32>
    %138 = arith.mulf %135, %97 : vector<2x32xf32>
    %139 = arith.mulf %134, %136 : vector<2x32xf32>
    %140 = arith.addf %138, %139 : vector<2x32xf32>
    %141 = math.tanh %140 : vector<2x32xf32>
    %142 = arith.mulf %137, %141 : vector<2x32xf32>
    %c0_47 = arith.constant 0 : index
    %c3 = arith.constant 3 : index
    %143 = memref.load %arg0[%c0_47, %c3] : memref<2x8xi32, #tpu.memory_space<smem>>
    %144 = arith.index_cast %143 : i32 to index
    %c0_48 = arith.constant 0 : index
    %145 = vector.load %arg15[%144, %c0_48] : memref<50x128xf32, #tpu.memory_space<vmem>>, vector<1x128xf32>
    %c1_49 = arith.constant 1 : index
    %c3_50 = arith.constant 3 : index
    %146 = memref.load %arg0[%c1_49, %c3_50] : memref<2x8xi32, #tpu.memory_space<smem>>
    %147 = arith.index_cast %146 : i32 to index
    %c0_51 = arith.constant 0 : index
    %148 = vector.load %arg15[%147, %c0_51] : memref<50x128xf32, #tpu.memory_space<vmem>>, vector<1x128xf32>
    %149 = tpu.concatenate %145, %148 in 0 : vector<1x128xf32>, vector<1x128xf32> -> vector<2x128xf32>
    %cst_52 = arith.constant dense<0.000000e+00> : vector<2x128xf32>
    %150 = tpu.matmul %123, %7, %cst_52 {dimension_numbers = #tpu.dot_dimension_numbers<[1], [0], [0], [1], [0, 0, 1, 1], [], []>} : vector<2x32xf32>, vector<32x128xf32>, vector<2x128xf32> -> vector<2x128xf32>
    %151 = arith.addf %149, %150 : vector<2x128xf32>
    %152 = arith.negf %151 : vector<2x128xf32>
    %153 = math.exp %152 : vector<2x128xf32>
    %cst_53 = arith.constant 1.000000e+00 : f32
    %154 = vector.broadcast %cst_53 : f32 to vector<2x128xf32>
    %155 = arith.addf %154, %153 : vector<2x128xf32>
    %156 = arith.divf %154, %155 : vector<2x128xf32>
    %157 = math.tanh %151 : vector<2x128xf32>
    %158 = vector.extract_strided_slice %156 {offsets = [0, 0], sizes = [2, 32], strides = [1, 1]} : vector<2x128xf32> to vector<2x32xf32>
    %159 = vector.extract_strided_slice %156 {offsets = [0, 32], sizes = [2, 32], strides = [1, 1]} : vector<2x128xf32> to vector<2x32xf32>
    %160 = vector.extract_strided_slice %157 {offsets = [0, 64], sizes = [2, 32], strides = [1, 1]} : vector<2x128xf32> to vector<2x32xf32>
    %161 = vector.extract_strided_slice %156 {offsets = [0, 96], sizes = [2, 32], strides = [1, 1]} : vector<2x128xf32> to vector<2x32xf32>
    %162 = arith.mulf %159, %121 : vector<2x32xf32>
    %163 = arith.mulf %158, %160 : vector<2x32xf32>
    %164 = arith.addf %162, %163 : vector<2x32xf32>
    %165 = math.tanh %164 : vector<2x32xf32>
    %166 = arith.mulf %161, %165 : vector<2x32xf32>
    %cst_54 = arith.constant dense<0.000000e+00> : vector<2x128xf32>
    %167 = tpu.matmul %166, %8, %cst_54 {dimension_numbers = #tpu.dot_dimension_numbers<[1], [0], [0], [1], [0, 0, 1, 1], [], []>} : vector<2x32xf32>, vector<32x128xf32>, vector<2x128xf32> -> vector<2x128xf32>
    %cst_55 = arith.constant dense<0.000000e+00> : vector<2x128xf32>
    %168 = tpu.matmul %142, %9, %cst_55 {dimension_numbers = #tpu.dot_dimension_numbers<[1], [0], [0], [1], [0, 0, 1, 1], [], []>} : vector<2x32xf32>, vector<32x128xf32>, vector<2x128xf32> -> vector<2x128xf32>
    %169 = arith.addf %167, %168 : vector<2x128xf32>
    %170 = arith.addf %169, %12 : vector<2x128xf32>
    %171 = arith.negf %170 : vector<2x128xf32>
    %172 = math.exp %171 : vector<2x128xf32>
    %cst_56 = arith.constant 1.000000e+00 : f32
    %173 = vector.broadcast %cst_56 : f32 to vector<2x128xf32>
    %174 = arith.addf %173, %172 : vector<2x128xf32>
    %175 = arith.divf %173, %174 : vector<2x128xf32>
    %176 = math.tanh %170 : vector<2x128xf32>
    %177 = vector.extract_strided_slice %175 {offsets = [0, 0], sizes = [2, 32], strides = [1, 1]} : vector<2x128xf32> to vector<2x32xf32>
    %178 = vector.extract_strided_slice %175 {offsets = [0, 32], sizes = [2, 32], strides = [1, 1]} : vector<2x128xf32> to vector<2x32xf32>
    %179 = vector.extract_strided_slice %176 {offsets = [0, 64], sizes = [2, 32], strides = [1, 1]} : vector<2x128xf32> to vector<2x32xf32>
    %180 = vector.extract_strided_slice %175 {offsets = [0, 96], sizes = [2, 32], strides = [1, 1]} : vector<2x128xf32> to vector<2x32xf32>
    %181 = arith.mulf %178, %140 : vector<2x32xf32>
    %182 = arith.mulf %177, %179 : vector<2x32xf32>
    %183 = arith.addf %181, %182 : vector<2x32xf32>
    %184 = math.tanh %183 : vector<2x32xf32>
    %185 = arith.mulf %180, %184 : vector<2x32xf32>
    %c0_57 = arith.constant 0 : index
    %c4 = arith.constant 4 : index
    %186 = memref.load %arg0[%c0_57, %c4] : memref<2x8xi32, #tpu.memory_space<smem>>
    %187 = arith.index_cast %186 : i32 to index
    %c0_58 = arith.constant 0 : index
    %188 = vector.load %arg15[%187, %c0_58] : memref<50x128xf32, #tpu.memory_space<vmem>>, vector<1x128xf32>
    %c1_59 = arith.constant 1 : index
    %c4_60 = arith.constant 4 : index
    %189 = memref.load %arg0[%c1_59, %c4_60] : memref<2x8xi32, #tpu.memory_space<smem>>
    %190 = arith.index_cast %189 : i32 to index
    %c0_61 = arith.constant 0 : index
    %191 = vector.load %arg15[%190, %c0_61] : memref<50x128xf32, #tpu.memory_space<vmem>>, vector<1x128xf32>
    %192 = tpu.concatenate %188, %191 in 0 : vector<1x128xf32>, vector<1x128xf32> -> vector<2x128xf32>
    %cst_62 = arith.constant dense<0.000000e+00> : vector<2x128xf32>
    %193 = tpu.matmul %166, %7, %cst_62 {dimension_numbers = #tpu.dot_dimension_numbers<[1], [0], [0], [1], [0, 0, 1, 1], [], []>} : vector<2x32xf32>, vector<32x128xf32>, vector<2x128xf32> -> vector<2x128xf32>
    %194 = arith.addf %192, %193 : vector<2x128xf32>
    %195 = arith.negf %194 : vector<2x128xf32>
    %196 = math.exp %195 : vector<2x128xf32>
    %cst_63 = arith.constant 1.000000e+00 : f32
    %197 = vector.broadcast %cst_63 : f32 to vector<2x128xf32>
    %198 = arith.addf %197, %196 : vector<2x128xf32>
    %199 = arith.divf %197, %198 : vector<2x128xf32>
    %200 = math.tanh %194 : vector<2x128xf32>
    %201 = vector.extract_strided_slice %199 {offsets = [0, 0], sizes = [2, 32], strides = [1, 1]} : vector<2x128xf32> to vector<2x32xf32>
    %202 = vector.extract_strided_slice %199 {offsets = [0, 32], sizes = [2, 32], strides = [1, 1]} : vector<2x128xf32> to vector<2x32xf32>
    %203 = vector.extract_strided_slice %200 {offsets = [0, 64], sizes = [2, 32], strides = [1, 1]} : vector<2x128xf32> to vector<2x32xf32>
    %204 = vector.extract_strided_slice %199 {offsets = [0, 96], sizes = [2, 32], strides = [1, 1]} : vector<2x128xf32> to vector<2x32xf32>
    %205 = arith.mulf %202, %164 : vector<2x32xf32>
    %206 = arith.mulf %201, %203 : vector<2x32xf32>
    %207 = arith.addf %205, %206 : vector<2x32xf32>
    %208 = math.tanh %207 : vector<2x32xf32>
    %209 = arith.mulf %204, %208 : vector<2x32xf32>
    %cst_64 = arith.constant dense<0.000000e+00> : vector<2x128xf32>
    %210 = tpu.matmul %209, %8, %cst_64 {dimension_numbers = #tpu.dot_dimension_numbers<[1], [0], [0], [1], [0, 0, 1, 1], [], []>} : vector<2x32xf32>, vector<32x128xf32>, vector<2x128xf32> -> vector<2x128xf32>
    %cst_65 = arith.constant dense<0.000000e+00> : vector<2x128xf32>
    %211 = tpu.matmul %185, %9, %cst_65 {dimension_numbers = #tpu.dot_dimension_numbers<[1], [0], [0], [1], [0, 0, 1, 1], [], []>} : vector<2x32xf32>, vector<32x128xf32>, vector<2x128xf32> -> vector<2x128xf32>
    %212 = arith.addf %210, %211 : vector<2x128xf32>
    %213 = arith.addf %212, %12 : vector<2x128xf32>
    %214 = arith.negf %213 : vector<2x128xf32>
    %215 = math.exp %214 : vector<2x128xf32>
    %cst_66 = arith.constant 1.000000e+00 : f32
    %216 = vector.broadcast %cst_66 : f32 to vector<2x128xf32>
    %217 = arith.addf %216, %215 : vector<2x128xf32>
    %218 = arith.divf %216, %217 : vector<2x128xf32>
    %219 = math.tanh %213 : vector<2x128xf32>
    %220 = vector.extract_strided_slice %218 {offsets = [0, 0], sizes = [2, 32], strides = [1, 1]} : vector<2x128xf32> to vector<2x32xf32>
    %221 = vector.extract_strided_slice %218 {offsets = [0, 32], sizes = [2, 32], strides = [1, 1]} : vector<2x128xf32> to vector<2x32xf32>
    %222 = vector.extract_strided_slice %219 {offsets = [0, 64], sizes = [2, 32], strides = [1, 1]} : vector<2x128xf32> to vector<2x32xf32>
    %223 = vector.extract_strided_slice %218 {offsets = [0, 96], sizes = [2, 32], strides = [1, 1]} : vector<2x128xf32> to vector<2x32xf32>
    %224 = arith.mulf %221, %183 : vector<2x32xf32>
    %225 = arith.mulf %220, %222 : vector<2x32xf32>
    %226 = arith.addf %224, %225 : vector<2x32xf32>
    %227 = math.tanh %226 : vector<2x32xf32>
    %228 = arith.mulf %223, %227 : vector<2x32xf32>
    %c0_67 = arith.constant 0 : index
    %c5 = arith.constant 5 : index
    %229 = memref.load %arg0[%c0_67, %c5] : memref<2x8xi32, #tpu.memory_space<smem>>
    %230 = arith.index_cast %229 : i32 to index
    %c0_68 = arith.constant 0 : index
    %231 = vector.load %arg15[%230, %c0_68] : memref<50x128xf32, #tpu.memory_space<vmem>>, vector<1x128xf32>
    %c1_69 = arith.constant 1 : index
    %c5_70 = arith.constant 5 : index
    %232 = memref.load %arg0[%c1_69, %c5_70] : memref<2x8xi32, #tpu.memory_space<smem>>
    %233 = arith.index_cast %232 : i32 to index
    %c0_71 = arith.constant 0 : index
    %234 = vector.load %arg15[%233, %c0_71] : memref<50x128xf32, #tpu.memory_space<vmem>>, vector<1x128xf32>
    %235 = tpu.concatenate %231, %234 in 0 : vector<1x128xf32>, vector<1x128xf32> -> vector<2x128xf32>
    %cst_72 = arith.constant dense<0.000000e+00> : vector<2x128xf32>
    %236 = tpu.matmul %209, %7, %cst_72 {dimension_numbers = #tpu.dot_dimension_numbers<[1], [0], [0], [1], [0, 0, 1, 1], [], []>} : vector<2x32xf32>, vector<32x128xf32>, vector<2x128xf32> -> vector<2x128xf32>
    %237 = arith.addf %235, %236 : vector<2x128xf32>
    %238 = arith.negf %237 : vector<2x128xf32>
    %239 = math.exp %238 : vector<2x128xf32>
    %cst_73 = arith.constant 1.000000e+00 : f32
    %240 = vector.broadcast %cst_73 : f32 to vector<2x128xf32>
    %241 = arith.addf %240, %239 : vector<2x128xf32>
    %242 = arith.divf %240, %241 : vector<2x128xf32>
    %243 = math.tanh %237 : vector<2x128xf32>
    %244 = vector.extract_strided_slice %242 {offsets = [0, 0], sizes = [2, 32], strides = [1, 1]} : vector<2x128xf32> to vector<2x32xf32>
    %245 = vector.extract_strided_slice %242 {offsets = [0, 32], sizes = [2, 32], strides = [1, 1]} : vector<2x128xf32> to vector<2x32xf32>
    %246 = vector.extract_strided_slice %243 {offsets = [0, 64], sizes = [2, 32], strides = [1, 1]} : vector<2x128xf32> to vector<2x32xf32>
    %247 = vector.extract_strided_slice %242 {offsets = [0, 96], sizes = [2, 32], strides = [1, 1]} : vector<2x128xf32> to vector<2x32xf32>
    %248 = arith.mulf %245, %207 : vector<2x32xf32>
    %249 = arith.mulf %244, %246 : vector<2x32xf32>
    %250 = arith.addf %248, %249 : vector<2x32xf32>
    %251 = math.tanh %250 : vector<2x32xf32>
    %252 = arith.mulf %247, %251 : vector<2x32xf32>
    %cst_74 = arith.constant dense<0.000000e+00> : vector<2x128xf32>
    %253 = tpu.matmul %252, %8, %cst_74 {dimension_numbers = #tpu.dot_dimension_numbers<[1], [0], [0], [1], [0, 0, 1, 1], [], []>} : vector<2x32xf32>, vector<32x128xf32>, vector<2x128xf32> -> vector<2x128xf32>
    %cst_75 = arith.constant dense<0.000000e+00> : vector<2x128xf32>
    %254 = tpu.matmul %228, %9, %cst_75 {dimension_numbers = #tpu.dot_dimension_numbers<[1], [0], [0], [1], [0, 0, 1, 1], [], []>} : vector<2x32xf32>, vector<32x128xf32>, vector<2x128xf32> -> vector<2x128xf32>
    %255 = arith.addf %253, %254 : vector<2x128xf32>
    %256 = arith.addf %255, %12 : vector<2x128xf32>
    %257 = arith.negf %256 : vector<2x128xf32>
    %258 = math.exp %257 : vector<2x128xf32>
    %cst_76 = arith.constant 1.000000e+00 : f32
    %259 = vector.broadcast %cst_76 : f32 to vector<2x128xf32>
    %260 = arith.addf %259, %258 : vector<2x128xf32>
    %261 = arith.divf %259, %260 : vector<2x128xf32>
    %262 = math.tanh %256 : vector<2x128xf32>
    %263 = vector.extract_strided_slice %261 {offsets = [0, 0], sizes = [2, 32], strides = [1, 1]} : vector<2x128xf32> to vector<2x32xf32>
    %264 = vector.extract_strided_slice %261 {offsets = [0, 32], sizes = [2, 32], strides = [1, 1]} : vector<2x128xf32> to vector<2x32xf32>
    %265 = vector.extract_strided_slice %262 {offsets = [0, 64], sizes = [2, 32], strides = [1, 1]} : vector<2x128xf32> to vector<2x32xf32>
    %266 = vector.extract_strided_slice %261 {offsets = [0, 96], sizes = [2, 32], strides = [1, 1]} : vector<2x128xf32> to vector<2x32xf32>
    %267 = arith.mulf %264, %226 : vector<2x32xf32>
    %268 = arith.mulf %263, %265 : vector<2x32xf32>
    %269 = arith.addf %267, %268 : vector<2x32xf32>
    %270 = math.tanh %269 : vector<2x32xf32>
    %271 = arith.mulf %266, %270 : vector<2x32xf32>
    %c0_77 = arith.constant 0 : index
    %c6 = arith.constant 6 : index
    %272 = memref.load %arg0[%c0_77, %c6] : memref<2x8xi32, #tpu.memory_space<smem>>
    %273 = arith.index_cast %272 : i32 to index
    %c0_78 = arith.constant 0 : index
    %274 = vector.load %arg15[%273, %c0_78] : memref<50x128xf32, #tpu.memory_space<vmem>>, vector<1x128xf32>
    %c1_79 = arith.constant 1 : index
    %c6_80 = arith.constant 6 : index
    %275 = memref.load %arg0[%c1_79, %c6_80] : memref<2x8xi32, #tpu.memory_space<smem>>
    %276 = arith.index_cast %275 : i32 to index
    %c0_81 = arith.constant 0 : index
    %277 = vector.load %arg15[%276, %c0_81] : memref<50x128xf32, #tpu.memory_space<vmem>>, vector<1x128xf32>
    %278 = tpu.concatenate %274, %277 in 0 : vector<1x128xf32>, vector<1x128xf32> -> vector<2x128xf32>
    %cst_82 = arith.constant dense<0.000000e+00> : vector<2x128xf32>
    %279 = tpu.matmul %252, %7, %cst_82 {dimension_numbers = #tpu.dot_dimension_numbers<[1], [0], [0], [1], [0, 0, 1, 1], [], []>} : vector<2x32xf32>, vector<32x128xf32>, vector<2x128xf32> -> vector<2x128xf32>
    %280 = arith.addf %278, %279 : vector<2x128xf32>
    %281 = arith.negf %280 : vector<2x128xf32>
    %282 = math.exp %281 : vector<2x128xf32>
    %cst_83 = arith.constant 1.000000e+00 : f32
    %283 = vector.broadcast %cst_83 : f32 to vector<2x128xf32>
    %284 = arith.addf %283, %282 : vector<2x128xf32>
    %285 = arith.divf %283, %284 : vector<2x128xf32>
    %286 = math.tanh %280 : vector<2x128xf32>
    %287 = vector.extract_strided_slice %285 {offsets = [0, 0], sizes = [2, 32], strides = [1, 1]} : vector<2x128xf32> to vector<2x32xf32>
    %288 = vector.extract_strided_slice %285 {offsets = [0, 32], sizes = [2, 32], strides = [1, 1]} : vector<2x128xf32> to vector<2x32xf32>
    %289 = vector.extract_strided_slice %286 {offsets = [0, 64], sizes = [2, 32], strides = [1, 1]} : vector<2x128xf32> to vector<2x32xf32>
    %290 = vector.extract_strided_slice %285 {offsets = [0, 96], sizes = [2, 32], strides = [1, 1]} : vector<2x128xf32> to vector<2x32xf32>
    %291 = arith.mulf %288, %250 : vector<2x32xf32>
    %292 = arith.mulf %287, %289 : vector<2x32xf32>
    %293 = arith.addf %291, %292 : vector<2x32xf32>
    %294 = math.tanh %293 : vector<2x32xf32>
    %295 = arith.mulf %290, %294 : vector<2x32xf32>
    %cst_84 = arith.constant dense<0.000000e+00> : vector<2x128xf32>
    %296 = tpu.matmul %295, %8, %cst_84 {dimension_numbers = #tpu.dot_dimension_numbers<[1], [0], [0], [1], [0, 0, 1, 1], [], []>} : vector<2x32xf32>, vector<32x128xf32>, vector<2x128xf32> -> vector<2x128xf32>
    %cst_85 = arith.constant dense<0.000000e+00> : vector<2x128xf32>
    %297 = tpu.matmul %271, %9, %cst_85 {dimension_numbers = #tpu.dot_dimension_numbers<[1], [0], [0], [1], [0, 0, 1, 1], [], []>} : vector<2x32xf32>, vector<32x128xf32>, vector<2x128xf32> -> vector<2x128xf32>
    %298 = arith.addf %296, %297 : vector<2x128xf32>
    %299 = arith.addf %298, %12 : vector<2x128xf32>
    %300 = arith.negf %299 : vector<2x128xf32>
    %301 = math.exp %300 : vector<2x128xf32>
    %cst_86 = arith.constant 1.000000e+00 : f32
    %302 = vector.broadcast %cst_86 : f32 to vector<2x128xf32>
    %303 = arith.addf %302, %301 : vector<2x128xf32>
    %304 = arith.divf %302, %303 : vector<2x128xf32>
    %305 = math.tanh %299 : vector<2x128xf32>
    %306 = vector.extract_strided_slice %304 {offsets = [0, 0], sizes = [2, 32], strides = [1, 1]} : vector<2x128xf32> to vector<2x32xf32>
    %307 = vector.extract_strided_slice %304 {offsets = [0, 32], sizes = [2, 32], strides = [1, 1]} : vector<2x128xf32> to vector<2x32xf32>
    %308 = vector.extract_strided_slice %305 {offsets = [0, 64], sizes = [2, 32], strides = [1, 1]} : vector<2x128xf32> to vector<2x32xf32>
    %309 = vector.extract_strided_slice %304 {offsets = [0, 96], sizes = [2, 32], strides = [1, 1]} : vector<2x128xf32> to vector<2x32xf32>
    %310 = arith.mulf %307, %269 : vector<2x32xf32>
    %311 = arith.mulf %306, %308 : vector<2x32xf32>
    %312 = arith.addf %310, %311 : vector<2x32xf32>
    %313 = math.tanh %312 : vector<2x32xf32>
    %314 = arith.mulf %309, %313 : vector<2x32xf32>
    %c0_87 = arith.constant 0 : index
    %c7 = arith.constant 7 : index
    %315 = memref.load %arg0[%c0_87, %c7] : memref<2x8xi32, #tpu.memory_space<smem>>
    %316 = arith.index_cast %315 : i32 to index
    %c0_88 = arith.constant 0 : index
    %317 = vector.load %arg15[%316, %c0_88] : memref<50x128xf32, #tpu.memory_space<vmem>>, vector<1x128xf32>
    %c1_89 = arith.constant 1 : index
    %c7_90 = arith.constant 7 : index
    %318 = memref.load %arg0[%c1_89, %c7_90] : memref<2x8xi32, #tpu.memory_space<smem>>
    %319 = arith.index_cast %318 : i32 to index
    %c0_91 = arith.constant 0 : index
    %320 = vector.load %arg15[%319, %c0_91] : memref<50x128xf32, #tpu.memory_space<vmem>>, vector<1x128xf32>
    %321 = tpu.concatenate %317, %320 in 0 : vector<1x128xf32>, vector<1x128xf32> -> vector<2x128xf32>
    %cst_92 = arith.constant dense<0.000000e+00> : vector<2x128xf32>
    %322 = tpu.matmul %295, %7, %cst_92 {dimension_numbers = #tpu.dot_dimension_numbers<[1], [0], [0], [1], [0, 0, 1, 1], [], []>} : vector<2x32xf32>, vector<32x128xf32>, vector<2x128xf32> -> vector<2x128xf32>
    %323 = arith.addf %321, %322 : vector<2x128xf32>
    %324 = arith.negf %323 : vector<2x128xf32>
    %325 = math.exp %324 : vector<2x128xf32>
    %cst_93 = arith.constant 1.000000e+00 : f32
    %326 = vector.broadcast %cst_93 : f32 to vector<2x128xf32>
    %327 = arith.addf %326, %325 : vector<2x128xf32>
    %328 = arith.divf %326, %327 : vector<2x128xf32>
    %329 = math.tanh %323 : vector<2x128xf32>
    %330 = vector.extract_strided_slice %328 {offsets = [0, 0], sizes = [2, 32], strides = [1, 1]} : vector<2x128xf32> to vector<2x32xf32>
    %331 = vector.extract_strided_slice %328 {offsets = [0, 32], sizes = [2, 32], strides = [1, 1]} : vector<2x128xf32> to vector<2x32xf32>
    %332 = vector.extract_strided_slice %329 {offsets = [0, 64], sizes = [2, 32], strides = [1, 1]} : vector<2x128xf32> to vector<2x32xf32>
    %333 = vector.extract_strided_slice %328 {offsets = [0, 96], sizes = [2, 32], strides = [1, 1]} : vector<2x128xf32> to vector<2x32xf32>
    %334 = arith.mulf %331, %293 : vector<2x32xf32>
    %335 = arith.mulf %330, %332 : vector<2x32xf32>
    %336 = arith.addf %334, %335 : vector<2x32xf32>
    %337 = math.tanh %336 : vector<2x32xf32>
    %338 = arith.mulf %333, %337 : vector<2x32xf32>
    %cst_94 = arith.constant dense<0.000000e+00> : vector<2x128xf32>
    %339 = tpu.matmul %338, %8, %cst_94 {dimension_numbers = #tpu.dot_dimension_numbers<[1], [0], [0], [1], [0, 0, 1, 1], [], []>} : vector<2x32xf32>, vector<32x128xf32>, vector<2x128xf32> -> vector<2x128xf32>
    %cst_95 = arith.constant dense<0.000000e+00> : vector<2x128xf32>
    %340 = tpu.matmul %314, %9, %cst_95 {dimension_numbers = #tpu.dot_dimension_numbers<[1], [0], [0], [1], [0, 0, 1, 1], [], []>} : vector<2x32xf32>, vector<32x128xf32>, vector<2x128xf32> -> vector<2x128xf32>
    %341 = arith.addf %339, %340 : vector<2x128xf32>
    %342 = arith.addf %341, %12 : vector<2x128xf32>
    %343 = arith.negf %342 : vector<2x128xf32>
    %344 = math.exp %343 : vector<2x128xf32>
    %cst_96 = arith.constant 1.000000e+00 : f32
    %345 = vector.broadcast %cst_96 : f32 to vector<2x128xf32>
    %346 = arith.addf %345, %344 : vector<2x128xf32>
    %347 = arith.divf %345, %346 : vector<2x128xf32>
    %348 = math.tanh %342 : vector<2x128xf32>
    %349 = vector.extract_strided_slice %347 {offsets = [0, 0], sizes = [2, 32], strides = [1, 1]} : vector<2x128xf32> to vector<2x32xf32>
    %350 = vector.extract_strided_slice %347 {offsets = [0, 32], sizes = [2, 32], strides = [1, 1]} : vector<2x128xf32> to vector<2x32xf32>
    %351 = vector.extract_strided_slice %348 {offsets = [0, 64], sizes = [2, 32], strides = [1, 1]} : vector<2x128xf32> to vector<2x32xf32>
    %352 = vector.extract_strided_slice %347 {offsets = [0, 96], sizes = [2, 32], strides = [1, 1]} : vector<2x128xf32> to vector<2x32xf32>
    %353 = arith.mulf %350, %312 : vector<2x32xf32>
    %354 = arith.mulf %349, %351 : vector<2x32xf32>
    %355 = arith.addf %353, %354 : vector<2x32xf32>
    %356 = math.tanh %355 : vector<2x32xf32>
    %357 = arith.mulf %352, %356 : vector<2x32xf32>
    %358 = tpu.concatenate %357, %338 in 1 : vector<2x32xf32>, vector<2x32xf32> -> vector<2x64xf32>
    %c0_97 = arith.constant 0 : index
    %c0_98 = arith.constant 0 : index
    %359 = vector.load %arg8[%c0_97, %c0_98] : memref<64x32xf32, #tpu.memory_space<vmem>>, vector<64x32xf32>
    %cst_99 = arith.constant dense<0.000000e+00> : vector<2x32xf32>
    %360 = tpu.matmul %358, %359, %cst_99 {dimension_numbers = #tpu.dot_dimension_numbers<[1], [0], [0], [1], [0, 0, 1, 1], [], []>} : vector<2x64xf32>, vector<64x32xf32>, vector<2x32xf32> -> vector<2x32xf32>
    %c0_100 = arith.constant 0 : index
    %c0_101 = arith.constant 0 : index
    %361 = vector.load %arg9[%c0_100, %c0_101] : memref<1x32xf32, #tpu.memory_space<vmem>>, vector<1x32xf32>
    %362 = vector.broadcast %361 : vector<1x32xf32> to vector<2x32xf32>
    %363 = arith.addf %360, %362 : vector<2x32xf32>
    %c0_102 = arith.constant 0 : index
    %c0_103 = arith.constant 0 : index
    %364 = vector.load %arg10[%c0_102, %c0_103] : memref<32x16xf32, #tpu.memory_space<vmem>>, vector<32x16xf32>
    %cst_104 = arith.constant dense<0.000000e+00> : vector<2x16xf32>
    %365 = tpu.matmul %363, %364, %cst_104 {dimension_numbers = #tpu.dot_dimension_numbers<[1], [0], [0], [1], [0, 0, 1, 1], [], []>} : vector<2x32xf32>, vector<32x16xf32>, vector<2x16xf32> -> vector<2x16xf32>
    %c0_105 = arith.constant 0 : index
    %c0_106 = arith.constant 0 : index
    %366 = vector.load %arg11[%c0_105, %c0_106] : memref<1x16xf32, #tpu.memory_space<vmem>>, vector<1x16xf32>
    %367 = vector.broadcast %366 : vector<1x16xf32> to vector<2x16xf32>
    %368 = arith.addf %365, %367 : vector<2x16xf32>
    %c0_107 = arith.constant 0 : index
    %c0_108 = arith.constant 0 : index
    %369 = vector.load %arg12[%c0_107, %c0_108] : memref<16x4xf32, #tpu.memory_space<vmem>>, vector<16x4xf32>
    %cst_109 = arith.constant dense<0.000000e+00> : vector<2x4xf32>
    %370 = tpu.matmul %368, %369, %cst_109 {dimension_numbers = #tpu.dot_dimension_numbers<[1], [0], [0], [1], [0, 0, 1, 1], [], []>} : vector<2x16xf32>, vector<16x4xf32>, vector<2x4xf32> -> vector<2x4xf32>
    %c0_110 = arith.constant 0 : index
    %c0_111 = arith.constant 0 : index
    %371 = vector.load %arg13[%c0_110, %c0_111] : memref<1x4xf32, #tpu.memory_space<vmem>>, vector<1x4xf32>
    %372 = vector.broadcast %371 : vector<1x4xf32> to vector<2x4xf32>
    %373 = arith.addf %370, %372 : vector<2x4xf32>
    %c0_112 = arith.constant 0 : index
    %c0_113 = arith.constant 0 : index
    %374 = vector.load %arg14[%c0_112, %c0_113] : memref<2x4xf32, #tpu.memory_space<vmem>>, vector<2x4xf32>
    tpu.vector_store %arg14[%c0_112, %c0_113], %373 {strides = array<i32>} : memref<2x4xf32, #tpu.memory_space<vmem>>, vector<2x4xf32>,
    return
  }
}

</mosaic_0001>

<llo_original>
// kernel: tpu_custom_call.1
$region0: #{tpu_custom_call.1}
  #allocation0 [shape = 'u32[]', space=smem, size = 0x4, offset = 0x4, fixed_abs, tag = 'smem constant byte address 0x4 - core index']
  #allocation1 [shape = 'u32[144,128]{1,0:T(1,128)}', space=vmem, size = 0x12000, scoped, tag = 'internal scratch']
  #allocation2 [shape = 'f32[50,128]{1,0:T(8,128)}', space=vmem, size = 0x7000, scoped, tag = 'scratch operand']
  %s0 = inlined_call_operand.vmem [shape: s32[2,8], index: 0, kind: input, shape index: {}]
  %s1 = inlined_call_operand.vmem [shape: f32[50,16], index: 1, kind: input, shape index: {}]
  %s2 = inlined_call_operand.vmem [shape: f32[16,128], index: 2, kind: input, shape index: {}]
  %s3 = inlined_call_operand.vmem [shape: f32[32,128], index: 3, kind: input, shape index: {}]
  %s4 = inlined_call_operand.vmem [shape: f32[1,128], index: 4, kind: input, shape index: {}]
  %s5 = inlined_call_operand.vmem [shape: f32[32,128], index: 5, kind: input, shape index: {}]
  %s6 = inlined_call_operand.vmem [shape: f32[32,128], index: 6, kind: input, shape index: {}]
  %s7 = inlined_call_operand.vmem [shape: f32[1,128], index: 7, kind: input, shape index: {}]
  %s8 = inlined_call_operand.vmem [shape: f32[64,32], index: 8, kind: input, shape index: {}]
  %s9 = inlined_call_operand.vmem [shape: f32[1,32], index: 9, kind: input, shape index: {}]
  %s10 = inlined_call_operand.vmem [shape: f32[32,16], index: 10, kind: input, shape index: {}]
  %s11 = inlined_call_operand.vmem [shape: f32[1,16], index: 11, kind: input, shape index: {}]
  %s12 = inlined_call_operand.vmem [shape: f32[16,4], index: 12, kind: input, shape index: {}]
  %s13 = inlined_call_operand.vmem [shape: f32[1,4], index: 13, kind: input, shape index: {}]
  %s14 = inlined_call_operand.hbm [shape: f32[2,4], index: 14, kind: output, shape index: {}]
  %s15 = sld [smem:[#allocation0]]
  $region70: #{tpu_custom_call.1} parent=0
    _
  %s17 = ssub.s32 1, %s15
  %s18 = scalar_select 0, %s17, %s15
  $region1: #{tpu_custom_call.1} parent=0
    #allocation3 [shape = 'u8[1024]{0}', space=smem, size = 0x400, scoped, tag = 'input window, operand 0, single buffered']
    #allocation4 [shape = 's32[1]{0}', space=sflag, size = 0x4, scoped, tag = 'scoped memory for tpu_custom_call.1']
    #allocation5 [shape = 's32[1]{0}', space=sflag, size = 0x4, scoped, tag = 'scoped memory for tpu_custom_call.1']
    #allocation6 [shape = 'u8[1024]{0}', space=vmem, size = 0x400, scoped, tag = 'output window, operand 0, single buffered']
    %19 = vsyncpa [#allocation5], 0
    %20 = vsyncpa [#allocation4], 0
    // Predicated region
    $region2: #{tpu_custom_call.1} parent=1 // pred_check
      _
    $region3: #{tpu_custom_call.1} parent=1 // pred_check_branch
      %22 = sbr.rel (0) target = $region5
    $region4: #{tpu_custom_call.1} parent=1 // pred_region
      %s24 = ssub.s32 32, 32
      %25 = vsyncadd [#allocation5], %s24
      %s27 = sshll.u32 %s0, 4
      %s28 = int_to_ptr.vmem [resolvable:$true] %s27
      %30 = dma.vmem_to_smem %s28, 32, [#allocation3], [#allocation5]
    $region5: #{tpu_custom_call.1} parent=1 // pred_fallthru
      _
    // Predicated region
    $region6: #{tpu_custom_call.1} parent=1 // pred_check
      _
    $region7: #{tpu_custom_call.1} parent=1 // pred_check_branch
      %32 = sbr.rel (0) target = $region9
    $region8: #{tpu_custom_call.1} parent=1 // pred_region
      _
    $region9: #{tpu_custom_call.1} parent=1 // pred_fallthru
      _
    // Predicated region
    $region10: #{tpu_custom_call.1} parent=1 // pred_check
      _
    $region11: #{tpu_custom_call.1} parent=1 // pred_check_branch
      %34 = sbr.rel (0) target = $region13
    $region12: #{tpu_custom_call.1} parent=1 // pred_region
      _
    $region13: #{tpu_custom_call.1} parent=1 // pred_fallthru
      _
    // Predicated region
    $region14: #{tpu_custom_call.1} parent=1 // pred_check
      _
    $region15: #{tpu_custom_call.1} parent=1 // pred_check_branch
      %36 = sbr.rel (0) target = $region17
    $region16: #{tpu_custom_call.1} parent=1 // pred_region
      _
    $region17: #{tpu_custom_call.1} parent=1 // pred_fallthru
      _
    // Predicated region
    $region18: #{tpu_custom_call.1} parent=1 // pred_check
      _
    $region19: #{tpu_custom_call.1} parent=1 // pred_check_branch
      %38 = sbr.rel (0) target = $region21
    $region20: #{tpu_custom_call.1} parent=1 // pred_region
      _
    $region21: #{tpu_custom_call.1} parent=1 // pred_fallthru
      _
    // Predicated region
    $region22: #{tpu_custom_call.1} parent=1 // pred_check
      _
    $region23: #{tpu_custom_call.1} parent=1 // pred_check_branch
      %40 = sbr.rel (0) target = $region25
    $region24: #{tpu_custom_call.1} parent=1 // pred_region
      _
    $region25: #{tpu_custom_call.1} parent=1 // pred_fallthru
      _
    // Predicated region
    $region26: #{tpu_custom_call.1} parent=1 // pred_check
      _
    $region27: #{tpu_custom_call.1} parent=1 // pred_check_branch
      %42 = sbr.rel (0) target = $region29
    $region28: #{tpu_custom_call.1} parent=1 // pred_region
      _
    $region29: #{tpu_custom_call.1} parent=1 // pred_fallthru
      _
    // Predicated region
    $region30: #{tpu_custom_call.1} parent=1 // pred_check
      _
    $region31: #{tpu_custom_call.1} parent=1 // pred_check_branch
      %44 = sbr.rel (0) target = $region33
    $region32: #{tpu_custom_call.1} parent=1 // pred_region
      _
    $region33: #{tpu_custom_call.1} parent=1 // pred_fallthru
      _
    // Predicated region
    $region34: #{tpu_custom_call.1} parent=1 // pred_check
      _
    $region35: #{tpu_custom_call.1} parent=1 // pred_check_branch
      %46 = sbr.rel (0) target = $region37
    $region36: #{tpu_custom_call.1} parent=1 // pred_region
      _
    $region37: #{tpu_custom_call.1} parent=1 // pred_fallthru
      _
    // Predicated region
    $region38: #{tpu_custom_call.1} parent=1 // pred_check
      _
    $region39: #{tpu_custom_call.1} parent=1 // pred_check_branch
      %48 = sbr.rel (0) target = $region41
    $region40: #{tpu_custom_call.1} parent=1 // pred_region
      _
    $region41: #{tpu_custom_call.1} parent=1 // pred_fallthru
      _
    // Predicated region
    $region42: #{tpu_custom_call.1} parent=1 // pred_check
      _
    $region43: #{tpu_custom_call.1} parent=1 // pred_check_branch
      %50 = sbr.rel (0) target = $region45
    $region44: #{tpu_custom_call.1} parent=1 // pred_region
      _
    $region45: #{tpu_custom_call.1} parent=1 // pred_fallthru
      _
    // Predicated region
    $region46: #{tpu_custom_call.1} parent=1 // pred_check
      _
    $region47: #{tpu_custom_call.1} parent=1 // pred_check_branch
      %52 = sbr.rel (0) target = $region49
    $region48: #{tpu_custom_call.1} parent=1 // pred_region
      _
    $region49: #{tpu_custom_call.1} parent=1 // pred_fallthru
      _
    // Predicated region
    $region50: #{tpu_custom_call.1} parent=1 // pred_check
      _
    $region51: #{tpu_custom_call.1} parent=1 // pred_check_branch
      %54 = sbr.rel (0) target = $region53
    $region52: #{tpu_custom_call.1} parent=1 // pred_region
      _
    $region53: #{tpu_custom_call.1} parent=1 // pred_fallthru
      _
    // Predicated region
    $region54: #{tpu_custom_call.1} parent=1 // pred_check
      _
    $region55: #{tpu_custom_call.1} parent=1 // pred_check_branch
      %56 = sbr.rel (0) target = $region57
    $region56: #{tpu_custom_call.1} parent=1 // pred_region
      _
    $region57: #{tpu_custom_call.1} parent=1 // pred_fallthru
      _
    // Predicated region
    $region58: #{tpu_custom_call.1} parent=1 // pred_check
      _
    $region59: #{tpu_custom_call.1} parent=1 // pred_check_branch
      %58 = sbr.rel (0) target = $region61
    $region60: #{tpu_custom_call.1} parent=1 // pred_region
      %59 = dma.done [#allocation5], 32
    $region61: #{tpu_custom_call.1} parent=1 // pred_fallthru
      _
    %60 = sfence
    %v61 = vld [vmem:[%s1] sm:$0xff]
    %v62 = vld [vmem:[%s1 + $0x8] sm:$0xff]
    %v63 = vld [vmem:[%s1 + $0x10] sm:$0xff]
    %v64 = vld [vmem:[%s1 + $0x18] sm:$0xff]
    %v65 = vld [vmem:[%s1 + $0x20] sm:$0xff]
    %v66 = vld [vmem:[%s1 + $0x28] sm:$0xff]
    %v67 = vld [vmem:[%s1 + $0x30] sm:$0x3]
    %v68 = vld [vmem:[%s2] sm:$0xff]
    %v69 = vld [vmem:[%s2 + $0x8] sm:$0xff]
    %v70 = vld [vmem:[%s4] sm:$0x1]
    %v72 = vlaneseq
    %v73 = vshrl.u32 %v72, 7
    %v74 = vsub.s32 0, %v73
    %v75 = vrot.slane %v70, %v74
    %vm77 = vcmask 130048
    %v79 = vsel %vm77, %v61, 0
    %v82 = vsel %vm77, %v62, 0
    %v85 = vsel %vm77, %v63, 0
    %v88 = vsel %vm77, %v64, 0
    %v91 = vsel %vm77, %v65, 0
    %v94 = vsel %vm77, %v66, 0
    %v97 = vsel %vm77, %v67, 0
    %99 = vmatprep.subr.mxu0 0.0
    %100 = vmatpush1.msra.mxu0 %v68
    %101 = vmatprep.subr.mxu0 0.0
    %102 = vmatpush1.msra.mxu0 %v69
    %103 = vmatprep.subr.mxu0 0.0
    %104 = vmatpush1.msra.mxu0 0.0
    %105 = vmatprep.subr.mxu0 0.0
    %106 = vmatpush1.msra.mxu0 0.0
    %107 = vmatprep.subr.mxu0 0.0
    %108 = vmatpush1.msra.mxu0 0.0
    %109 = vmatprep.subr.mxu0 0.0
    %110 = vmatpush1.msra.mxu0 0.0
    %111 = vmatprep.subr.mxu0 0.0
    %112 = vmatpush1.msra.mxu0 0.0
    %113 = vmatprep.subr.mxu0 0.0
    %114 = vmatpush1.msra.mxu0 0.0
    %115 = vmatprep.subr.mxu0 0.0
    %116 = vmatpush1.msra.mxu0 0.0
    %117 = vmatprep.subr.mxu0 0.0
    %118 = vmatpush1.msra.mxu0 0.0
    %119 = vmatprep.subr.mxu0 0.0
    %120 = vmatpush1.msra.mxu0 0.0
    %121 = vmatprep.subr.mxu0 0.0
    %122 = vmatpush1.msra.mxu0 0.0
    %123 = vmatprep.subr.mxu0 0.0
    %124 = vmatpush1.msra.mxu0 0.0
    %125 = vmatprep.subr.mxu0 0.0
    %126 = vmatpush1.msra.mxu0 0.0
    %127 = vmatprep.subr.mxu0 0.0
    %128 = vmatpush1.msra.mxu0 0.0
    %129 = vmatprep.subr.mxu0 0.0
    %130 = vmatpush1.msra.mxu0 0.0
    %131 = vmatprep.subr.mxu0 0.0
    %132 = vmatpush1.msra.mxu0 0.0
    %133 = vmatprep.subr.mxu0 0.0
    %134 = vmatpush1.msra.mxu0 0.0
    %135 = vmatprep.subr.mxu0 0.0
    %136 = vmatpush1.msra.mxu0 0.0
    %137 = vmatprep.subr.mxu0 0.0
    %138 = vmatpush1.msra.mxu0 0.0
    %139 = vmatprep.subr.mxu0 0.0
    %140 = vmatpush1.msra.mxu0 0.0
    %141 = vmatprep.subr.mxu0 0.0
    %142 = vmatpush1.msra.mxu0 0.0
    %143 = vmatprep.subr.mxu0 0.0
    %144 = vmatpush1.msra.mxu0 0.0
    %145 = vmatprep.subr.mxu0 0.0
    %146 = vmatpush1.msra.mxu0 0.0
    %147 = vmatprep.subr.mxu0 0.0
    %148 = vmatpush1.msra.mxu0 0.0
    %149 = vmatprep.subr.mxu0 0.0
    %150 = vmatpush1.msra.mxu0 0.0
    %151 = vmatprep.subr.mxu0 0.0
    %152 = vmatpush1.msra.mxu0 0.0
    %153 = vmatprep.subr.mxu0 0.0
    %154 = vmatpush1.msra.mxu0 0.0
    %155 = vmatprep.subr.mxu0 0.0
    %156 = vmatpush1.msra.mxu0 0.0
    %157 = vmatprep.subr.mxu0 0.0
    %158 = vmatpush1.msra.mxu0 0.0
    %159 = vmatprep.subr.mxu0 0.0
    %160 = vmatpush1.msra.mxu0 0.0
    %161 = vmatprep.subr.mxu0 0.0
    %162 = vmatpush1.msra.mxu0 0.0
    %163 = vmatprep.mubr.f32.mxu0 0.0
    %164 = vmatmul.mubr.f32.gmra.mrb[0].mxu0 %v79
    %v165 = vpop.f32.mrb[0].mxu0
    %v166 = vadd.f32 %v75, %v165
    %v167 = vpop.f32.mrb[0].mxu0
    %168 = vmatprep.mubr.f32.mxu0 0.0
    %169 = vmatmul.mubr.f32.gmra.mrb[0].mxu0 %v82
    %v170 = vpop.f32.mrb[0].mxu0
    %v171 = vadd.f32 %v75, %v170
    %v172 = vpop.f32.mrb[0].mxu0
    %173 = vmatprep.mubr.f32.mxu0 0.0
    %174 = vmatmul.mubr.f32.gmra.mrb[0].mxu0 %v85
    %v175 = vpop.f32.mrb[0].mxu0
    %v176 = vadd.f32 %v75, %v175
    %v177 = vpop.f32.mrb[0].mxu0
    %178 = vmatprep.mubr.f32.mxu0 0.0
    %179 = vmatmul.mubr.f32.gmra.mrb[0].mxu0 %v88
    %v180 = vpop.f32.mrb[0].mxu0
    %v181 = vadd.f32 %v75, %v180
    %v182 = vpop.f32.mrb[0].mxu0
    %183 = vmatprep.mubr.f32.mxu0 0.0
    %184 = vmatmul.mubr.f32.gmra.mrb[0].mxu0 %v91
    %v185 = vpop.f32.mrb[0].mxu0
    %v186 = vadd.f32 %v75, %v185
    %v187 = vpop.f32.mrb[0].mxu0
    %188 = vmatprep.mubr.f32.mxu0 0.0
    %189 = vmatmul.mubr.f32.gmra.mrb[0].mxu0 %v94
    %v190 = vpop.f32.mrb[0].mxu0
    %v191 = vadd.f32 %v75, %v190
    %v192 = vpop.f32.mrb[0].mxu0
    %193 = vmatprep.mubr.f32.mxu0 0.0
    %194 = vmatmul.mubr.f32.gmra.mrb[0].mxu0 %v97
    %v195 = vpop.f32.mrb[0].mxu0
    %v196 = vadd.f32 %v75, %v195
    %v197 = vpop.f32.mrb[0].mxu0
    %198 = vdwg.mxu0
    %199 = vst [vmem:[#allocation2] sm:$0xff] %v166
    %200 = vst [vmem:[#allocation2 + $0x8] sm:$0xff] %v171
    %201 = vst [vmem:[#allocation2 + $0x10] sm:$0xff] %v176
    %202 = vst [vmem:[#allocation2 + $0x18] sm:$0xff] %v181
    %203 = vst [vmem:[#allocation2 + $0x20] sm:$0xff] %v186
    %204 = vst [vmem:[#allocation2 + $0x28] sm:$0xff] %v191
    %205 = vst [vmem:[#allocation2 + $0x30] sm:$0x3] %v196
    %v206 = vld [vmem:[%s3] sm:$0xff]
    %v207 = vld [vmem:[%s3 + $0x8] sm:$0xff]
    %v208 = vld [vmem:[%s3 + $0x10] sm:$0xff]
    %v209 = vld [vmem:[%s3 + $0x18] sm:$0xff]
    %v210 = vld [vmem:[%s5] sm:$0xff]
    %v211 = vld [vmem:[%s5 + $0x8] sm:$0xff]
    %v212 = vld [vmem:[%s5 + $0x10] sm:$0xff]
    %v213 = vld [vmem:[%s5 + $0x18] sm:$0xff]
    %v214 = vld [vmem:[%s6] sm:$0xff]
    %v215 = vld [vmem:[%s6 + $0x8] sm:$0xff]
    %v216 = vld [vmem:[%s6 + $0x10] sm:$0xff]
    %v217 = vld [vmem:[%s6 + $0x18] sm:$0xff]
    %v218 = vld [vmem:[%s7] sm:$0x1]
    %v220 = vlaneseq
    %v221 = vshrl.u32 %v220, 7
    %v222 = vsub.s32 0, %v221
    %v223 = vrot.slane %v218, %v222
    %s225 = sld [smem:[#allocation3]]
    %s226 = scalar_lea.vmem [#allocation2], %s225
    %v227 = vld [vmem:[%s226] sm:$0x1]
    %s228 = sld [smem:[#allocation3 + $0x80]]
    %s229 = scalar_lea.vmem [#allocation2], %s228
    %v230 = vld [vmem:[%s229] sm:$0x1]
    %v232 = vrot.slane %v230, 7
    %vm234 = vcmask 1040384
    %v235 = vsel %vm234, %v227, %v232
    %vm236 = vcmask 261120
    %v238 = vsel %vm236, 0.0, 0
    %240 = vmatprep.subr.mxu0 0.0
    %241 = vmatpush1.msra.mxu0 %v206
    %242 = vmatprep.subr.mxu0 0.0
    %243 = vmatpush1.msra.mxu0 %v207
    %244 = vmatprep.subr.mxu0 0.0
    %245 = vmatpush1.msra.mxu0 %v208
    %246 = vmatprep.subr.mxu0 0.0
    %247 = vmatpush1.msra.mxu0 %v209
    %248 = vmatprep.subr.mxu0 0.0
    %249 = vmatpush1.msra.mxu0 0.0
    %250 = vmatprep.subr.mxu0 0.0
    %251 = vmatpush1.msra.mxu0 0.0
    %252 = vmatprep.subr.mxu0 0.0
    %253 = vmatpush1.msra.mxu0 0.0
    %254 = vmatprep.subr.mxu0 0.0
    %255 = vmatpush1.msra.mxu0 0.0
    %256 = vmatprep.subr.mxu0 0.0
    %257 = vmatpush1.msra.mxu0 0.0
    %258 = vmatprep.subr.mxu0 0.0
    %259 = vmatpush1.msra.mxu0 0.0
    %260 = vmatprep.subr.mxu0 0.0
    %261 = vmatpush1.msra.mxu0 0.0
    %262 = vmatprep.subr.mxu0 0.0
    %263 = vmatpush1.msra.mxu0 0.0
    %264 = vmatprep.subr.mxu0 0.0
    %265 = vmatpush1.msra.mxu0 0.0
    %266 = vmatprep.subr.mxu0 0.0
    %267 = vmatpush1.msra.mxu0 0.0
    %268 = vmatprep.subr.mxu0 0.0
    %269 = vmatpush1.msra.mxu0 0.0
    %270 = vmatprep.subr.mxu0 0.0
    %271 = vmatpush1.msra.mxu0 0.0
    %272 = vmatprep.subr.mxu0 0.0
    %273 = vmatpush1.msra.mxu0 0.0
    %274 = vmatprep.subr.mxu0 0.0
    %275 = vmatpush1.msra.mxu0 0.0
    %276 = vmatprep.subr.mxu0 0.0
    %277 = vmatpush1.msra.mxu0 0.0
    %278 = vmatprep.subr.mxu0 0.0
    %279 = vmatpush1.msra.mxu0 0.0
    %280 = vmatprep.subr.mxu0 0.0
    %281 = vmatpush1.msra.mxu0 0.0
    %282 = vmatprep.subr.mxu0 0.0
    %283 = vmatpush1.msra.mxu0 0.0
    %284 = vmatprep.subr.mxu0 0.0
    %285 = vmatpush1.msra.mxu0 0.0
    %286 = vmatprep.subr.mxu0 0.0
    %287 = vmatpush1.msra.mxu0 0.0
    %288 = vmatprep.subr.mxu0 0.0
    %289 = vmatpush1.msra.mxu0 0.0
    %290 = vmatprep.subr.mxu0 0.0
    %291 = vmatpush1.msra.mxu0 0.0
    %292 = vmatprep.subr.mxu0 0.0
    %293 = vmatpush1.msra.mxu0 0.0
    %294 = vmatprep.subr.mxu0 0.0
    %295 = vmatpush1.msra.mxu0 0.0
    %296 = vmatprep.subr.mxu0 0.0
    %297 = vmatpush1.msra.mxu0 0.0
    %298 = vmatprep.subr.mxu0 0.0
    %299 = vmatpush1.msra.mxu0 0.0
    %300 = vmatprep.subr.mxu0 0.0
    %301 = vmatpush1.msra.mxu0 0.0
    %302 = vmatprep.subr.mxu0 0.0
    %303 = vmatpush1.msra.mxu0 0.0
    %304 = vmatprep.mubr.f32.mxu0 0.0
    %305 = vmatmul.mubr.f32.gmra.mrb[0].mxu0 %v238
    %v306 = vpop.f32.mrb[0].mxu0
    %v307 = vadd.f32 0.0, %v306
    %v308 = vpop.f32.mrb[0].mxu0
    %309 = vdwg.mxu0
    %v310 = vadd.f32 %v235, %v307
    %v311 = vxor.u32 %v310, 2147483648
    %v312 = vmul.f32 %v311, 1.442695
    %v313 = vpow.pop %v312
    %v314 = vadd.f32 %v313, 1.0
    %v315 = vrcp.pop %v314
    %v316 = vmul.f32 1.0, %v315
    %v317 = vtanh.pop %v310
    %v318 = vmul.f32 %v316, 0.0
    %320 = vrot.lane.b32.xlu0 %v317, 64
    %v321 = vpop.permute.xlu0 %320
    %v323 = vmul.f32 %v316, %v321
    %325 = vrot.lane.b32.xlu0 %v323, 32
    %v326 = vpop.permute.xlu0 %325
    %v328 = vadd.f32 %v318, %v326
    %v329 = vtanh.pop %v328
    %331 = vrot.lane.b32.xlu0 %v329, 64
    %v332 = vpop.permute.xlu0 %331
    %v334 = vmul.f32 %v316, %v332
    %335 = vmatprep.subr.mxu0 0.0
    %336 = vmatpush1.msra.mxu0 %v214
    %337 = vmatprep.subr.mxu0 0.0
    %338 = vmatpush1.msra.mxu0 %v215
    %339 = vmatprep.subr.mxu0 0.0
    %340 = vmatpush1.msra.mxu0 %v216
    %341 = vmatprep.subr.mxu0 0.0
    %342 = vmatpush1.msra.mxu0 %v217
    %343 = vmatprep.subr.mxu0 0.0
    %344 = vmatpush1.msra.mxu0 0.0
    %345 = vmatprep.subr.mxu0 0.0
    %346 = vmatpush1.msra.mxu0 0.0
    %347 = vmatprep.subr.mxu0 0.0
    %348 = vmatpush1.msra.mxu0 0.0
    %349 = vmatprep.subr.mxu0 0.0
    %350 = vmatpush1.msra.mxu0 0.0
    %351 = vmatprep.subr.mxu0 0.0
    %352 = vmatpush1.msra.mxu0 0.0
    %353 = vmatprep.subr.mxu0 0.0
    %354 = vmatpush1.msra.mxu0 0.0
    %355 = vmatprep.subr.mxu0 0.0
    %356 = vmatpush1.msra.mxu0 0.0
    %357 = vmatprep.subr.mxu0 0.0
    %358 = vmatpush1.msra.mxu0 0.0
    %359 = vmatprep.subr.mxu0 0.0
    %360 = vmatpush1.msra.mxu0 0.0
    %361 = vmatprep.subr.mxu0 0.0
    %362 = vmatpush1.msra.mxu0 0.0
    %363 = vmatprep.subr.mxu0 0.0
    %364 = vmatpush1.msra.mxu0 0.0
    %365 = vmatprep.subr.mxu0 0.0
    %366 = vmatpush1.msra.mxu0 0.0
    %367 = vmatprep.subr.mxu0 0.0
    %368 = vmatpush1.msra.mxu0 0.0
    %369 = vmatprep.subr.mxu0 0.0
    %370 = vmatpush1.msra.mxu0 0.0
    %371 = vmatprep.subr.mxu0 0.0
    %372 = vmatpush1.msra.mxu0 0.0
    %373 = vmatprep.subr.mxu0 0.0
    %374 = vmatpush1.msra.mxu0 0.0
    %375 = vmatprep.subr.mxu0 0.0
    %376 = vmatpush1.msra.mxu0 0.0
    %377 = vmatprep.subr.mxu0 0.0
    %378 = vmatpush1.msra.mxu0 0.0
    %379 = vmatprep.subr.mxu0 0.0
    %380 = vmatpush1.msra.mxu0 0.0
    %381 = vmatprep.subr.mxu0 0.0
    %382 = vmatpush1.msra.mxu0 0.0
    %383 = vmatprep.subr.mxu0 0.0
    %384 = vmatpush1.msra.mxu0 0.0
    %385 = vmatprep.subr.mxu0 0.0
    %386 = vmatpush1.msra.mxu0 0.0
    %387 = vmatprep.subr.mxu0 0.0
    %388 = vmatpush1.msra.mxu0 0.0
    %389 = vmatprep.subr.mxu0 0.0
    %390 = vmatpush1.msra.mxu0 0.0
    %391 = vmatprep.subr.mxu0 0.0
    %392 = vmatpush1.msra.mxu0 0.0
    %393 = vmatprep.subr.mxu0 0.0
    %394 = vmatpush1.msra.mxu0 0.0
    %395 = vmatprep.subr.mxu0 0.0
    %396 = vmatpush1.msra.mxu0 0.0
    %397 = vmatprep.subr.mxu0 0.0
    %398 = vmatpush1.msra.mxu0 0.0
    %399 = vmatprep.mubr.f32.mxu0 0.0
    %400 = vmatmul.mubr.f32.gmra.mrb[0].mxu0 %v238
    %v401 = vpop.f32.mrb[0].mxu0
    %v402 = vadd.f32 0.0, %v401
    %v403 = vpop.f32.mrb[0].mxu0
    %404 = vdwg.mxu0
    %406 = vrot.lane.b32.xlu0 %v334, 32
    %v407 = vpop.permute.xlu0 %406
    %v408 = vsel %vm236, %v407, 0
    %410 = vmatprep.subr.mxu0 0.0
    %411 = vmatpush1.msra.mxu0 %v210
    %412 = vmatprep.subr.mxu0 0.0
    %413 = vmatpush1.msra.mxu0 %v211
    %414 = vmatprep.subr.mxu0 0.0
    %415 = vmatpush1.msra.mxu0 %v212
    %416 = vmatprep.subr.mxu0 0.0
    %417 = vmatpush1.msra.mxu0 %v213
    %418 = vmatprep.subr.mxu0 0.0
    %419 = vmatpush1.msra.mxu0 0.0
    %420 = vmatprep.subr.mxu0 0.0
    %421 = vmatpush1.msra.mxu0 0.0
    %422 = vmatprep.subr.mxu0 0.0
    %423 = vmatpush1.msra.mxu0 0.0
    %424 = vmatprep.subr.mxu0 0.0
    %425 = vmatpush1.msra.mxu0 0.0
    %426 = vmatprep.subr.mxu0 0.0
    %427 = vmatpush1.msra.mxu0 0.0
    %428 = vmatprep.subr.mxu0 0.0
    %429 = vmatpush1.msra.mxu0 0.0
    %430 = vmatprep.subr.mxu0 0.0
    %431 = vmatpush1.msra.mxu0 0.0
    %432 = vmatprep.subr.mxu0 0.0
    %433 = vmatpush1.msra.mxu0 0.0
    %434 = vmatprep.subr.mxu0 0.0
    %435 = vmatpush1.msra.mxu0 0.0
    %436 = vmatprep.subr.mxu0 0.0
    %437 = vmatpush1.msra.mxu0 0.0
    %438 = vmatprep.subr.mxu0 0.0
    %439 = vmatpush1.msra.mxu0 0.0
    %440 = vmatprep.subr.mxu0 0.0
    %441 = vmatpush1.msra.mxu0 0.0
    %442 = vmatprep.subr.mxu0 0.0
    %443 = vmatpush1.msra.mxu0 0.0
    %444 = vmatprep.subr.mxu0 0.0
    %445 = vmatpush1.msra.mxu0 0.0
    %446 = vmatprep.subr.mxu0 0.0
    %447 = vmatpush1.msra.mxu0 0.0
    %448 = vmatprep.subr.mxu0 0.0
    %449 = vmatpush1.msra.mxu0 0.0
    %450 = vmatprep.subr.mxu0 0.0
    %451 = vmatpush1.msra.mxu0 0.0
    %452 = vmatprep.subr.mxu0 0.0
    %453 = vmatpush1.msra.mxu0 0.0
    %454 = vmatprep.subr.mxu0 0.0
    %455 = vmatpush1.msra.mxu0 0.0
    %456 = vmatprep.subr.mxu0 0.0
    %457 = vmatpush1.msra.mxu0 0.0
    %458 = vmatprep.subr.mxu0 0.0
    %459 = vmatpush1.msra.mxu0 0.0
    %460 = vmatprep.subr.mxu0 0.0
    %461 = vmatpush1.msra.mxu0 0.0
    %462 = vmatprep.subr.mxu0 0.0
    %463 = vmatpush1.msra.mxu0 0.0
    %464 = vmatprep.subr.mxu0 0.0
    %465 = vmatpush1.msra.mxu0 0.0
    %466 = vmatprep.subr.mxu0 0.0
    %467 = vmatpush1.msra.mxu0 0.0
    %468 = vmatprep.subr.mxu0 0.0
    %469 = vmatpush1.msra.mxu0 0.0
    %470 = vmatprep.subr.mxu0 0.0
    %471 = vmatpush1.msra.mxu0 0.0
    %472 = vmatprep.subr.mxu0 0.0
    %473 = vmatpush1.msra.mxu0 0.0
    %474 = vmatprep.mubr.f32.mxu0 0.0
    %475 = vmatmul.mubr.f32.gmra.mrb[0].mxu0 %v408
    %v476 = vpop.f32.mrb[0].mxu0
    %v477 = vadd.f32 %v402, %v476
    %v478 = vpop.f32.mrb[0].mxu0
    %479 = vdwg.mxu0
    %v480 = vadd.f32 %v477, %v223
    %v481 = vxor.u32 %v480, 2147483648
    %v482 = vmul.f32 %v481, 1.442695
    %v483 = vpow.pop %v482
    %v484 = vadd.f32 %v483, 1.0
    %v485 = vrcp.pop %v484
    %v486 = vmul.f32 1.0, %v485
    %v487 = vtanh.pop %v480
    %v488 = vmul.f32 %v486, 0.0
    %490 = vrot.lane.b32.xlu0 %v487, 64
    %v491 = vpop.permute.xlu0 %490
    %v493 = vmul.f32 %v486, %v491
    %495 = vrot.lane.b32.xlu0 %v493, 32
    %v496 = vpop.permute.xlu0 %495
    %v498 = vadd.f32 %v488, %v496
    %v499 = vtanh.pop %v498
    %501 = vrot.lane.b32.xlu0 %v499, 64
    %v502 = vpop.permute.xlu0 %501
    %v504 = vmul.f32 %v486, %v502
    %s505 = sld [smem:[#allocation3 + $0x1]]
    %s506 = scalar_lea.vmem [#allocation2], %s505
    %v507 = vld [vmem:[%s506] sm:$0x1]
    %s508 = sld [smem:[#allocation3 + $0x81]]
    %s509 = scalar_lea.vmem [#allocation2], %s508
    %v510 = vld [vmem:[%s509] sm:$0x1]
    %v512 = vrot.slane %v510, 7
    %v514 = vsel %vm234, %v507, %v512
    %515 = vmatprep.subr.mxu0 0.0
    %516 = vmatpush1.msra.mxu0 %v206
    %517 = vmatprep.subr.mxu0 0.0
    %518 = vmatpush1.msra.mxu0 %v207
    %519 = vmatprep.subr.mxu0 0.0
    %520 = vmatpush1.msra.mxu0 %v208
    %521 = vmatprep.subr.mxu0 0.0
    %522 = vmatpush1.msra.mxu0 %v209
    %523 = vmatprep.subr.mxu0 0.0
    %524 = vmatpush1.msra.mxu0 0.0
    %525 = vmatprep.subr.mxu0 0.0
    %526 = vmatpush1.msra.mxu0 0.0
    %527 = vmatprep.subr.mxu0 0.0
    %528 = vmatpush1.msra.mxu0 0.0
    %529 = vmatprep.subr.mxu0 0.0
    %530 = vmatpush1.msra.mxu0 0.0
    %531 = vmatprep.subr.mxu0 0.0
    %532 = vmatpush1.msra.mxu0 0.0
    %533 = vmatprep.subr.mxu0 0.0
    %534 = vmatpush1.msra.mxu0 0.0
    %535 = vmatprep.subr.mxu0 0.0
    %536 = vmatpush1.msra.mxu0 0.0
    %537 = vmatprep.subr.mxu0 0.0
    %538 = vmatpush1.msra.mxu0 0.0
    %539 = vmatprep.subr.mxu0 0.0
    %540 = vmatpush1.msra.mxu0 0.0
    %541 = vmatprep.subr.mxu0 0.0
    %542 = vmatpush1.msra.mxu0 0.0
    %543 = vmatprep.subr.mxu0 0.0
    %544 = vmatpush1.msra.mxu0 0.0
    %545 = vmatprep.subr.mxu0 0.0
    %546 = vmatpush1.msra.mxu0 0.0
    %547 = vmatprep.subr.mxu0 0.0
    %548 = vmatpush1.msra.mxu0 0.0
    %549 = vmatprep.subr.mxu0 0.0
    %550 = vmatpush1.msra.mxu0 0.0
    %551 = vmatprep.subr.mxu0 0.0
    %552 = vmatpush1.msra.mxu0 0.0
    %553 = vmatprep.subr.mxu0 0.0
    %554 = vmatpush1.msra.mxu0 0.0
    %555 = vmatprep.subr.mxu0 0.0
    %556 = vmatpush1.msra.mxu0 0.0
    %557 = vmatprep.subr.mxu0 0.0
    %558 = vmatpush1.msra.mxu0 0.0
    %559 = vmatprep.subr.mxu0 0.0
    %560 = vmatpush1.msra.mxu0 0.0
    %561 = vmatprep.subr.mxu0 0.0
    %562 = vmatpush1.msra.mxu0 0.0
    %563 = vmatprep.subr.mxu0 0.0
    %564 = vmatpush1.msra.mxu0 0.0
    %565 = vmatprep.subr.mxu0 0.0
    %566 = vmatpush1.msra.mxu0 0.0
    %567 = vmatprep.subr.mxu0 0.0
    %568 = vmatpush1.msra.mxu0 0.0
    %569 = vmatprep.subr.mxu0 0.0
    %570 = vmatpush1.msra.mxu0 0.0
    %571 = vmatprep.subr.mxu0 0.0
    %572 = vmatpush1.msra.mxu0 0.0
    %573 = vmatprep.subr.mxu0 0.0
    %574 = vmatpush1.msra.mxu0 0.0
    %575 = vmatprep.subr.mxu0 0.0
    %576 = vmatpush1.msra.mxu0 0.0
    %577 = vmatprep.subr.mxu0 0.0
    %578 = vmatpush1.msra.mxu0 0.0
    %579 = vmatprep.mubr.f32.mxu0 0.0
    %580 = vmatmul.mubr.f32.gmra.mrb[0].mxu0 %v408
    %v581 = vpop.f32.mrb[0].mxu0
    %v582 = vadd.f32 0.0, %v581
    %v583 = vpop.f32.mrb[0].mxu0
    %584 = vdwg.mxu0
    %v585 = vadd.f32 %v514, %v582
    %v586 = vxor.u32 %v585, 2147483648
    %v587 = vmul.f32 %v586, 1.442695
    %v588 = vpow.pop %v587
    %v589 = vadd.f32 %v588, 1.0
    %v590 = vrcp.pop %v589
    %v591 = vmul.f32 1.0, %v590
    %v592 = vtanh.pop %v585
    %v593 = vmul.f32 %v591, %v328
    %595 = vrot.lane.b32.xlu0 %v592, 64
    %v596 = vpop.permute.xlu0 %595
    %v598 = vmul.f32 %v591, %v596
    %600 = vrot.lane.b32.xlu0 %v598, 32
    %v601 = vpop.permute.xlu0 %600
    %v603 = vadd.f32 %v593, %v601
    %v604 = vtanh.pop %v603
    %606 = vrot.lane.b32.xlu0 %v604, 64
    %v607 = vpop.permute.xlu0 %606
    %v609 = vmul.f32 %v591, %v607
    %611 = vrot.lane.b32.xlu0 %v504, 32
    %v612 = vpop.permute.xlu0 %611
    %v613 = vsel %vm236, %v612, 0
    %615 = vmatprep.subr.mxu0 0.0
    %616 = vmatpush1.msra.mxu0 %v214
    %617 = vmatprep.subr.mxu0 0.0
    %618 = vmatpush1.msra.mxu0 %v215
    %619 = vmatprep.subr.mxu0 0.0
    %620 = vmatpush1.msra.mxu0 %v216
    %621 = vmatprep.subr.mxu0 0.0
    %622 = vmatpush1.msra.mxu0 %v217
    %623 = vmatprep.subr.mxu0 0.0
    %624 = vmatpush1.msra.mxu0 0.0
    %625 = vmatprep.subr.mxu0 0.0
    %626 = vmatpush1.msra.mxu0 0.0
    %627 = vmatprep.subr.mxu0 0.0
    %628 = vmatpush1.msra.mxu0 0.0
    %629 = vmatprep.subr.mxu0 0.0
    %630 = vmatpush1.msra.mxu0 0.0
    %631 = vmatprep.subr.mxu0 0.0
    %632 = vmatpush1.msra.mxu0 0.0
    %633 = vmatprep.subr.mxu0 0.0
    %634 = vmatpush1.msra.mxu0 0.0
    %635 = vmatprep.subr.mxu0 0.0
    %636 = vmatpush1.msra.mxu0 0.0
    %637 = vmatprep.subr.mxu0 0.0
    %638 = vmatpush1.msra.mxu0 0.0
    %639 = vmatprep.subr.mxu0 0.0
    %640 = vmatpush1.msra.mxu0 0.0
    %641 = vmatprep.subr.mxu0 0.0
    %642 = vmatpush1.msra.mxu0 0.0
    %643 = vmatprep.subr.mxu0 0.0
    %644 = vmatpush1.msra.mxu0 0.0
    %645 = vmatprep.subr.mxu0 0.0
    %646 = vmatpush1.msra.mxu0 0.0
    %647 = vmatprep.subr.mxu0 0.0
    %648 = vmatpush1.msra.mxu0 0.0
    %649 = vmatprep.subr.mxu0 0.0
    %650 = vmatpush1.msra.mxu0 0.0
    %651 = vmatprep.subr.mxu0 0.0
    %652 = vmatpush1.msra.mxu0 0.0
    %653 = vmatprep.subr.mxu0 0.0
    %654 = vmatpush1.msra.mxu0 0.0
    %655 = vmatprep.subr.mxu0 0.0
    %656 = vmatpush1.msra.mxu0 0.0
    %657 = vmatprep.subr.mxu0 0.0
    %658 = vmatpush1.msra.mxu0 0.0
    %659 = vmatprep.subr.mxu0 0.0
    %660 = vmatpush1.msra.mxu0 0.0
    %661 = vmatprep.subr.mxu0 0.0
    %662 = vmatpush1.msra.mxu0 0.0
    %663 = vmatprep.subr.mxu0 0.0
    %664 = vmatpush1.msra.mxu0 0.0
    %665 = vmatprep.subr.mxu0 0.0
    %666 = vmatpush1.msra.mxu0 0.0
    %667 = vmatprep.subr.mxu0 0.0
    %668 = vmatpush1.msra.mxu0 0.0
    %669 = vmatprep.subr.mxu0 0.0
    %670 = vmatpush1.msra.mxu0 0.0
    %671 = vmatprep.subr.mxu0 0.0
    %672 = vmatpush1.msra.mxu0 0.0
    %673 = vmatprep.subr.mxu0 0.0
    %674 = vmatpush1.msra.mxu0 0.0
    %675 = vmatprep.subr.mxu0 0.0
    %676 = vmatpush1.msra.mxu0 0.0
    %677 = vmatprep.subr.mxu0 0.0
    %678 = vmatpush1.msra.mxu0 0.0
    %679 = vmatprep.mubr.f32.mxu0 0.0
    %680 = vmatmul.mubr.f32.gmra.mrb[0].mxu0 %v613
    %v681 = vpop.f32.mrb[0].mxu0
    %v682 = vadd.f32 0.0, %v681
    %v683 = vpop.f32.mrb[0].mxu0
    %684 = vdwg.mxu0
    %686 = vrot.lane.b32.xlu0 %v609, 32
    %v687 = vpop.permute.xlu0 %686
    %v688 = vsel %vm236, %v687, 0
    %690 = vmatprep.subr.mxu0 0.0
    %691 = vmatpush1.msra.mxu0 %v210
    %692 = vmatprep.subr.mxu0 0.0
    %693 = vmatpush1.msra.mxu0 %v211
    %694 = vmatprep.subr.mxu0 0.0
    %695 = vmatpush1.msra.mxu0 %v212
    %696 = vmatprep.subr.mxu0 0.0
    %697 = vmatpush1.msra.mxu0 %v213
    %698 = vmatprep.subr.mxu0 0.0
    %699 = vmatpush1.msra.mxu0 0.0
    %700 = vmatprep.subr.mxu0 0.0
    %701 = vmatpush1.msra.mxu0 0.0
    %702 = vmatprep.subr.mxu0 0.0
    %703 = vmatpush1.msra.mxu0 0.0
    %704 = vmatprep.subr.mxu0 0.0
    %705 = vmatpush1.msra.mxu0 0.0
    %706 = vmatprep.subr.mxu0 0.0
    %707 = vmatpush1.msra.mxu0 0.0
    %708 = vmatprep.subr.mxu0 0.0
    %709 = vmatpush1.msra.mxu0 0.0
    %710 = vmatprep.subr.mxu0 0.0
    %711 = vmatpush1.msra.mxu0 0.0
    %712 = vmatprep.subr.mxu0 0.0
    %713 = vmatpush1.msra.mxu0 0.0
    %714 = vmatprep.subr.mxu0 0.0
    %715 = vmatpush1.msra.mxu0 0.0
    %716 = vmatprep.subr.mxu0 0.0
    %717 = vmatpush1.msra.mxu0 0.0
    %718 = vmatprep.subr.mxu0 0.0
    %719 = vmatpush1.msra.mxu0 0.0
    %720 = vmatprep.subr.mxu0 0.0
    %721 = vmatpush1.msra.mxu0 0.0
    %722 = vmatprep.subr.mxu0 0.0
    %723 = vmatpush1.msra.mxu0 0.0
    %724 = vmatprep.subr.mxu0 0.0
    %725 = vmatpush1.msra.mxu0 0.0
    %726 = vmatprep.subr.mxu0 0.0
    %727 = vmatpush1.msra.mxu0 0.0
    %728 = vmatprep.subr.mxu0 0.0
    %729 = vmatpush1.msra.mxu0 0.0
    %730 = vmatprep.subr.mxu0 0.0
    %731 = vmatpush1.msra.mxu0 0.0
    %732 = vmatprep.subr.mxu0 0.0
    %733 = vmatpush1.msra.mxu0 0.0
    %734 = vmatprep.subr.mxu0 0.0
    %735 = vmatpush1.msra.mxu0 0.0
    %736 = vmatprep.subr.mxu0 0.0
    %737 = vmatpush1.msra.mxu0 0.0
    %738 = vmatprep.subr.mxu0 0.0
    %739 = vmatpush1.msra.mxu0 0.0
    %740 = vmatprep.subr.mxu0 0.0
    %741 = vmatpush1.msra.mxu0 0.0
    %742 = vmatprep.subr.mxu0 0.0
    %743 = vmatpush1.msra.mxu0 0.0
    %744 = vmatprep.subr.mxu0 0.0
    %745 = vmatpush1.msra.mxu0 0.0
    %746 = vmatprep.subr.mxu0 0.0
    %747 = vmatpush1.msra.mxu0 0.0
    %748 = vmatprep.subr.mxu0 0.0
    %749 = vmatpush1.msra.mxu0 0.0
    %750 = vmatprep.subr.mxu0 0.0
    %751 = vmatpush1.msra.mxu0 0.0
    %752 = vmatprep.subr.mxu0 0.0
    %753 = vmatpush1.msra.mxu0 0.0
    %754 = vmatprep.mubr.f32.mxu0 0.0
    %755 = vmatmul.mubr.f32.gmra.mrb[0].mxu0 %v688
    %v756 = vpop.f32.mrb[0].mxu0
    %v757 = vadd.f32 %v682, %v756
    %v758 = vpop.f32.mrb[0].mxu0
    %759 = vdwg.mxu0
    %v760 = vadd.f32 %v757, %v223
    %v761 = vxor.u32 %v760, 2147483648
    %v762 = vmul.f32 %v761, 1.442695
    %v763 = vpow.pop %v762
    %v764 = vadd.f32 %v763, 1.0
    %v765 = vrcp.pop %v764
    %v766 = vmul.f32 1.0, %v765
    %v767 = vtanh.pop %v760
    %v768 = vmul.f32 %v766, %v498
    %770 = vrot.lane.b32.xlu0 %v767, 64
    %v771 = vpop.permute.xlu0 %770
    %v773 = vmul.f32 %v766, %v771
    %775 = vrot.lane.b32.xlu0 %v773, 32
    %v776 = vpop.permute.xlu0 %775
    %v778 = vadd.f32 %v768, %v776
    %v779 = vtanh.pop %v778
    %781 = vrot.lane.b32.xlu0 %v779, 64
    %v782 = vpop.permute.xlu0 %781
    %v784 = vmul.f32 %v766, %v782
    %s785 = sld [smem:[#allocation3 + $0x2]]
    %s786 = scalar_lea.vmem [#allocation2], %s785
    %v787 = vld [vmem:[%s786] sm:$0x1]
    %s788 = sld [smem:[#allocation3 + $0x82]]
    %s789 = scalar_lea.vmem [#allocation2], %s788
    %v790 = vld [vmem:[%s789] sm:$0x1]
    %v792 = vrot.slane %v790, 7
    %v794 = vsel %vm234, %v787, %v792
    %795 = vmatprep.subr.mxu0 0.0
    %796 = vmatpush1.msra.mxu0 %v206
    %797 = vmatprep.subr.mxu0 0.0
    %798 = vmatpush1.msra.mxu0 %v207
    %799 = vmatprep.subr.mxu0 0.0
    %800 = vmatpush1.msra.mxu0 %v208
    %801 = vmatprep.subr.mxu0 0.0
    %802 = vmatpush1.msra.mxu0 %v209
    %803 = vmatprep.subr.mxu0 0.0
    %804 = vmatpush1.msra.mxu0 0.0
    %805 = vmatprep.subr.mxu0 0.0
    %806 = vmatpush1.msra.mxu0 0.0
    %807 = vmatprep.subr.mxu0 0.0
    %808 = vmatpush1.msra.mxu0 0.0
    %809 = vmatprep.subr.mxu0 0.0
    %810 = vmatpush1.msra.mxu0 0.0
    %811 = vmatprep.subr.mxu0 0.0
    %812 = vmatpush1.msra.mxu0 0.0
    %813 = vmatprep.subr.mxu0 0.0
    %814 = vmatpush1.msra.mxu0 0.0
    %815 = vmatprep.subr.mxu0 0.0
    %816 = vmatpush1.msra.mxu0 0.0
    %817 = vmatprep.subr.mxu0 0.0
    %818 = vmatpush1.msra.mxu0 0.0
    %819 = vmatprep.subr.mxu0 0.0
    %820 = vmatpush1.msra.mxu0 0.0
    %821 = vmatprep.subr.mxu0 0.0
    %822 = vmatpush1.msra.mxu0 0.0
    %823 = vmatprep.subr.mxu0 0.0
    %824 = vmatpush1.msra.mxu0 0.0
    %825 = vmatprep.subr.mxu0 0.0
    %826 = vmatpush1.msra.mxu0 0.0
    %827 = vmatprep.subr.mxu0 0.0
    %828 = vmatpush1.msra.mxu0 0.0
    %829 = vmatprep.subr.mxu0 0.0
    %830 = vmatpush1.msra.mxu0 0.0
    %831 = vmatprep.subr.mxu0 0.0
    %832 = vmatpush1.msra.mxu0 0.0
    %833 = vmatprep.subr.mxu0 0.0
    %834 = vmatpush1.msra.mxu0 0.0
    %835 = vmatprep.subr.mxu0 0.0
    %836 = vmatpush1.msra.mxu0 0.0
    %837 = vmatprep.subr.mxu0 0.0
    %838 = vmatpush1.msra.mxu0 0.0
    %839 = vmatprep.subr.mxu0 0.0
    %840 = vmatpush1.msra.mxu0 0.0
    %841 = vmatprep.subr.mxu0 0.0
    %842 = vmatpush1.msra.mxu0 0.0
    %843 = vmatprep.subr.mxu0 0.0
    %844 = vmatpush1.msra.mxu0 0.0
    %845 = vmatprep.subr.mxu0 0.0
    %846 = vmatpush1.msra.mxu0 0.0
    %847 = vmatprep.subr.mxu0 0.0
    %848 = vmatpush1.msra.mxu0 0.0
    %849 = vmatprep.subr.mxu0 0.0
    %850 = vmatpush1.msra.mxu0 0.0
    %851 = vmatprep.subr.mxu0 0.0
    %852 = vmatpush1.msra.mxu0 0.0
    %853 = vmatprep.subr.mxu0 0.0
    %854 = vmatpush1.msra.mxu0 0.0
    %855 = vmatprep.subr.mxu0 0.0
    %856 = vmatpush1.msra.mxu0 0.0
    %857 = vmatprep.subr.mxu0 0.0
    %858 = vmatpush1.msra.mxu0 0.0
    %859 = vmatprep.mubr.f32.mxu0 0.0
    %860 = vmatmul.mubr.f32.gmra.mrb[0].mxu0 %v688
    %v861 = vpop.f32.mrb[0].mxu0
    %v862 = vadd.f32 0.0, %v861
    %v863 = vpop.f32.mrb[0].mxu0
    %864 = vdwg.mxu0
    %v865 = vadd.f32 %v794, %v862
    %v866 = vxor.u32 %v865, 2147483648
    %v867 = vmul.f32 %v866, 1.442695
    %v868 = vpow.pop %v867
    %v869 = vadd.f32 %v868, 1.0
    %v870 = vrcp.pop %v869
    %v871 = vmul.f32 1.0, %v870
    %v872 = vtanh.pop %v865
    %v873 = vmul.f32 %v871, %v603
    %875 = vrot.lane.b32.xlu0 %v872, 64
    %v876 = vpop.permute.xlu0 %875
    %v878 = vmul.f32 %v871, %v876
    %880 = vrot.lane.b32.xlu0 %v878, 32
    %v881 = vpop.permute.xlu0 %880
    %v883 = vadd.f32 %v873, %v881
    %v884 = vtanh.pop %v883
    %886 = vrot.lane.b32.xlu0 %v884, 64
    %v887 = vpop.permute.xlu0 %886
    %v889 = vmul.f32 %v871, %v887
    %891 = vrot.lane.b32.xlu0 %v784, 32
    %v892 = vpop.permute.xlu0 %891
    %v893 = vsel %vm236, %v892, 0
    %895 = vmatprep.subr.mxu0 0.0
    %896 = vmatpush1.msra.mxu0 %v214
    %897 = vmatprep.subr.mxu0 0.0
    %898 = vmatpush1.msra.mxu0 %v215
    %899 = vmatprep.subr.mxu0 0.0
    %900 = vmatpush1.msra.mxu0 %v216
    %901 = vmatprep.subr.mxu0 0.0
    %902 = vmatpush1.msra.mxu0 %v217
    %903 = vmatprep.subr.mxu0 0.0
    %904 = vmatpush1.msra.mxu0 0.0
    %905 = vmatprep.subr.mxu0 0.0
    %906 = vmatpush1.msra.mxu0 0.0
    %907 = vmatprep.subr.mxu0 0.0
    %908 = vmatpush1.msra.mxu0 0.0
    %909 = vmatprep.subr.mxu0 0.0
    %910 = vmatpush1.msra.mxu0 0.0
    %911 = vmatprep.subr.mxu0 0.0
    %912 = vmatpush1.msra.mxu0 0.0
    %913 = vmatprep.subr.mxu0 0.0
    %914 = vmatpush1.msra.mxu0 0.0
    %915 = vmatprep.subr.mxu0 0.0
    %916 = vmatpush1.msra.mxu0 0.0
    %917 = vmatprep.subr.mxu0 0.0
    %918 = vmatpush1.msra.mxu0 0.0
    %919 = vmatprep.subr.mxu0 0.0
    %920 = vmatpush1.msra.mxu0 0.0
    %921 = vmatprep.subr.mxu0 0.0
    %922 = vmatpush1.msra.mxu0 0.0
    %923 = vmatprep.subr.mxu0 0.0
    %924 = vmatpush1.msra.mxu0 0.0
    %925 = vmatprep.subr.mxu0 0.0
    %926 = vmatpush1.msra.mxu0 0.0
    %927 = vmatprep.subr.mxu0 0.0
    %928 = vmatpush1.msra.mxu0 0.0
    %929 = vmatprep.subr.mxu0 0.0
    %930 = vmatpush1.msra.mxu0 0.0
    %931 = vmatprep.subr.mxu0 0.0
    %932 = vmatpush1.msra.mxu0 0.0
    %933 = vmatprep.subr.mxu0 0.0
    %934 = vmatpush1.msra.mxu0 0.0
    %935 = vmatprep.subr.mxu0 0.0
    %936 = vmatpush1.msra.mxu0 0.0
    %937 = vmatprep.subr.mxu0 0.0
    %938 = vmatpush1.msra.mxu0 0.0
    %939 = vmatprep.subr.mxu0 0.0
    %940 = vmatpush1.msra.mxu0 0.0
    %941 = vmatprep.subr.mxu0 0.0
    %942 = vmatpush1.msra.mxu0 0.0
    %943 = vmatprep.subr.mxu0 0.0
    %944 = vmatpush1.msra.mxu0 0.0
    %945 = vmatprep.subr.mxu0 0.0
    %946 = vmatpush1.msra.mxu0 0.0
    %947 = vmatprep.subr.mxu0 0.0
    %948 = vmatpush1.msra.mxu0 0.0
    %949 = vmatprep.subr.mxu0 0.0
    %950 = vmatpush1.msra.mxu0 0.0
    %951 = vmatprep.subr.mxu0 0.0
    %952 = vmatpush1.msra.mxu0 0.0
    %953 = vmatprep.subr.mxu0 0.0
    %954 = vmatpush1.msra.mxu0 0.0
    %955 = vmatprep.subr.mxu0 0.0
    %956 = vmatpush1.msra.mxu0 0.0
    %957 = vmatprep.subr.mxu0 0.0
    %958 = vmatpush1.msra.mxu0 0.0
    %959 = vmatprep.mubr.f32.mxu0 0.0
    %960 = vmatmul.mubr.f32.gmra.mrb[0].mxu0 %v893
    %v961 = vpop.f32.mrb[0].mxu0
    %v962 = vadd.f32 0.0, %v961
    %v963 = vpop.f32.mrb[0].mxu0
    %964 = vdwg.mxu0
    %966 = vrot.lane.b32.xlu0 %v889, 32
    %v967 = vpop.permute.xlu0 %966
    %v968 = vsel %vm236, %v967, 0
    %970 = vmatprep.subr.mxu0 0.0
    %971 = vmatpush1.msra.mxu0 %v210
    %972 = vmatprep.subr.mxu0 0.0
    %973 = vmatpush1.msra.mxu0 %v211
    %974 = vmatprep.subr.mxu0 0.0
    %975 = vmatpush1.msra.mxu0 %v212
    %976 = vmatprep.subr.mxu0 0.0
    %977 = vmatpush1.msra.mxu0 %v213
    %978 = vmatprep.subr.mxu0 0.0
    %979 = vmatpush1.msra.mxu0 0.0
    %980 = vmatprep.subr.mxu0 0.0
    %981 = vmatpush1.msra.mxu0 0.0
    %982 = vmatprep.subr.mxu0 0.0
    %983 = vmatpush1.msra.mxu0 0.0
    %984 = vmatprep.subr.mxu0 0.0
    %985 = vmatpush1.msra.mxu0 0.0
    %986 = vmatprep.subr.mxu0 0.0
    %987 = vmatpush1.msra.mxu0 0.0
    %988 = vmatprep.subr.mxu0 0.0
    %989 = vmatpush1.msra.mxu0 0.0
    %990 = vmatprep.subr.mxu0 0.0
    %991 = vmatpush1.msra.mxu0 0.0
    %992 = vmatprep.subr.mxu0 0.0
    %993 = vmatpush1.msra.mxu0 0.0
    %994 = vmatprep.subr.mxu0 0.0
    %995 = vmatpush1.msra.mxu0 0.0
    %996 = vmatprep.subr.mxu0 0.0
    %997 = vmatpush1.msra.mxu0 0.0
    %998 = vmatprep.subr.mxu0 0.0
    %999 = vmatpush1.msra.mxu0 0.0
    %1000 = vmatprep.subr.mxu0 0.0
    %1001 = vmatpush1.msra.mxu0 0.0
    %1002 = vmatprep.subr.mxu0 0.0
    %1003 = vmatpush1.msra.mxu0 0.0
    %1004 = vmatprep.subr.mxu0 0.0
    %1005 = vmatpush1.msra.mxu0 0.0
    %1006 = vmatprep.subr.mxu0 0.0
    %1007 = vmatpush1.msra.mxu0 0.0
    %1008 = vmatprep.subr.mxu0 0.0
    %1009 = vmatpush1.msra.mxu0 0.0
    %1010 = vmatprep.subr.mxu0 0.0
    %1011 = vmatpush1.msra.mxu0 0.0
    %1012 = vmatprep.subr.mxu0 0.0
    %1013 = vmatpush1.msra.mxu0 0.0
    %1014 = vmatprep.subr.mxu0 0.0
    %1015 = vmatpush1.msra.mxu0 0.0
    %1016 = vmatprep.subr.mxu0 0.0
    %1017 = vmatpush1.msra.mxu0 0.0
    %1018 = vmatprep.subr.mxu0 0.0
    %1019 = vmatpush1.msra.mxu0 0.0
    %1020 = vmatprep.subr.mxu0 0.0
    %1021 = vmatpush1.msra.mxu0 0.0
    %1022 = vmatprep.subr.mxu0 0.0
    %1023 = vmatpush1.msra.mxu0 0.0
    %1024 = vmatprep.subr.mxu0 0.0
    %1025 = vmatpush1.msra.mxu0 0.0
    %1026 = vmatprep.subr.mxu0 0.0
    %1027 = vmatpush1.msra.mxu0 0.0
    %1028 = vmatprep.subr.mxu0 0.0
    %1029 = vmatpush1.msra.mxu0 0.0
    %1030 = vmatprep.subr.mxu0 0.0
    %1031 = vmatpush1.msra.mxu0 0.0
    %1032 = vmatprep.subr.mxu0 0.0
    %1033 = vmatpush1.msra.mxu0 0.0
    %1034 = vmatprep.mubr.f32.mxu0 0.0
    %1035 = vmatmul.mubr.f32.gmra.mrb[0].mxu0 %v968
    %v1036 = vpop.f32.mrb[0].mxu0
    %v1037 = vadd.f32 %v962, %v1036
    %v1038 = vpop.f32.mrb[0].mxu0
    %1039 = vdwg.mxu0
    %v1040 = vadd.f32 %v1037, %v223
    %v1041 = vxor.u32 %v1040, 2147483648
    %v1042 = vmul.f32 %v1041, 1.442695
    %v1043 = vpow.pop %v1042
    %v1044 = vadd.f32 %v1043, 1.0
    %v1045 = vrcp.pop %v1044
    %v1046 = vmul.f32 1.0, %v1045
    %v1047 = vtanh.pop %v1040
    %v1048 = vmul.f32 %v1046, %v778
    %1050 = vrot.lane.b32.xlu0 %v1047, 64
    %v1051 = vpop.permute.xlu0 %1050
    %v1053 = vmul.f32 %v1046, %v1051
    %1055 = vrot.lane.b32.xlu0 %v1053, 32
    %v1056 = vpop.permute.xlu0 %1055
    %v1058 = vadd.f32 %v1048, %v1056
    %v1059 = vtanh.pop %v1058
    %1061 = vrot.lane.b32.xlu0 %v1059, 64
    %v1062 = vpop.permute.xlu0 %1061
    %v1064 = vmul.f32 %v1046, %v1062
    %s1065 = sld [smem:[#allocation3 + $0x3]]
    %s1066 = scalar_lea.vmem [#allocation2], %s1065
    %v1067 = vld [vmem:[%s1066] sm:$0x1]
    %s1068 = sld [smem:[#allocation3 + $0x83]]
    %s1069 = scalar_lea.vmem [#allocation2], %s1068
    %v1070 = vld [vmem:[%s1069] sm:$0x1]
    %v1072 = vrot.slane %v1070, 7
    %v1074 = vsel %vm234, %v1067, %v1072
    %1075 = vmatprep.subr.mxu0 0.0
    %1076 = vmatpush1.msra.mxu0 %v206
    %1077 = vmatprep.subr.mxu0 0.0
    %1078 = vmatpush1.msra.mxu0 %v207
    %1079 = vmatprep.subr.mxu0 0.0
    %1080 = vmatpush1.msra.mxu0 %v208
    %1081 = vmatprep.subr.mxu0 0.0
    %1082 = vmatpush1.msra.mxu0 %v209
    %1083 = vmatprep.subr.mxu0 0.0
    %1084 = vmatpush1.msra.mxu0 0.0
    %1085 = vmatprep.subr.mxu0 0.0
    %1086 = vmatpush1.msra.mxu0 0.0
    %1087 = vmatprep.subr.mxu0 0.0
    %1088 = vmatpush1.msra.mxu0 0.0
    %1089 = vmatprep.subr.mxu0 0.0
    %1090 = vmatpush1.msra.mxu0 0.0
    %1091 = vmatprep.subr.mxu0 0.0
    %1092 = vmatpush1.msra.mxu0 0.0
    %1093 = vmatprep.subr.mxu0 0.0
    %1094 = vmatpush1.msra.mxu0 0.0
    %1095 = vmatprep.subr.mxu0 0.0
    %1096 = vmatpush1.msra.mxu0 0.0
    %1097 = vmatprep.subr.mxu0 0.0
    %1098 = vmatpush1.msra.mxu0 0.0
    %1099 = vmatprep.subr.mxu0 0.0
    %1100 = vmatpush1.msra.mxu0 0.0
    %1101 = vmatprep.subr.mxu0 0.0
    %1102 = vmatpush1.msra.mxu0 0.0
    %1103 = vmatprep.subr.mxu0 0.0
    %1104 = vmatpush1.msra.mxu0 0.0
    %1105 = vmatprep.subr.mxu0 0.0
    %1106 = vmatpush1.msra.mxu0 0.0
    %1107 = vmatprep.subr.mxu0 0.0
    %1108 = vmatpush1.msra.mxu0 0.0
    %1109 = vmatprep.subr.mxu0 0.0
    %1110 = vmatpush1.msra.mxu0 0.0
    %1111 = vmatprep.subr.mxu0 0.0
    %1112 = vmatpush1.msra.mxu0 0.0
    %1113 = vmatprep.subr.mxu0 0.0
    %1114 = vmatpush1.msra.mxu0 0.0
    %1115 = vmatprep.subr.mxu0 0.0
    %1116 = vmatpush1.msra.mxu0 0.0
    %1117 = vmatprep.subr.mxu0 0.0
    %1118 = vmatpush1.msra.mxu0 0.0
    %1119 = vmatprep.subr.mxu0 0.0
    %1120 = vmatpush1.msra.mxu0 0.0
    %1121 = vmatprep.subr.mxu0 0.0
    %1122 = vmatpush1.msra.mxu0 0.0
    %1123 = vmatprep.subr.mxu0 0.0
    %1124 = vmatpush1.msra.mxu0 0.0
    %1125 = vmatprep.subr.mxu0 0.0
    %1126 = vmatpush1.msra.mxu0 0.0
    %1127 = vmatprep.subr.mxu0 0.0
    %1128 = vmatpush1.msra.mxu0 0.0
    %1129 = vmatprep.subr.mxu0 0.0
    %1130 = vmatpush1.msra.mxu0 0.0
    %1131 = vmatprep.subr.mxu0 0.0
    %1132 = vmatpush1.msra.mxu0 0.0
    %1133 = vmatprep.subr.mxu0 0.0
    %1134 = vmatpush1.msra.mxu0 0.0
    %1135 = vmatprep.subr.mxu0 0.0
    %1136 = vmatpush1.msra.mxu0 0.0
    %1137 = vmatprep.subr.mxu0 0.0
    %1138 = vmatpush1.msra.mxu0 0.0
    %1139 = vmatprep.mubr.f32.mxu0 0.0
    %1140 = vmatmul.mubr.f32.gmra.mrb[0].mxu0 %v968
    %v1141 = vpop.f32.mrb[0].mxu0
    %v1142 = vadd.f32 0.0, %v1141
    %v1143 = vpop.f32.mrb[0].mxu0
    %1144 = vdwg.mxu0
    %v1145 = vadd.f32 %v1074, %v1142
    %v1146 = vxor.u32 %v1145, 2147483648
    %v1147 = vmul.f32 %v1146, 1.442695
    %v1148 = vpow.pop %v1147
    %v1149 = vadd.f32 %v1148, 1.0
    %v1150 = vrcp.pop %v1149
    %v1151 = vmul.f32 1.0, %v1150
    %v1152 = vtanh.pop %v1145
    %v1153 = vmul.f32 %v1151, %v883
    %1155 = vrot.lane.b32.xlu0 %v1152, 64
    %v1156 = vpop.permute.xlu0 %1155
    %v1158 = vmul.f32 %v1151, %v1156
    %1160 = vrot.lane.b32.xlu0 %v1158, 32
    %v1161 = vpop.permute.xlu0 %1160
    %v1163 = vadd.f32 %v1153, %v1161
    %v1164 = vtanh.pop %v1163
    %1166 = vrot.lane.b32.xlu0 %v1164, 64
    %v1167 = vpop.permute.xlu0 %1166
    %v1169 = vmul.f32 %v1151, %v1167
    %1171 = vrot.lane.b32.xlu0 %v1064, 32
    %v1172 = vpop.permute.xlu0 %1171
    %v1173 = vsel %vm236, %v1172, 0
    %1175 = vmatprep.subr.mxu0 0.0
    %1176 = vmatpush1.msra.mxu0 %v214
    %1177 = vmatprep.subr.mxu0 0.0
    %1178 = vmatpush1.msra.mxu0 %v215
    %1179 = vmatprep.subr.mxu0 0.0
    %1180 = vmatpush1.msra.mxu0 %v216
    %1181 = vmatprep.subr.mxu0 0.0
    %1182 = vmatpush1.msra.mxu0 %v217
    %1183 = vmatprep.subr.mxu0 0.0
    %1184 = vmatpush1.msra.mxu0 0.0
    %1185 = vmatprep.subr.mxu0 0.0
    %1186 = vmatpush1.msra.mxu0 0.0
    %1187 = vmatprep.subr.mxu0 0.0
    %1188 = vmatpush1.msra.mxu0 0.0
    %1189 = vmatprep.subr.mxu0 0.0
    %1190 = vmatpush1.msra.mxu0 0.0
    %1191 = vmatprep.subr.mxu0 0.0
    %1192 = vmatpush1.msra.mxu0 0.0
    %1193 = vmatprep.subr.mxu0 0.0
    %1194 = vmatpush1.msra.mxu0 0.0
    %1195 = vmatprep.subr.mxu0 0.0
    %1196 = vmatpush1.msra.mxu0 0.0
    %1197 = vmatprep.subr.mxu0 0.0
    %1198 = vmatpush1.msra.mxu0 0.0
    %1199 = vmatprep.subr.mxu0 0.0
    %1200 = vmatpush1.msra.mxu0 0.0
    %1201 = vmatprep.subr.mxu0 0.0
    %1202 = vmatpush1.msra.mxu0 0.0
    %1203 = vmatprep.subr.mxu0 0.0
    %1204 = vmatpush1.msra.mxu0 0.0
    %1205 = vmatprep.subr.mxu0 0.0
    %1206 = vmatpush1.msra.mxu0 0.0
    %1207 = vmatprep.subr.mxu0 0.0
    %1208 = vmatpush1.msra.mxu0 0.0
    %1209 = vmatprep.subr.mxu0 0.0
    %1210 = vmatpush1.msra.mxu0 0.0
    %1211 = vmatprep.subr.mxu0 0.0
    %1212 = vmatpush1.msra.mxu0 0.0
    %1213 = vmatprep.subr.mxu0 0.0
    %1214 = vmatpush1.msra.mxu0 0.0
    %1215 = vmatprep.subr.mxu0 0.0
    %1216 = vmatpush1.msra.mxu0 0.0
    %1217 = vmatprep.subr.mxu0 0.0
    %1218 = vmatpush1.msra.mxu0 0.0
    %1219 = vmatprep.subr.mxu0 0.0
    %1220 = vmatpush1.msra.mxu0 0.0
    %1221 = vmatprep.subr.mxu0 0.0
    %1222 = vmatpush1.msra.mxu0 0.0
    %1223 = vmatprep.subr.mxu0 0.0
    %1224 = vmatpush1.msra.mxu0 0.0
    %1225 = vmatprep.subr.mxu0 0.0
    %1226 = vmatpush1.msra.mxu0 0.0
    %1227 = vmatprep.subr.mxu0 0.0
    %1228 = vmatpush1.msra.mxu0 0.0
    %1229 = vmatprep.subr.mxu0 0.0
    %1230 = vmatpush1.msra.mxu0 0.0
    %1231 = vmatprep.subr.mxu0 0.0
    %1232 = vmatpush1.msra.mxu0 0.0
    %1233 = vmatprep.subr.mxu0 0.0
    %1234 = vmatpush1.msra.mxu0 0.0
    %1235 = vmatprep.subr.mxu0 0.0
    %1236 = vmatpush1.msra.mxu0 0.0
    %1237 = vmatprep.subr.mxu0 0.0
    %1238 = vmatpush1.msra.mxu0 0.0
    %1239 = vmatprep.mubr.f32.mxu0 0.0
    %1240 = vmatmul.mubr.f32.gmra.mrb[0].mxu0 %v1173
    %v1241 = vpop.f32.mrb[0].mxu0
    %v1242 = vadd.f32 0.0, %v1241
    %v1243 = vpop.f32.mrb[0].mxu0
    %1244 = vdwg.mxu0
    %1246 = vrot.lane.b32.xlu0 %v1169, 32
    %v1247 = vpop.permute.xlu0 %1246
    %v1248 = vsel %vm236, %v1247, 0
    %1250 = vmatprep.subr.mxu0 0.0
    %1251 = vmatpush1.msra.mxu0 %v210
    %1252 = vmatprep.subr.mxu0 0.0
    %1253 = vmatpush1.msra.mxu0 %v211
    %1254 = vmatprep.subr.mxu0 0.0
    %1255 = vmatpush1.msra.mxu0 %v212
    %1256 = vmatprep.subr.mxu0 0.0
    %1257 = vmatpush1.msra.mxu0 %v213
    %1258 = vmatprep.subr.mxu0 0.0
    %1259 = vmatpush1.msra.mxu0 0.0
    %1260 = vmatprep.subr.mxu0 0.0
    %1261 = vmatpush1.msra.mxu0 0.0
    %1262 = vmatprep.subr.mxu0 0.0
    %1263 = vmatpush1.msra.mxu0 0.0
    %1264 = vmatprep.subr.mxu0 0.0
    %1265 = vmatpush1.msra.mxu0 0.0
    %1266 = vmatprep.subr.mxu0 0.0
    %1267 = vmatpush1.msra.mxu0 0.0
    %1268 = vmatprep.subr.mxu0 0.0
    %1269 = vmatpush1.msra.mxu0 0.0
    %1270 = vmatprep.subr.mxu0 0.0
    %1271 = vmatpush1.msra.mxu0 0.0
    %1272 = vmatprep.subr.mxu0 0.0
    %1273 = vmatpush1.msra.mxu0 0.0
    %1274 = vmatprep.subr.mxu0 0.0
    %1275 = vmatpush1.msra.mxu0 0.0
    %1276 = vmatprep.subr.mxu0 0.0
    %1277 = vmatpush1.msra.mxu0 0.0
    %1278 = vmatprep.subr.mxu0 0.0
    %1279 = vmatpush1.msra.mxu0 0.0
    %1280 = vmatprep.subr.mxu0 0.0
    %1281 = vmatpush1.msra.mxu0 0.0
    %1282 = vmatprep.subr.mxu0 0.0
    %1283 = vmatpush1.msra.mxu0 0.0
    %1284 = vmatprep.subr.mxu0 0.0
    %1285 = vmatpush1.msra.mxu0 0.0
    %1286 = vmatprep.subr.mxu0 0.0
    %1287 = vmatpush1.msra.mxu0 0.0
    %1288 = vmatprep.subr.mxu0 0.0
    %1289 = vmatpush1.msra.mxu0 0.0
    %1290 = vmatprep.subr.mxu0 0.0
    %1291 = vmatpush1.msra.mxu0 0.0
    %1292 = vmatprep.subr.mxu0 0.0
    %1293 = vmatpush1.msra.mxu0 0.0
    %1294 = vmatprep.subr.mxu0 0.0
    %1295 = vmatpush1.msra.mxu0 0.0
    %1296 = vmatprep.subr.mxu0 0.0
    %1297 = vmatpush1.msra.mxu0 0.0
    %1298 = vmatprep.subr.mxu0 0.0
    %1299 = vmatpush1.msra.mxu0 0.0
    %1300 = vmatprep.subr.mxu0 0.0
    %1301 = vmatpush1.msra.mxu0 0.0
    %1302 = vmatprep.subr.mxu0 0.0
    %1303 = vmatpush1.msra.mxu0 0.0
    %1304 = vmatprep.subr.mxu0 0.0
    %1305 = vmatpush1.msra.mxu0 0.0
    %1306 = vmatprep.subr.mxu0 0.0
    %1307 = vmatpush1.msra.mxu0 0.0
    %1308 = vmatprep.subr.mxu0 0.0
    %1309 = vmatpush1.msra.mxu0 0.0
    %1310 = vmatprep.subr.mxu0 0.0
    %1311 = vmatpush1.msra.mxu0 0.0
    %1312 = vmatprep.subr.mxu0 0.0
    %1313 = vmatpush1.msra.mxu0 0.0
    %1314 = vmatprep.mubr.f32.mxu0 0.0
    %1315 = vmatmul.mubr.f32.gmra.mrb[0].mxu0 %v1248
    %v1316 = vpop.f32.mrb[0].mxu0
    %v1317 = vadd.f32 %v1242, %v1316
    %v1318 = vpop.f32.mrb[0].mxu0
    %1319 = vdwg.mxu0
    %v1320 = vadd.f32 %v1317, %v223
    %v1321 = vxor.u32 %v1320, 2147483648
    %v1322 = vmul.f32 %v1321, 1.442695
    %v1323 = vpow.pop %v1322
    %v1324 = vadd.f32 %v1323, 1.0
    %v1325 = vrcp.pop %v1324
    %v1326 = vmul.f32 1.0, %v1325
    %v1327 = vtanh.pop %v1320
    %v1328 = vmul.f32 %v1326, %v1058
    %1330 = vrot.lane.b32.xlu0 %v1327, 64
    %v1331 = vpop.permute.xlu0 %1330
    %v1333 = vmul.f32 %v1326, %v1331
    %1335 = vrot.lane.b32.xlu0 %v1333, 32
    %v1336 = vpop.permute.xlu0 %1335
    %v1338 = vadd.f32 %v1328, %v1336
    %v1339 = vtanh.pop %v1338
    %1341 = vrot.lane.b32.xlu0 %v1339, 64
    %v1342 = vpop.permute.xlu0 %1341
    %v1344 = vmul.f32 %v1326, %v1342
    %s1345 = sld [smem:[#allocation3 + $0x4]]
    %s1346 = scalar_lea.vmem [#allocation2], %s1345
    %v1347 = vld [vmem:[%s1346] sm:$0x1]
    %s1348 = sld [smem:[#allocation3 + $0x84]]
    %s1349 = scalar_lea.vmem [#allocation2], %s1348
    %v1350 = vld [vmem:[%s1349] sm:$0x1]
    %v1352 = vrot.slane %v1350, 7
    %v1354 = vsel %vm234, %v1347, %v1352
    %1355 = vmatprep.subr.mxu0 0.0
    %1356 = vmatpush1.msra.mxu0 %v206
    %1357 = vmatprep.subr.mxu0 0.0
    %1358 = vmatpush1.msra.mxu0 %v207
    %1359 = vmatprep.subr.mxu0 0.0
    %1360 = vmatpush1.msra.mxu0 %v208
    %1361 = vmatprep.subr.mxu0 0.0
    %1362 = vmatpush1.msra.mxu0 %v209
    %1363 = vmatprep.subr.mxu0 0.0
    %1364 = vmatpush1.msra.mxu0 0.0
    %1365 = vmatprep.subr.mxu0 0.0
    %1366 = vmatpush1.msra.mxu0 0.0
    %1367 = vmatprep.subr.mxu0 0.0
    %1368 = vmatpush1.msra.mxu0 0.0
    %1369 = vmatprep.subr.mxu0 0.0
    %1370 = vmatpush1.msra.mxu0 0.0
    %1371 = vmatprep.subr.mxu0 0.0
    %1372 = vmatpush1.msra.mxu0 0.0
    %1373 = vmatprep.subr.mxu0 0.0
    %1374 = vmatpush1.msra.mxu0 0.0
    %1375 = vmatprep.subr.mxu0 0.0
    %1376 = vmatpush1.msra.mxu0 0.0
    %1377 = vmatprep.subr.mxu0 0.0
    %1378 = vmatpush1.msra.mxu0 0.0
    %1379 = vmatprep.subr.mxu0 0.0
    %1380 = vmatpush1.msra.mxu0 0.0
    %1381 = vmatprep.subr.mxu0 0.0
    %1382 = vmatpush1.msra.mxu0 0.0
    %1383 = vmatprep.subr.mxu0 0.0
    %1384 = vmatpush1.msra.mxu0 0.0
    %1385 = vmatprep.subr.mxu0 0.0
    %1386 = vmatpush1.msra.mxu0 0.0
    %1387 = vmatprep.subr.mxu0 0.0
    %1388 = vmatpush1.msra.mxu0 0.0
    %1389 = vmatprep.subr.mxu0 0.0
    %1390 = vmatpush1.msra.mxu0 0.0
    %1391 = vmatprep.subr.mxu0 0.0
    %1392 = vmatpush1.msra.mxu0 0.0
    %1393 = vmatprep.subr.mxu0 0.0
    %1394 = vmatpush1.msra.mxu0 0.0
    %1395 = vmatprep.subr.mxu0 0.0
    %1396 = vmatpush1.msra.mxu0 0.0
    %1397 = vmatprep.subr.mxu0 0.0
    %1398 = vmatpush1.msra.mxu0 0.0
    %1399 = vmatprep.subr.mxu0 0.0
    %1400 = vmatpush1.msra.mxu0 0.0
    %1401 = vmatprep.subr.mxu0 0.0
    %1402 = vmatpush1.msra.mxu0 0.0
    %1403 = vmatprep.subr.mxu0 0.0
    %1404 = vmatpush1.msra.mxu0 0.0
    %1405 = vmatprep.subr.mxu0 0.0
    %1406 = vmatpush1.msra.mxu0 0.0
    %1407 = vmatprep.subr.mxu0 0.0
    %1408 = vmatpush1.msra.mxu0 0.0
    %1409 = vmatprep.subr.mxu0 0.0
    %1410 = vmatpush1.msra.mxu0 0.0
    %1411 = vmatprep.subr.mxu0 0.0
    %1412 = vmatpush1.msra.mxu0 0.0
    %1413 = vmatprep.subr.mxu0 0.0
    %1414 = vmatpush1.msra.mxu0 0.0
    %1415 = vmatprep.subr.mxu0 0.0
    %1416 = vmatpush1.msra.mxu0 0.0
    %1417 = vmatprep.subr.mxu0 0.0
    %1418 = vmatpush1.msra.mxu0 0.0
    %1419 = vmatprep.mubr.f32.mxu0 0.0
    %1420 = vmatmul.mubr.f32.gmra.mrb[0].mxu0 %v1248
    %v1421 = vpop.f32.mrb[0].mxu0
    %v1422 = vadd.f32 0.0, %v1421
    %v1423 = vpop.f32.mrb[0].mxu0
    %1424 = vdwg.mxu0
    %v1425 = vadd.f32 %v1354, %v1422
    %v1426 = vxor.u32 %v1425, 2147483648
    %v1427 = vmul.f32 %v1426, 1.442695
    %v1428 = vpow.pop %v1427
    %v1429 = vadd.f32 %v1428, 1.0
    %v1430 = vrcp.pop %v1429
    %v1431 = vmul.f32 1.0, %v1430
    %v1432 = vtanh.pop %v1425
    %v1433 = vmul.f32 %v1431, %v1163
    %1435 = vrot.lane.b32.xlu0 %v1432, 64
    %v1436 = vpop.permute.xlu0 %1435
    %v1438 = vmul.f32 %v1431, %v1436
    %1440 = vrot.lane.b32.xlu0 %v1438, 32
    %v1441 = vpop.permute.xlu0 %1440
    %v1443 = vadd.f32 %v1433, %v1441
    %v1444 = vtanh.pop %v1443
    %1446 = vrot.lane.b32.xlu0 %v1444, 64
    %v1447 = vpop.permute.xlu0 %1446
    %v1449 = vmul.f32 %v1431, %v1447
    %1451 = vrot.lane.b32.xlu0 %v1344, 32
    %v1452 = vpop.permute.xlu0 %1451
    %v1453 = vsel %vm236, %v1452, 0
    %1455 = vmatprep.subr.mxu0 0.0
    %1456 = vmatpush1.msra.mxu0 %v214
    %1457 = vmatprep.subr.mxu0 0.0
    %1458 = vmatpush1.msra.mxu0 %v215
    %1459 = vmatprep.subr.mxu0 0.0
    %1460 = vmatpush1.msra.mxu0 %v216
    %1461 = vmatprep.subr.mxu0 0.0
    %1462 = vmatpush1.msra.mxu0 %v217
    %1463 = vmatprep.subr.mxu0 0.0
    %1464 = vmatpush1.msra.mxu0 0.0
    %1465 = vmatprep.subr.mxu0 0.0
    %1466 = vmatpush1.msra.mxu0 0.0
    %1467 = vmatprep.subr.mxu0 0.0
    %1468 = vmatpush1.msra.mxu0 0.0
    %1469 = vmatprep.subr.mxu0 0.0
    %1470 = vmatpush1.msra.mxu0 0.0
    %1471 = vmatprep.subr.mxu0 0.0
    %1472 = vmatpush1.msra.mxu0 0.0
    %1473 = vmatprep.subr.mxu0 0.0
    %1474 = vmatpush1.msra.mxu0 0.0
    %1475 = vmatprep.subr.mxu0 0.0
    %1476 = vmatpush1.msra.mxu0 0.0
    %1477 = vmatprep.subr.mxu0 0.0
    %1478 = vmatpush1.msra.mxu0 0.0
    %1479 = vmatprep.subr.mxu0 0.0
    %1480 = vmatpush1.msra.mxu0 0.0
    %1481 = vmatprep.subr.mxu0 0.0
    %1482 = vmatpush1.msra.mxu0 0.0
    %1483 = vmatprep.subr.mxu0 0.0
    %1484 = vmatpush1.msra.mxu0 0.0
    %1485 = vmatprep.subr.mxu0 0.0
    %1486 = vmatpush1.msra.mxu0 0.0
    %1487 = vmatprep.subr.mxu0 0.0
    %1488 = vmatpush1.msra.mxu0 0.0
    %1489 = vmatprep.subr.mxu0 0.0
    %1490 = vmatpush1.msra.mxu0 0.0
    %1491 = vmatprep.subr.mxu0 0.0
    %1492 = vmatpush1.msra.mxu0 0.0
    %1493 = vmatprep.subr.mxu0 0.0
    %1494 = vmatpush1.msra.mxu0 0.0
    %1495 = vmatprep.subr.mxu0 0.0
    %1496 = vmatpush1.msra.mxu0 0.0
    %1497 = vmatprep.subr.mxu0 0.0
    %1498 = vmatpush1.msra.mxu0 0.0
    %1499 = vmatprep.subr.mxu0 0.0
    %1500 = vmatpush1.msra.mxu0 0.0
    %1501 = vmatprep.subr.mxu0 0.0
    %1502 = vmatpush1.msra.mxu0 0.0
    %1503 = vmatprep.subr.mxu0 0.0
    %1504 = vmatpush1.msra.mxu0 0.0
    %1505 = vmatprep.subr.mxu0 0.0
    %1506 = vmatpush1.msra.mxu0 0.0
    %1507 = vmatprep.subr.mxu0 0.0
    %1508 = vmatpush1.msra.mxu0 0.0
    %1509 = vmatprep.subr.mxu0 0.0
    %1510 = vmatpush1.msra.mxu0 0.0
    %1511 = vmatprep.subr.mxu0 0.0
    %1512 = vmatpush1.msra.mxu0 0.0
    %1513 = vmatprep.subr.mxu0 0.0
    %1514 = vmatpush1.msra.mxu0 0.0
    %1515 = vmatprep.subr.mxu0 0.0
    %1516 = vmatpush1.msra.mxu0 0.0
    %1517 = vmatprep.subr.mxu0 0.0
    %1518 = vmatpush1.msra.mxu0 0.0
    %1519 = vmatprep.mubr.f32.mxu0 0.0
    %1520 = vmatmul.mubr.f32.gmra.mrb[0].mxu0 %v1453
    %v1521 = vpop.f32.mrb[0].mxu0
    %v1522 = vadd.f32 0.0, %v1521
    %v1523 = vpop.f32.mrb[0].mxu0
    %1524 = vdwg.mxu0
    %1526 = vrot.lane.b32.xlu0 %v1449, 32
    %v1527 = vpop.permute.xlu0 %1526
    %v1528 = vsel %vm236, %v1527, 0
    %1530 = vmatprep.subr.mxu0 0.0
    %1531 = vmatpush1.msra.mxu0 %v210
    %1532 = vmatprep.subr.mxu0 0.0
    %1533 = vmatpush1.msra.mxu0 %v211
    %1534 = vmatprep.subr.mxu0 0.0
    %1535 = vmatpush1.msra.mxu0 %v212
    %1536 = vmatprep.subr.mxu0 0.0
    %1537 = vmatpush1.msra.mxu0 %v213
    %1538 = vmatprep.subr.mxu0 0.0
    %1539 = vmatpush1.msra.mxu0 0.0
    %1540 = vmatprep.subr.mxu0 0.0
    %1541 = vmatpush1.msra.mxu0 0.0
    %1542 = vmatprep.subr.mxu0 0.0
    %1543 = vmatpush1.msra.mxu0 0.0
    %1544 = vmatprep.subr.mxu0 0.0
    %1545 = vmatpush1.msra.mxu0 0.0
    %1546 = vmatprep.subr.mxu0 0.0
    %1547 = vmatpush1.msra.mxu0 0.0
    %1548 = vmatprep.subr.mxu0 0.0
    %1549 = vmatpush1.msra.mxu0 0.0
    %1550 = vmatprep.subr.mxu0 0.0
    %1551 = vmatpush1.msra.mxu0 0.0
    %1552 = vmatprep.subr.mxu0 0.0
    %1553 = vmatpush1.msra.mxu0 0.0
    %1554 = vmatprep.subr.mxu0 0.0
    %1555 = vmatpush1.msra.mxu0 0.0
    %1556 = vmatprep.subr.mxu0 0.0
    %1557 = vmatpush1.msra.mxu0 0.0
    %1558 = vmatprep.subr.mxu0 0.0
    %1559 = vmatpush1.msra.mxu0 0.0
    %1560 = vmatprep.subr.mxu0 0.0
    %1561 = vmatpush1.msra.mxu0 0.0
    %1562 = vmatprep.subr.mxu0 0.0
    %1563 = vmatpush1.msra.mxu0 0.0
    %1564 = vmatprep.subr.mxu0 0.0
    %1565 = vmatpush1.msra.mxu0 0.0
    %1566 = vmatprep.subr.mxu0 0.0
    %1567 = vmatpush1.msra.mxu0 0.0
    %1568 = vmatprep.subr.mxu0 0.0
    %1569 = vmatpush1.msra.mxu0 0.0
    %1570 = vmatprep.subr.mxu0 0.0
    %1571 = vmatpush1.msra.mxu0 0.0
    %1572 = vmatprep.subr.mxu0 0.0
    %1573 = vmatpush1.msra.mxu0 0.0
    %1574 = vmatprep.subr.mxu0 0.0
    %1575 = vmatpush1.msra.mxu0 0.0
    %1576 = vmatprep.subr.mxu0 0.0
    %1577 = vmatpush1.msra.mxu0 0.0
    %1578 = vmatprep.subr.mxu0 0.0
    %1579 = vmatpush1.msra.mxu0 0.0
    %1580 = vmatprep.subr.mxu0 0.0
    %1581 = vmatpush1.msra.mxu0 0.0
    %1582 = vmatprep.subr.mxu0 0.0
    %1583 = vmatpush1.msra.mxu0 0.0
    %1584 = vmatprep.subr.mxu0 0.0
    %1585 = vmatpush1.msra.mxu0 0.0
    %1586 = vmatprep.subr.mxu0 0.0
    %1587 = vmatpush1.msra.mxu0 0.0
    %1588 = vmatprep.subr.mxu0 0.0
    %1589 = vmatpush1.msra.mxu0 0.0
    %1590 = vmatprep.subr.mxu0 0.0
    %1591 = vmatpush1.msra.mxu0 0.0
    %1592 = vmatprep.subr.mxu0 0.0
    %1593 = vmatpush1.msra.mxu0 0.0
    %1594 = vmatprep.mubr.f32.mxu0 0.0
    %1595 = vmatmul.mubr.f32.gmra.mrb[0].mxu0 %v1528
    %v1596 = vpop.f32.mrb[0].mxu0
    %v1597 = vadd.f32 %v1522, %v1596
    %v1598 = vpop.f32.mrb[0].mxu0
    %1599 = vdwg.mxu0
    %v1600 = vadd.f32 %v1597, %v223
    %v1601 = vxor.u32 %v1600, 2147483648
    %v1602 = vmul.f32 %v1601, 1.442695
    %v1603 = vpow.pop %v1602
    %v1604 = vadd.f32 %v1603, 1.0
    %v1605 = vrcp.pop %v1604
    %v1606 = vmul.f32 1.0, %v1605
    %v1607 = vtanh.pop %v1600
    %v1608 = vmul.f32 %v1606, %v1338
    %1610 = vrot.lane.b32.xlu0 %v1607, 64
    %v1611 = vpop.permute.xlu0 %1610
    %v1613 = vmul.f32 %v1606, %v1611
    %1615 = vrot.lane.b32.xlu0 %v1613, 32
    %v1616 = vpop.permute.xlu0 %1615
    %v1618 = vadd.f32 %v1608, %v1616
    %v1619 = vtanh.pop %v1618
    %1621 = vrot.lane.b32.xlu0 %v1619, 64
    %v1622 = vpop.permute.xlu0 %1621
    %v1624 = vmul.f32 %v1606, %v1622
    %s1625 = sld [smem:[#allocation3 + $0x5]]
    %s1626 = scalar_lea.vmem [#allocation2], %s1625
    %v1627 = vld [vmem:[%s1626] sm:$0x1]
    %s1628 = sld [smem:[#allocation3 + $0x85]]
    %s1629 = scalar_lea.vmem [#allocation2], %s1628
    %v1630 = vld [vmem:[%s1629] sm:$0x1]
    %v1632 = vrot.slane %v1630, 7
    %v1634 = vsel %vm234, %v1627, %v1632
    %1635 = vmatprep.subr.mxu0 0.0
    %1636 = vmatpush1.msra.mxu0 %v206
    %1637 = vmatprep.subr.mxu0 0.0
    %1638 = vmatpush1.msra.mxu0 %v207
    %1639 = vmatprep.subr.mxu0 0.0
    %1640 = vmatpush1.msra.mxu0 %v208
    %1641 = vmatprep.subr.mxu0 0.0
    %1642 = vmatpush1.msra.mxu0 %v209
    %1643 = vmatprep.subr.mxu0 0.0
    %1644 = vmatpush1.msra.mxu0 0.0
    %1645 = vmatprep.subr.mxu0 0.0
    %1646 = vmatpush1.msra.mxu0 0.0
    %1647 = vmatprep.subr.mxu0 0.0
    %1648 = vmatpush1.msra.mxu0 0.0
    %1649 = vmatprep.subr.mxu0 0.0
    %1650 = vmatpush1.msra.mxu0 0.0
    %1651 = vmatprep.subr.mxu0 0.0
    %1652 = vmatpush1.msra.mxu0 0.0
    %1653 = vmatprep.subr.mxu0 0.0
    %1654 = vmatpush1.msra.mxu0 0.0
    %1655 = vmatprep.subr.mxu0 0.0
    %1656 = vmatpush1.msra.mxu0 0.0
    %1657 = vmatprep.subr.mxu0 0.0
    %1658 = vmatpush1.msra.mxu0 0.0
    %1659 = vmatprep.subr.mxu0 0.0
    %1660 = vmatpush1.msra.mxu0 0.0
    %1661 = vmatprep.subr.mxu0 0.0
    %1662 = vmatpush1.msra.mxu0 0.0
    %1663 = vmatprep.subr.mxu0 0.0
    %1664 = vmatpush1.msra.mxu0 0.0
    %1665 = vmatprep.subr.mxu0 0.0
    %1666 = vmatpush1.msra.mxu0 0.0
    %1667 = vmatprep.subr.mxu0 0.0
    %1668 = vmatpush1.msra.mxu0 0.0
    %1669 = vmatprep.subr.mxu0 0.0
    %1670 = vmatpush1.msra.mxu0 0.0
    %1671 = vmatprep.subr.mxu0 0.0
    %1672 = vmatpush1.msra.mxu0 0.0
    %1673 = vmatprep.subr.mxu0 0.0
    %1674 = vmatpush1.msra.mxu0 0.0
    %1675 = vmatprep.subr.mxu0 0.0
    %1676 = vmatpush1.msra.mxu0 0.0
    %1677 = vmatprep.subr.mxu0 0.0
    %1678 = vmatpush1.msra.mxu0 0.0
    %1679 = vmatprep.subr.mxu0 0.0
    %1680 = vmatpush1.msra.mxu0 0.0
    %1681 = vmatprep.subr.mxu0 0.0
    %1682 = vmatpush1.msra.mxu0 0.0
    %1683 = vmatprep.subr.mxu0 0.0
    %1684 = vmatpush1.msra.mxu0 0.0
    %1685 = vmatprep.subr.mxu0 0.0
    %1686 = vmatpush1.msra.mxu0 0.0
    %1687 = vmatprep.subr.mxu0 0.0
    %1688 = vmatpush1.msra.mxu0 0.0
    %1689 = vmatprep.subr.mxu0 0.0
    %1690 = vmatpush1.msra.mxu0 0.0
    %1691 = vmatprep.subr.mxu0 0.0
    %1692 = vmatpush1.msra.mxu0 0.0
    %1693 = vmatprep.subr.mxu0 0.0
    %1694 = vmatpush1.msra.mxu0 0.0
    %1695 = vmatprep.subr.mxu0 0.0
    %1696 = vmatpush1.msra.mxu0 0.0
    %1697 = vmatprep.subr.mxu0 0.0
    %1698 = vmatpush1.msra.mxu0 0.0
    %1699 = vmatprep.mubr.f32.mxu0 0.0
    %1700 = vmatmul.mubr.f32.gmra.mrb[0].mxu0 %v1528
    %v1701 = vpop.f32.mrb[0].mxu0
    %v1702 = vadd.f32 0.0, %v1701
    %v1703 = vpop.f32.mrb[0].mxu0
    %1704 = vdwg.mxu0
    %v1705 = vadd.f32 %v1634, %v1702
    %v1706 = vxor.u32 %v1705, 2147483648
    %v1707 = vmul.f32 %v1706, 1.442695
    %v1708 = vpow.pop %v1707
    %v1709 = vadd.f32 %v1708, 1.0
    %v1710 = vrcp.pop %v1709
    %v1711 = vmul.f32 1.0, %v1710
    %v1712 = vtanh.pop %v1705
    %v1713 = vmul.f32 %v1711, %v1443
    %1715 = vrot.lane.b32.xlu0 %v1712, 64
    %v1716 = vpop.permute.xlu0 %1715
    %v1718 = vmul.f32 %v1711, %v1716
    %1720 = vrot.lane.b32.xlu0 %v1718, 32
    %v1721 = vpop.permute.xlu0 %1720
    %v1723 = vadd.f32 %v1713, %v1721
    %v1724 = vtanh.pop %v1723
    %1726 = vrot.lane.b32.xlu0 %v1724, 64
    %v1727 = vpop.permute.xlu0 %1726
    %v1729 = vmul.f32 %v1711, %v1727
    %1731 = vrot.lane.b32.xlu0 %v1624, 32
    %v1732 = vpop.permute.xlu0 %1731
    %v1733 = vsel %vm236, %v1732, 0
    %1735 = vmatprep.subr.mxu0 0.0
    %1736 = vmatpush1.msra.mxu0 %v214
    %1737 = vmatprep.subr.mxu0 0.0
    %1738 = vmatpush1.msra.mxu0 %v215
    %1739 = vmatprep.subr.mxu0 0.0
    %1740 = vmatpush1.msra.mxu0 %v216
    %1741 = vmatprep.subr.mxu0 0.0
    %1742 = vmatpush1.msra.mxu0 %v217
    %1743 = vmatprep.subr.mxu0 0.0
    %1744 = vmatpush1.msra.mxu0 0.0
    %1745 = vmatprep.subr.mxu0 0.0
    %1746 = vmatpush1.msra.mxu0 0.0
    %1747 = vmatprep.subr.mxu0 0.0
    %1748 = vmatpush1.msra.mxu0 0.0
    %1749 = vmatprep.subr.mxu0 0.0
    %1750 = vmatpush1.msra.mxu0 0.0
    %1751 = vmatprep.subr.mxu0 0.0
    %1752 = vmatpush1.msra.mxu0 0.0
    %1753 = vmatprep.subr.mxu0 0.0
    %1754 = vmatpush1.msra.mxu0 0.0
    %1755 = vmatprep.subr.mxu0 0.0
    %1756 = vmatpush1.msra.mxu0 0.0
    %1757 = vmatprep.subr.mxu0 0.0
    %1758 = vmatpush1.msra.mxu0 0.0
    %1759 = vmatprep.subr.mxu0 0.0
    %1760 = vmatpush1.msra.mxu0 0.0
    %1761 = vmatprep.subr.mxu0 0.0
    %1762 = vmatpush1.msra.mxu0 0.0
    %1763 = vmatprep.subr.mxu0 0.0
    %1764 = vmatpush1.msra.mxu0 0.0
    %1765 = vmatprep.subr.mxu0 0.0
    %1766 = vmatpush1.msra.mxu0 0.0
    %1767 = vmatprep.subr.mxu0 0.0
    %1768 = vmatpush1.msra.mxu0 0.0
    %1769 = vmatprep.subr.mxu0 0.0
    %1770 = vmatpush1.msra.mxu0 0.0
    %1771 = vmatprep.subr.mxu0 0.0
    %1772 = vmatpush1.msra.mxu0 0.0
    %1773 = vmatprep.subr.mxu0 0.0
    %1774 = vmatpush1.msra.mxu0 0.0
    %1775 = vmatprep.subr.mxu0 0.0
    %1776 = vmatpush1.msra.mxu0 0.0
    %1777 = vmatprep.subr.mxu0 0.0
    %1778 = vmatpush1.msra.mxu0 0.0
    %1779 = vmatprep.subr.mxu0 0.0
    %1780 = vmatpush1.msra.mxu0 0.0
    %1781 = vmatprep.subr.mxu0 0.0
    %1782 = vmatpush1.msra.mxu0 0.0
    %1783 = vmatprep.subr.mxu0 0.0
    %1784 = vmatpush1.msra.mxu0 0.0
    %1785 = vmatprep.subr.mxu0 0.0
    %1786 = vmatpush1.msra.mxu0 0.0
    %1787 = vmatprep.subr.mxu0 0.0
    %1788 = vmatpush1.msra.mxu0 0.0
    %1789 = vmatprep.subr.mxu0 0.0
    %1790 = vmatpush1.msra.mxu0 0.0
    %1791 = vmatprep.subr.mxu0 0.0
    %1792 = vmatpush1.msra.mxu0 0.0
    %1793 = vmatprep.subr.mxu0 0.0
    %1794 = vmatpush1.msra.mxu0 0.0
    %1795 = vmatprep.subr.mxu0 0.0
    %1796 = vmatpush1.msra.mxu0 0.0
    %1797 = vmatprep.subr.mxu0 0.0
    %1798 = vmatpush1.msra.mxu0 0.0
    %1799 = vmatprep.mubr.f32.mxu0 0.0
    %1800 = vmatmul.mubr.f32.gmra.mrb[0].mxu0 %v1733
    %v1801 = vpop.f32.mrb[0].mxu0
    %v1802 = vadd.f32 0.0, %v1801
    %v1803 = vpop.f32.mrb[0].mxu0
    %1804 = vdwg.mxu0
    %1806 = vrot.lane.b32.xlu0 %v1729, 32
    %v1807 = vpop.permute.xlu0 %1806
    %v1808 = vsel %vm236, %v1807, 0
    %1810 = vmatprep.subr.mxu0 0.0
    %1811 = vmatpush1.msra.mxu0 %v210
    %1812 = vmatprep.subr.mxu0 0.0
    %1813 = vmatpush1.msra.mxu0 %v211
    %1814 = vmatprep.subr.mxu0 0.0
    %1815 = vmatpush1.msra.mxu0 %v212
    %1816 = vmatprep.subr.mxu0 0.0
    %1817 = vmatpush1.msra.mxu0 %v213
    %1818 = vmatprep.subr.mxu0 0.0
    %1819 = vmatpush1.msra.mxu0 0.0
    %1820 = vmatprep.subr.mxu0 0.0
    %1821 = vmatpush1.msra.mxu0 0.0
    %1822 = vmatprep.subr.mxu0 0.0
    %1823 = vmatpush1.msra.mxu0 0.0
    %1824 = vmatprep.subr.mxu0 0.0
    %1825 = vmatpush1.msra.mxu0 0.0
    %1826 = vmatprep.subr.mxu0 0.0
    %1827 = vmatpush1.msra.mxu0 0.0
    %1828 = vmatprep.subr.mxu0 0.0
    %1829 = vmatpush1.msra.mxu0 0.0
    %1830 = vmatprep.subr.mxu0 0.0
    %1831 = vmatpush1.msra.mxu0 0.0
    %1832 = vmatprep.subr.mxu0 0.0
    %1833 = vmatpush1.msra.mxu0 0.0
    %1834 = vmatprep.subr.mxu0 0.0
    %1835 = vmatpush1.msra.mxu0 0.0
    %1836 = vmatprep.subr.mxu0 0.0
    %1837 = vmatpush1.msra.mxu0 0.0
    %1838 = vmatprep.subr.mxu0 0.0
    %1839 = vmatpush1.msra.mxu0 0.0
    %1840 = vmatprep.subr.mxu0 0.0
    %1841 = vmatpush1.msra.mxu0 0.0
    %1842 = vmatprep.subr.mxu0 0.0
    %1843 = vmatpush1.msra.mxu0 0.0
    %1844 = vmatprep.subr.mxu0 0.0
    %1845 = vmatpush1.msra.mxu0 0.0
    %1846 = vmatprep.subr.mxu0 0.0
    %1847 = vmatpush1.msra.mxu0 0.0
    %1848 = vmatprep.subr.mxu0 0.0
    %1849 = vmatpush1.msra.mxu0 0.0
    %1850 = vmatprep.subr.mxu0 0.0
    %1851 = vmatpush1.msra.mxu0 0.0
    %1852 = vmatprep.subr.mxu0 0.0
    %1853 = vmatpush1.msra.mxu0 0.0
    %1854 = vmatprep.subr.mxu0 0.0
    %1855 = vmatpush1.msra.mxu0 0.0
    %1856 = vmatprep.subr.mxu0 0.0
    %1857 = vmatpush1.msra.mxu0 0.0
    %1858 = vmatprep.subr.mxu0 0.0
    %1859 = vmatpush1.msra.mxu0 0.0
    %1860 = vmatprep.subr.mxu0 0.0
    %1861 = vmatpush1.msra.mxu0 0.0
    %1862 = vmatprep.subr.mxu0 0.0
    %1863 = vmatpush1.msra.mxu0 0.0
    %1864 = vmatprep.subr.mxu0 0.0
    %1865 = vmatpush1.msra.mxu0 0.0
    %1866 = vmatprep.subr.mxu0 0.0
    %1867 = vmatpush1.msra.mxu0 0.0
    %1868 = vmatprep.subr.mxu0 0.0
    %1869 = vmatpush1.msra.mxu0 0.0
    %1870 = vmatprep.subr.mxu0 0.0
    %1871 = vmatpush1.msra.mxu0 0.0
    %1872 = vmatprep.subr.mxu0 0.0
    %1873 = vmatpush1.msra.mxu0 0.0
    %1874 = vmatprep.mubr.f32.mxu0 0.0
    %1875 = vmatmul.mubr.f32.gmra.mrb[0].mxu0 %v1808
    %v1876 = vpop.f32.mrb[0].mxu0
    %v1877 = vadd.f32 %v1802, %v1876
    %v1878 = vpop.f32.mrb[0].mxu0
    %1879 = vdwg.mxu0
    %v1880 = vadd.f32 %v1877, %v223
    %v1881 = vxor.u32 %v1880, 2147483648
    %v1882 = vmul.f32 %v1881, 1.442695
    %v1883 = vpow.pop %v1882
    %v1884 = vadd.f32 %v1883, 1.0
    %v1885 = vrcp.pop %v1884
    %v1886 = vmul.f32 1.0, %v1885
    %v1887 = vtanh.pop %v1880
    %v1888 = vmul.f32 %v1886, %v1618
    %1890 = vrot.lane.b32.xlu0 %v1887, 64
    %v1891 = vpop.permute.xlu0 %1890
    %v1893 = vmul.f32 %v1886, %v1891
    %1895 = vrot.lane.b32.xlu0 %v1893, 32
    %v1896 = vpop.permute.xlu0 %1895
    %v1898 = vadd.f32 %v1888, %v1896
    %v1899 = vtanh.pop %v1898
    %1901 = vrot.lane.b32.xlu0 %v1899, 64
    %v1902 = vpop.permute.xlu0 %1901
    %v1904 = vmul.f32 %v1886, %v1902
    %s1905 = sld [smem:[#allocation3 + $0x6]]
    %s1906 = scalar_lea.vmem [#allocation2], %s1905
    %v1907 = vld [vmem:[%s1906] sm:$0x1]
    %s1908 = sld [smem:[#allocation3 + $0x86]]
    %s1909 = scalar_lea.vmem [#allocation2], %s1908
    %v1910 = vld [vmem:[%s1909] sm:$0x1]
    %v1912 = vrot.slane %v1910, 7
    %v1914 = vsel %vm234, %v1907, %v1912
    %1915 = vmatprep.subr.mxu0 0.0
    %1916 = vmatpush1.msra.mxu0 %v206
    %1917 = vmatprep.subr.mxu0 0.0
    %1918 = vmatpush1.msra.mxu0 %v207
    %1919 = vmatprep.subr.mxu0 0.0
    %1920 = vmatpush1.msra.mxu0 %v208
    %1921 = vmatprep.subr.mxu0 0.0
    %1922 = vmatpush1.msra.mxu0 %v209
    %1923 = vmatprep.subr.mxu0 0.0
    %1924 = vmatpush1.msra.mxu0 0.0
    %1925 = vmatprep.subr.mxu0 0.0
    %1926 = vmatpush1.msra.mxu0 0.0
    %1927 = vmatprep.subr.mxu0 0.0
    %1928 = vmatpush1.msra.mxu0 0.0
    %1929 = vmatprep.subr.mxu0 0.0
    %1930 = vmatpush1.msra.mxu0 0.0
    %1931 = vmatprep.subr.mxu0 0.0
    %1932 = vmatpush1.msra.mxu0 0.0
    %1933 = vmatprep.subr.mxu0 0.0
    %1934 = vmatpush1.msra.mxu0 0.0
    %1935 = vmatprep.subr.mxu0 0.0
    %1936 = vmatpush1.msra.mxu0 0.0
    %1937 = vmatprep.subr.mxu0 0.0
    %1938 = vmatpush1.msra.mxu0 0.0
    %1939 = vmatprep.subr.mxu0 0.0
    %1940 = vmatpush1.msra.mxu0 0.0
    %1941 = vmatprep.subr.mxu0 0.0
    %1942 = vmatpush1.msra.mxu0 0.0
    %1943 = vmatprep.subr.mxu0 0.0
    %1944 = vmatpush1.msra.mxu0 0.0
    %1945 = vmatprep.subr.mxu0 0.0
    %1946 = vmatpush1.msra.mxu0 0.0
    %1947 = vmatprep.subr.mxu0 0.0
    %1948 = vmatpush1.msra.mxu0 0.0
    %1949 = vmatprep.subr.mxu0 0.0
    %1950 = vmatpush1.msra.mxu0 0.0
    %1951 = vmatprep.subr.mxu0 0.0
    %1952 = vmatpush1.msra.mxu0 0.0
    %1953 = vmatprep.subr.mxu0 0.0
    %1954 = vmatpush1.msra.mxu0 0.0
    %1955 = vmatprep.subr.mxu0 0.0
    %1956 = vmatpush1.msra.mxu0 0.0
    %1957 = vmatprep.subr.mxu0 0.0
    %1958 = vmatpush1.msra.mxu0 0.0
    %1959 = vmatprep.subr.mxu0 0.0
    %1960 = vmatpush1.msra.mxu0 0.0
    %1961 = vmatprep.subr.mxu0 0.0
    %1962 = vmatpush1.msra.mxu0 0.0
    %1963 = vmatprep.subr.mxu0 0.0
    %1964 = vmatpush1.msra.mxu0 0.0
    %1965 = vmatprep.subr.mxu0 0.0
    %1966 = vmatpush1.msra.mxu0 0.0
    %1967 = vmatprep.subr.mxu0 0.0
    %1968 = vmatpush1.msra.mxu0 0.0
    %1969 = vmatprep.subr.mxu0 0.0
    %1970 = vmatpush1.msra.mxu0 0.0
    %1971 = vmatprep.subr.mxu0 0.0
    %1972 = vmatpush1.msra.mxu0 0.0
    %1973 = vmatprep.subr.mxu0 0.0
    %1974 = vmatpush1.msra.mxu0 0.0
    %1975 = vmatprep.subr.mxu0 0.0
    %1976 = vmatpush1.msra.mxu0 0.0
    %1977 = vmatprep.subr.mxu0 0.0
    %1978 = vmatpush1.msra.mxu0 0.0
    %1979 = vmatprep.mubr.f32.mxu0 0.0
    %1980 = vmatmul.mubr.f32.gmra.mrb[0].mxu0 %v1808
    %v1981 = vpop.f32.mrb[0].mxu0
    %v1982 = vadd.f32 0.0, %v1981
    %v1983 = vpop.f32.mrb[0].mxu0
    %1984 = vdwg.mxu0
    %v1985 = vadd.f32 %v1914, %v1982
    %v1986 = vxor.u32 %v1985, 2147483648
    %v1987 = vmul.f32 %v1986, 1.442695
    %v1988 = vpow.pop %v1987
    %v1989 = vadd.f32 %v1988, 1.0
    %v1990 = vrcp.pop %v1989
    %v1991 = vmul.f32 1.0, %v1990
    %v1992 = vtanh.pop %v1985
    %v1993 = vmul.f32 %v1991, %v1723
    %1995 = vrot.lane.b32.xlu0 %v1992, 64
    %v1996 = vpop.permute.xlu0 %1995
    %v1998 = vmul.f32 %v1991, %v1996
    %2000 = vrot.lane.b32.xlu0 %v1998, 32
    %v2001 = vpop.permute.xlu0 %2000
    %v2003 = vadd.f32 %v1993, %v2001
    %v2004 = vtanh.pop %v2003
    %2006 = vrot.lane.b32.xlu0 %v2004, 64
    %v2007 = vpop.permute.xlu0 %2006
    %v2009 = vmul.f32 %v1991, %v2007
    %2011 = vrot.lane.b32.xlu0 %v1904, 32
    %v2012 = vpop.permute.xlu0 %2011
    %v2013 = vsel %vm236, %v2012, 0
    %2015 = vmatprep.subr.mxu0 0.0
    %2016 = vmatpush1.msra.mxu0 %v214
    %2017 = vmatprep.subr.mxu0 0.0
    %2018 = vmatpush1.msra.mxu0 %v215
    %2019 = vmatprep.subr.mxu0 0.0
    %2020 = vmatpush1.msra.mxu0 %v216
    %2021 = vmatprep.subr.mxu0 0.0
    %2022 = vmatpush1.msra.mxu0 %v217
    %2023 = vmatprep.subr.mxu0 0.0
    %2024 = vmatpush1.msra.mxu0 0.0
    %2025 = vmatprep.subr.mxu0 0.0
    %2026 = vmatpush1.msra.mxu0 0.0
    %2027 = vmatprep.subr.mxu0 0.0
    %2028 = vmatpush1.msra.mxu0 0.0
    %2029 = vmatprep.subr.mxu0 0.0
    %2030 = vmatpush1.msra.mxu0 0.0
    %2031 = vmatprep.subr.mxu0 0.0
    %2032 = vmatpush1.msra.mxu0 0.0
    %2033 = vmatprep.subr.mxu0 0.0
    %2034 = vmatpush1.msra.mxu0 0.0
    %2035 = vmatprep.subr.mxu0 0.0
    %2036 = vmatpush1.msra.mxu0 0.0
    %2037 = vmatprep.subr.mxu0 0.0
    %2038 = vmatpush1.msra.mxu0 0.0
    %2039 = vmatprep.subr.mxu0 0.0
    %2040 = vmatpush1.msra.mxu0 0.0
    %2041 = vmatprep.subr.mxu0 0.0
    %2042 = vmatpush1.msra.mxu0 0.0
    %2043 = vmatprep.subr.mxu0 0.0
    %2044 = vmatpush1.msra.mxu0 0.0
    %2045 = vmatprep.subr.mxu0 0.0
    %2046 = vmatpush1.msra.mxu0 0.0
    %2047 = vmatprep.subr.mxu0 0.0
    %2048 = vmatpush1.msra.mxu0 0.0
    %2049 = vmatprep.subr.mxu0 0.0
    %2050 = vmatpush1.msra.mxu0 0.0
    %2051 = vmatprep.subr.mxu0 0.0
    %2052 = vmatpush1.msra.mxu0 0.0
    %2053 = vmatprep.subr.mxu0 0.0
    %2054 = vmatpush1.msra.mxu0 0.0
    %2055 = vmatprep.subr.mxu0 0.0
    %2056 = vmatpush1.msra.mxu0 0.0
    %2057 = vmatprep.subr.mxu0 0.0
    %2058 = vmatpush1.msra.mxu0 0.0
    %2059 = vmatprep.subr.mxu0 0.0
    %2060 = vmatpush1.msra.mxu0 0.0
    %2061 = vmatprep.subr.mxu0 0.0
    %2062 = vmatpush1.msra.mxu0 0.0
    %2063 = vmatprep.subr.mxu0 0.0
    %2064 = vmatpush1.msra.mxu0 0.0
    %2065 = vmatprep.subr.mxu0 0.0
    %2066 = vmatpush1.msra.mxu0 0.0
    %2067 = vmatprep.subr.mxu0 0.0
    %2068 = vmatpush1.msra.mxu0 0.0
    %2069 = vmatprep.subr.mxu0 0.0
    %2070 = vmatpush1.msra.mxu0 0.0
    %2071 = vmatprep.subr.mxu0 0.0
    %2072 = vmatpush1.msra.mxu0 0.0
    %2073 = vmatprep.subr.mxu0 0.0
    %2074 = vmatpush1.msra.mxu0 0.0
    %2075 = vmatprep.subr.mxu0 0.0
    %2076 = vmatpush1.msra.mxu0 0.0
    %2077 = vmatprep.subr.mxu0 0.0
    %2078 = vmatpush1.msra.mxu0 0.0
    %2079 = vmatprep.mubr.f32.mxu0 0.0
    %2080 = vmatmul.mubr.f32.gmra.mrb[0].mxu0 %v2013
    %v2081 = vpop.f32.mrb[0].mxu0
    %v2082 = vadd.f32 0.0, %v2081
    %v2083 = vpop.f32.mrb[0].mxu0
    %2084 = vdwg.mxu0
    %2086 = vrot.lane.b32.xlu0 %v2009, 32
    %v2087 = vpop.permute.xlu0 %2086
    %v2088 = vsel %vm236, %v2087, 0
    %2090 = vmatprep.subr.mxu0 0.0
    %2091 = vmatpush1.msra.mxu0 %v210
    %2092 = vmatprep.subr.mxu0 0.0
    %2093 = vmatpush1.msra.mxu0 %v211
    %2094 = vmatprep.subr.mxu0 0.0
    %2095 = vmatpush1.msra.mxu0 %v212
    %2096 = vmatprep.subr.mxu0 0.0
    %2097 = vmatpush1.msra.mxu0 %v213
    %2098 = vmatprep.subr.mxu0 0.0
    %2099 = vmatpush1.msra.mxu0 0.0
    %2100 = vmatprep.subr.mxu0 0.0
    %2101 = vmatpush1.msra.mxu0 0.0
    %2102 = vmatprep.subr.mxu0 0.0
    %2103 = vmatpush1.msra.mxu0 0.0
    %2104 = vmatprep.subr.mxu0 0.0
    %2105 = vmatpush1.msra.mxu0 0.0
    %2106 = vmatprep.subr.mxu0 0.0
    %2107 = vmatpush1.msra.mxu0 0.0
    %2108 = vmatprep.subr.mxu0 0.0
    %2109 = vmatpush1.msra.mxu0 0.0
    %2110 = vmatprep.subr.mxu0 0.0
    %2111 = vmatpush1.msra.mxu0 0.0
    %2112 = vmatprep.subr.mxu0 0.0
    %2113 = vmatpush1.msra.mxu0 0.0
    %2114 = vmatprep.subr.mxu0 0.0
    %2115 = vmatpush1.msra.mxu0 0.0
    %2116 = vmatprep.subr.mxu0 0.0
    %2117 = vmatpush1.msra.mxu0 0.0
    %2118 = vmatprep.subr.mxu0 0.0
    %2119 = vmatpush1.msra.mxu0 0.0
    %2120 = vmatprep.subr.mxu0 0.0
    %2121 = vmatpush1.msra.mxu0 0.0
    %2122 = vmatprep.subr.mxu0 0.0
    %2123 = vmatpush1.msra.mxu0 0.0
    %2124 = vmatprep.subr.mxu0 0.0
    %2125 = vmatpush1.msra.mxu0 0.0
    %2126 = vmatprep.subr.mxu0 0.0
    %2127 = vmatpush1.msra.mxu0 0.0
    %2128 = vmatprep.subr.mxu0 0.0
    %2129 = vmatpush1.msra.mxu0 0.0
    %2130 = vmatprep.subr.mxu0 0.0
    %2131 = vmatpush1.msra.mxu0 0.0
    %2132 = vmatprep.subr.mxu0 0.0
    %2133 = vmatpush1.msra.mxu0 0.0
    %2134 = vmatprep.subr.mxu0 0.0
    %2135 = vmatpush1.msra.mxu0 0.0
    %2136 = vmatprep.subr.mxu0 0.0
    %2137 = vmatpush1.msra.mxu0 0.0
    %2138 = vmatprep.subr.mxu0 0.0
    %2139 = vmatpush1.msra.mxu0 0.0
    %2140 = vmatprep.subr.mxu0 0.0
    %2141 = vmatpush1.msra.mxu0 0.0
    %2142 = vmatprep.subr.mxu0 0.0
    %2143 = vmatpush1.msra.mxu0 0.0
    %2144 = vmatprep.subr.mxu0 0.0
    %2145 = vmatpush1.msra.mxu0 0.0
    %2146 = vmatprep.subr.mxu0 0.0
    %2147 = vmatpush1.msra.mxu0 0.0
    %2148 = vmatprep.subr.mxu0 0.0
    %2149 = vmatpush1.msra.mxu0 0.0
    %2150 = vmatprep.subr.mxu0 0.0
    %2151 = vmatpush1.msra.mxu0 0.0
    %2152 = vmatprep.subr.mxu0 0.0
    %2153 = vmatpush1.msra.mxu0 0.0
    %2154 = vmatprep.mubr.f32.mxu0 0.0
    %2155 = vmatmul.mubr.f32.gmra.mrb[0].mxu0 %v2088
    %v2156 = vpop.f32.mrb[0].mxu0
    %v2157 = vadd.f32 %v2082, %v2156
    %v2158 = vpop.f32.mrb[0].mxu0
    %2159 = vdwg.mxu0
    %v2160 = vadd.f32 %v2157, %v223
    %v2161 = vxor.u32 %v2160, 2147483648
    %v2162 = vmul.f32 %v2161, 1.442695
    %v2163 = vpow.pop %v2162
    %v2164 = vadd.f32 %v2163, 1.0
    %v2165 = vrcp.pop %v2164
    %v2166 = vmul.f32 1.0, %v2165
    %v2167 = vtanh.pop %v2160
    %v2168 = vmul.f32 %v2166, %v1898
    %2170 = vrot.lane.b32.xlu0 %v2167, 64
    %v2171 = vpop.permute.xlu0 %2170
    %v2173 = vmul.f32 %v2166, %v2171
    %2175 = vrot.lane.b32.xlu0 %v2173, 32
    %v2176 = vpop.permute.xlu0 %2175
    %v2178 = vadd.f32 %v2168, %v2176
    %v2179 = vtanh.pop %v2178
    %2181 = vrot.lane.b32.xlu0 %v2179, 64
    %v2182 = vpop.permute.xlu0 %2181
    %v2184 = vmul.f32 %v2166, %v2182
    %s2185 = sld [smem:[#allocation3 + $0x7]]
    %s2186 = scalar_lea.vmem [#allocation2], %s2185
    %v2187 = vld [vmem:[%s2186] sm:$0x1]
    %s2188 = sld [smem:[#allocation3 + $0x87]]
    %s2189 = scalar_lea.vmem [#allocation2], %s2188
    %v2190 = vld [vmem:[%s2189] sm:$0x1]
    %v2192 = vrot.slane %v2190, 7
    %v2194 = vsel %vm234, %v2187, %v2192
    %2195 = vmatprep.subr.mxu0 0.0
    %2196 = vmatpush1.msra.mxu0 %v206
    %2197 = vmatprep.subr.mxu0 0.0
    %2198 = vmatpush1.msra.mxu0 %v207
    %2199 = vmatprep.subr.mxu0 0.0
    %2200 = vmatpush1.msra.mxu0 %v208
    %2201 = vmatprep.subr.mxu0 0.0
    %2202 = vmatpush1.msra.mxu0 %v209
    %2203 = vmatprep.subr.mxu0 0.0
    %2204 = vmatpush1.msra.mxu0 0.0
    %2205 = vmatprep.subr.mxu0 0.0
    %2206 = vmatpush1.msra.mxu0 0.0
    %2207 = vmatprep.subr.mxu0 0.0
    %2208 = vmatpush1.msra.mxu0 0.0
    %2209 = vmatprep.subr.mxu0 0.0
    %2210 = vmatpush1.msra.mxu0 0.0
    %2211 = vmatprep.subr.mxu0 0.0
    %2212 = vmatpush1.msra.mxu0 0.0
    %2213 = vmatprep.subr.mxu0 0.0
    %2214 = vmatpush1.msra.mxu0 0.0
    %2215 = vmatprep.subr.mxu0 0.0
    %2216 = vmatpush1.msra.mxu0 0.0
    %2217 = vmatprep.subr.mxu0 0.0
    %2218 = vmatpush1.msra.mxu0 0.0
    %2219 = vmatprep.subr.mxu0 0.0
    %2220 = vmatpush1.msra.mxu0 0.0
    %2221 = vmatprep.subr.mxu0 0.0
    %2222 = vmatpush1.msra.mxu0 0.0
    %2223 = vmatprep.subr.mxu0 0.0
    %2224 = vmatpush1.msra.mxu0 0.0
    %2225 = vmatprep.subr.mxu0 0.0
    %2226 = vmatpush1.msra.mxu0 0.0
    %2227 = vmatprep.subr.mxu0 0.0
    %2228 = vmatpush1.msra.mxu0 0.0
    %2229 = vmatprep.subr.mxu0 0.0
    %2230 = vmatpush1.msra.mxu0 0.0
    %2231 = vmatprep.subr.mxu0 0.0
    %2232 = vmatpush1.msra.mxu0 0.0
    %2233 = vmatprep.subr.mxu0 0.0
    %2234 = vmatpush1.msra.mxu0 0.0
    %2235 = vmatprep.subr.mxu0 0.0
    %2236 = vmatpush1.msra.mxu0 0.0
    %2237 = vmatprep.subr.mxu0 0.0
    %2238 = vmatpush1.msra.mxu0 0.0
    %2239 = vmatprep.subr.mxu0 0.0
    %2240 = vmatpush1.msra.mxu0 0.0
    %2241 = vmatprep.subr.mxu0 0.0
    %2242 = vmatpush1.msra.mxu0 0.0
    %2243 = vmatprep.subr.mxu0 0.0
    %2244 = vmatpush1.msra.mxu0 0.0
    %2245 = vmatprep.subr.mxu0 0.0
    %2246 = vmatpush1.msra.mxu0 0.0
    %2247 = vmatprep.subr.mxu0 0.0
    %2248 = vmatpush1.msra.mxu0 0.0
    %2249 = vmatprep.subr.mxu0 0.0
    %2250 = vmatpush1.msra.mxu0 0.0
    %2251 = vmatprep.subr.mxu0 0.0
    %2252 = vmatpush1.msra.mxu0 0.0
    %2253 = vmatprep.subr.mxu0 0.0
    %2254 = vmatpush1.msra.mxu0 0.0
    %2255 = vmatprep.subr.mxu0 0.0
    %2256 = vmatpush1.msra.mxu0 0.0
    %2257 = vmatprep.subr.mxu0 0.0
    %2258 = vmatpush1.msra.mxu0 0.0
    %2259 = vmatprep.mubr.f32.mxu0 0.0
    %2260 = vmatmul.mubr.f32.gmra.mrb[0].mxu0 %v2088
    %v2261 = vpop.f32.mrb[0].mxu0
    %v2262 = vadd.f32 0.0, %v2261
    %v2263 = vpop.f32.mrb[0].mxu0
    %2264 = vdwg.mxu0
    %v2265 = vadd.f32 %v2194, %v2262
    %v2266 = vxor.u32 %v2265, 2147483648
    %v2267 = vmul.f32 %v2266, 1.442695
    %v2268 = vpow.pop %v2267
    %v2269 = vadd.f32 %v2268, 1.0
    %v2270 = vrcp.pop %v2269
    %v2271 = vmul.f32 1.0, %v2270
    %v2272 = vtanh.pop %v2265
    %v2273 = vmul.f32 %v2271, %v2003
    %2275 = vrot.lane.b32.xlu0 %v2272, 64
    %v2276 = vpop.permute.xlu0 %2275
    %v2278 = vmul.f32 %v2271, %v2276
    %2280 = vrot.lane.b32.xlu0 %v2278, 32
    %v2281 = vpop.permute.xlu0 %2280
    %v2283 = vadd.f32 %v2273, %v2281
    %v2284 = vtanh.pop %v2283
    %2286 = vrot.lane.b32.xlu0 %v2284, 64
    %v2287 = vpop.permute.xlu0 %2286
    %v2289 = vmul.f32 %v2271, %v2287
    %2291 = vrot.lane.b32.xlu0 %v2184, 32
    %v2292 = vpop.permute.xlu0 %2291
    %v2293 = vsel %vm236, %v2292, 0
    %2295 = vmatprep.subr.mxu0 0.0
    %2296 = vmatpush1.msra.mxu0 %v214
    %2297 = vmatprep.subr.mxu0 0.0
    %2298 = vmatpush1.msra.mxu0 %v215
    %2299 = vmatprep.subr.mxu0 0.0
    %2300 = vmatpush1.msra.mxu0 %v216
    %2301 = vmatprep.subr.mxu0 0.0
    %2302 = vmatpush1.msra.mxu0 %v217
    %2303 = vmatprep.subr.mxu0 0.0
    %2304 = vmatpush1.msra.mxu0 0.0
    %2305 = vmatprep.subr.mxu0 0.0
    %2306 = vmatpush1.msra.mxu0 0.0
    %2307 = vmatprep.subr.mxu0 0.0
    %2308 = vmatpush1.msra.mxu0 0.0
    %2309 = vmatprep.subr.mxu0 0.0
    %2310 = vmatpush1.msra.mxu0 0.0
    %2311 = vmatprep.subr.mxu0 0.0
    %2312 = vmatpush1.msra.mxu0 0.0
    %2313 = vmatprep.subr.mxu0 0.0
    %2314 = vmatpush1.msra.mxu0 0.0
    %2315 = vmatprep.subr.mxu0 0.0
    %2316 = vmatpush1.msra.mxu0 0.0
    %2317 = vmatprep.subr.mxu0 0.0
    %2318 = vmatpush1.msra.mxu0 0.0
    %2319 = vmatprep.subr.mxu0 0.0
    %2320 = vmatpush1.msra.mxu0 0.0
    %2321 = vmatprep.subr.mxu0 0.0
    %2322 = vmatpush1.msra.mxu0 0.0
    %2323 = vmatprep.subr.mxu0 0.0
    %2324 = vmatpush1.msra.mxu0 0.0
    %2325 = vmatprep.subr.mxu0 0.0
    %2326 = vmatpush1.msra.mxu0 0.0
    %2327 = vmatprep.subr.mxu0 0.0
    %2328 = vmatpush1.msra.mxu0 0.0
    %2329 = vmatprep.subr.mxu0 0.0
    %2330 = vmatpush1.msra.mxu0 0.0
    %2331 = vmatprep.subr.mxu0 0.0
    %2332 = vmatpush1.msra.mxu0 0.0
    %2333 = vmatprep.subr.mxu0 0.0
    %2334 = vmatpush1.msra.mxu0 0.0
    %2335 = vmatprep.subr.mxu0 0.0
    %2336 = vmatpush1.msra.mxu0 0.0
    %2337 = vmatprep.subr.mxu0 0.0
    %2338 = vmatpush1.msra.mxu0 0.0
    %2339 = vmatprep.subr.mxu0 0.0
    %2340 = vmatpush1.msra.mxu0 0.0
    %2341 = vmatprep.subr.mxu0 0.0
    %2342 = vmatpush1.msra.mxu0 0.0
    %2343 = vmatprep.subr.mxu0 0.0
    %2344 = vmatpush1.msra.mxu0 0.0
    %2345 = vmatprep.subr.mxu0 0.0
    %2346 = vmatpush1.msra.mxu0 0.0
    %2347 = vmatprep.subr.mxu0 0.0
    %2348 = vmatpush1.msra.mxu0 0.0
    %2349 = vmatprep.subr.mxu0 0.0
    %2350 = vmatpush1.msra.mxu0 0.0
    %2351 = vmatprep.subr.mxu0 0.0
    %2352 = vmatpush1.msra.mxu0 0.0
    %2353 = vmatprep.subr.mxu0 0.0
    %2354 = vmatpush1.msra.mxu0 0.0
    %2355 = vmatprep.subr.mxu0 0.0
    %2356 = vmatpush1.msra.mxu0 0.0
    %2357 = vmatprep.subr.mxu0 0.0
    %2358 = vmatpush1.msra.mxu0 0.0
    %2359 = vmatprep.mubr.f32.mxu0 0.0
    %2360 = vmatmul.mubr.f32.gmra.mrb[0].mxu0 %v2293
    %v2361 = vpop.f32.mrb[0].mxu0
    %v2362 = vadd.f32 0.0, %v2361
    %v2363 = vpop.f32.mrb[0].mxu0
    %2364 = vdwg.mxu0
    %2366 = vrot.lane.b32.xlu0 %v2289, 32
    %v2367 = vpop.permute.xlu0 %2366
    %v2368 = vsel %vm236, %v2367, 0
    %2370 = vmatprep.subr.mxu0 0.0
    %2371 = vmatpush1.msra.mxu0 %v210
    %2372 = vmatprep.subr.mxu0 0.0
    %2373 = vmatpush1.msra.mxu0 %v211
    %2374 = vmatprep.subr.mxu0 0.0
    %2375 = vmatpush1.msra.mxu0 %v212
    %2376 = vmatprep.subr.mxu0 0.0
    %2377 = vmatpush1.msra.mxu0 %v213
    %2378 = vmatprep.subr.mxu0 0.0
    %2379 = vmatpush1.msra.mxu0 0.0
    %2380 = vmatprep.subr.mxu0 0.0
    %2381 = vmatpush1.msra.mxu0 0.0
    %2382 = vmatprep.subr.mxu0 0.0
    %2383 = vmatpush1.msra.mxu0 0.0
    %2384 = vmatprep.subr.mxu0 0.0
    %2385 = vmatpush1.msra.mxu0 0.0
    %2386 = vmatprep.subr.mxu0 0.0
    %2387 = vmatpush1.msra.mxu0 0.0
    %2388 = vmatprep.subr.mxu0 0.0
    %2389 = vmatpush1.msra.mxu0 0.0
    %2390 = vmatprep.subr.mxu0 0.0
    %2391 = vmatpush1.msra.mxu0 0.0
    %2392 = vmatprep.subr.mxu0 0.0
    %2393 = vmatpush1.msra.mxu0 0.0
    %2394 = vmatprep.subr.mxu0 0.0
    %2395 = vmatpush1.msra.mxu0 0.0
    %2396 = vmatprep.subr.mxu0 0.0
    %2397 = vmatpush1.msra.mxu0 0.0
    %2398 = vmatprep.subr.mxu0 0.0
    %2399 = vmatpush1.msra.mxu0 0.0
    %2400 = vmatprep.subr.mxu0 0.0
    %2401 = vmatpush1.msra.mxu0 0.0
    %2402 = vmatprep.subr.mxu0 0.0
    %2403 = vmatpush1.msra.mxu0 0.0
    %2404 = vmatprep.subr.mxu0 0.0
    %2405 = vmatpush1.msra.mxu0 0.0
    %2406 = vmatprep.subr.mxu0 0.0
    %2407 = vmatpush1.msra.mxu0 0.0
    %2408 = vmatprep.subr.mxu0 0.0
    %2409 = vmatpush1.msra.mxu0 0.0
    %2410 = vmatprep.subr.mxu0 0.0
    %2411 = vmatpush1.msra.mxu0 0.0
    %2412 = vmatprep.subr.mxu0 0.0
    %2413 = vmatpush1.msra.mxu0 0.0
    %2414 = vmatprep.subr.mxu0 0.0
    %2415 = vmatpush1.msra.mxu0 0.0
    %2416 = vmatprep.subr.mxu0 0.0
    %2417 = vmatpush1.msra.mxu0 0.0
    %2418 = vmatprep.subr.mxu0 0.0
    %2419 = vmatpush1.msra.mxu0 0.0
    %2420 = vmatprep.subr.mxu0 0.0
    %2421 = vmatpush1.msra.mxu0 0.0
    %2422 = vmatprep.subr.mxu0 0.0
    %2423 = vmatpush1.msra.mxu0 0.0
    %2424 = vmatprep.subr.mxu0 0.0
    %2425 = vmatpush1.msra.mxu0 0.0
    %2426 = vmatprep.subr.mxu0 0.0
    %2427 = vmatpush1.msra.mxu0 0.0
    %2428 = vmatprep.subr.mxu0 0.0
    %2429 = vmatpush1.msra.mxu0 0.0
    %2430 = vmatprep.subr.mxu0 0.0
    %2431 = vmatpush1.msra.mxu0 0.0
    %2432 = vmatprep.subr.mxu0 0.0
    %2433 = vmatpush1.msra.mxu0 0.0
    %2434 = vmatprep.mubr.f32.mxu0 0.0
    %2435 = vmatmul.mubr.f32.gmra.mrb[0].mxu0 %v2368
    %v2436 = vpop.f32.mrb[0].mxu0
    %v2437 = vadd.f32 %v2362, %v2436
    %v2438 = vpop.f32.mrb[0].mxu0
    %2439 = vdwg.mxu0
    %v2440 = vadd.f32 %v2437, %v223
    %v2441 = vxor.u32 %v2440, 2147483648
    %v2442 = vmul.f32 %v2441, 1.442695
    %v2443 = vpow.pop %v2442
    %v2444 = vadd.f32 %v2443, 1.0
    %v2445 = vrcp.pop %v2444
    %v2446 = vmul.f32 1.0, %v2445
    %v2447 = vtanh.pop %v2440
    %v2448 = vmul.f32 %v2446, %v2178
    %2450 = vrot.lane.b32.xlu0 %v2447, 64
    %v2451 = vpop.permute.xlu0 %2450
    %v2453 = vmul.f32 %v2446, %v2451
    %2455 = vrot.lane.b32.xlu0 %v2453, 32
    %v2456 = vpop.permute.xlu0 %2455
    %v2458 = vadd.f32 %v2448, %v2456
    %v2459 = vtanh.pop %v2458
    %2461 = vrot.lane.b32.xlu0 %v2459, 64
    %v2462 = vpop.permute.xlu0 %2461
    %v2464 = vmul.f32 %v2446, %v2462
    %2466 = vrot.lane.b32.xlu0 %v2464, 32
    %v2467 = vpop.permute.xlu0 %2466
    %2469 = vrot.lane.b32.xlu0 %v2289, 64
    %v2470 = vpop.permute.xlu0 %2469
    %v2472 = vsel %vm236, %v2467, %v2470
    %v2473 = vld [vmem:[%s8] sm:$0xff]
    %v2474 = vld [vmem:[%s8 + $0x8] sm:$0xff]
    %v2475 = vld [vmem:[%s8 + $0x10] sm:$0xff]
    %v2476 = vld [vmem:[%s8 + $0x18] sm:$0xff]
    %v2477 = vld [vmem:[%s8 + $0x20] sm:$0xff]
    %v2478 = vld [vmem:[%s8 + $0x28] sm:$0xff]
    %v2479 = vld [vmem:[%s8 + $0x30] sm:$0xff]
    %v2480 = vld [vmem:[%s8 + $0x38] sm:$0xff]
    %v2481 = vld [vmem:[%s9] sm:$0x1]
    %v2483 = vlaneseq
    %v2484 = vshrl.u32 %v2483, 7
    %v2485 = vsub.s32 0, %v2484
    %v2486 = vrot.slane %v2481, %v2485
    %vm2488 = vcmask 523264
    %v2490 = vsel %vm2488, %v2472, 0
    %2492 = vmatprep.subr.mxu0 0.0
    %2493 = vmatpush1.msra.mxu0 %v2473
    %2494 = vmatprep.subr.mxu0 0.0
    %2495 = vmatpush1.msra.mxu0 %v2474
    %2496 = vmatprep.subr.mxu0 0.0
    %2497 = vmatpush1.msra.mxu0 %v2475
    %2498 = vmatprep.subr.mxu0 0.0
    %2499 = vmatpush1.msra.mxu0 %v2476
    %2500 = vmatprep.subr.mxu0 0.0
    %2501 = vmatpush1.msra.mxu0 %v2477
    %2502 = vmatprep.subr.mxu0 0.0
    %2503 = vmatpush1.msra.mxu0 %v2478
    %2504 = vmatprep.subr.mxu0 0.0
    %2505 = vmatpush1.msra.mxu0 %v2479
    %2506 = vmatprep.subr.mxu0 0.0
    %2507 = vmatpush1.msra.mxu0 %v2480
    %2508 = vmatprep.subr.mxu0 0.0
    %2509 = vmatpush1.msra.mxu0 0.0
    %2510 = vmatprep.subr.mxu0 0.0
    %2511 = vmatpush1.msra.mxu0 0.0
    %2512 = vmatprep.subr.mxu0 0.0
    %2513 = vmatpush1.msra.mxu0 0.0
    %2514 = vmatprep.subr.mxu0 0.0
    %2515 = vmatpush1.msra.mxu0 0.0
    %2516 = vmatprep.subr.mxu0 0.0
    %2517 = vmatpush1.msra.mxu0 0.0
    %2518 = vmatprep.subr.mxu0 0.0
    %2519 = vmatpush1.msra.mxu0 0.0
    %2520 = vmatprep.subr.mxu0 0.0
    %2521 = vmatpush1.msra.mxu0 0.0
    %2522 = vmatprep.subr.mxu0 0.0
    %2523 = vmatpush1.msra.mxu0 0.0
    %2524 = vmatprep.subr.mxu0 0.0
    %2525 = vmatpush1.msra.mxu0 0.0
    %2526 = vmatprep.subr.mxu0 0.0
    %2527 = vmatpush1.msra.mxu0 0.0
    %2528 = vmatprep.subr.mxu0 0.0
    %2529 = vmatpush1.msra.mxu0 0.0
    %2530 = vmatprep.subr.mxu0 0.0
    %2531 = vmatpush1.msra.mxu0 0.0
    %2532 = vmatprep.subr.mxu0 0.0
    %2533 = vmatpush1.msra.mxu0 0.0
    %2534 = vmatprep.subr.mxu0 0.0
    %2535 = vmatpush1.msra.mxu0 0.0
    %2536 = vmatprep.subr.mxu0 0.0
    %2537 = vmatpush1.msra.mxu0 0.0
    %2538 = vmatprep.subr.mxu0 0.0
    %2539 = vmatpush1.msra.mxu0 0.0
    %2540 = vmatprep.subr.mxu0 0.0
    %2541 = vmatpush1.msra.mxu0 0.0
    %2542 = vmatprep.subr.mxu0 0.0
    %2543 = vmatpush1.msra.mxu0 0.0
    %2544 = vmatprep.subr.mxu0 0.0
    %2545 = vmatpush1.msra.mxu0 0.0
    %2546 = vmatprep.subr.mxu0 0.0
    %2547 = vmatpush1.msra.mxu0 0.0
    %2548 = vmatprep.subr.mxu0 0.0
    %2549 = vmatpush1.msra.mxu0 0.0
    %2550 = vmatprep.subr.mxu0 0.0
    %2551 = vmatpush1.msra.mxu0 0.0
    %2552 = vmatprep.subr.mxu0 0.0
    %2553 = vmatpush1.msra.mxu0 0.0
    %2554 = vmatprep.subr.mxu0 0.0
    %2555 = vmatpush1.msra.mxu0 0.0
    %2556 = vmatprep.mubr.f32.mxu0 0.0
    %2557 = vmatmul.mubr.f32.gmra.mrb[0].mxu0 %v2490
    %v2558 = vpop.f32.mrb[0].mxu0
    %v2559 = vadd.f32 %v2486, %v2558
    %v2560 = vpop.f32.mrb[0].mxu0
    %2561 = vdwg.mxu0
    %v2562 = vld [vmem:[%s10] sm:$0xff]
    %v2563 = vld [vmem:[%s10 + $0x8] sm:$0xff]
    %v2564 = vld [vmem:[%s10 + $0x10] sm:$0xff]
    %v2565 = vld [vmem:[%s10 + $0x18] sm:$0xff]
    %v2566 = vld [vmem:[%s11] sm:$0x1]
    %v2568 = vlaneseq
    %v2569 = vshrl.u32 %v2568, 7
    %v2570 = vsub.s32 0, %v2569
    %v2571 = vrot.slane %v2566, %v2570
    %v2574 = vsel %vm236, %v2559, 0
    %2576 = vmatprep.subr.mxu0 0.0
    %2577 = vmatpush1.msra.mxu0 %v2562
    %2578 = vmatprep.subr.mxu0 0.0
    %2579 = vmatpush1.msra.mxu0 %v2563
    %2580 = vmatprep.subr.mxu0 0.0
    %2581 = vmatpush1.msra.mxu0 %v2564
    %2582 = vmatprep.subr.mxu0 0.0
    %2583 = vmatpush1.msra.mxu0 %v2565
    %2584 = vmatprep.subr.mxu0 0.0
    %2585 = vmatpush1.msra.mxu0 0.0
    %2586 = vmatprep.subr.mxu0 0.0
    %2587 = vmatpush1.msra.mxu0 0.0
    %2588 = vmatprep.subr.mxu0 0.0
    %2589 = vmatpush1.msra.mxu0 0.0
    %2590 = vmatprep.subr.mxu0 0.0
    %2591 = vmatpush1.msra.mxu0 0.0
    %2592 = vmatprep.subr.mxu0 0.0
    %2593 = vmatpush1.msra.mxu0 0.0
    %2594 = vmatprep.subr.mxu0 0.0
    %2595 = vmatpush1.msra.mxu0 0.0
    %2596 = vmatprep.subr.mxu0 0.0
    %2597 = vmatpush1.msra.mxu0 0.0
    %2598 = vmatprep.subr.mxu0 0.0
    %2599 = vmatpush1.msra.mxu0 0.0
    %2600 = vmatprep.subr.mxu0 0.0
    %2601 = vmatpush1.msra.mxu0 0.0
    %2602 = vmatprep.subr.mxu0 0.0
    %2603 = vmatpush1.msra.mxu0 0.0
    %2604 = vmatprep.subr.mxu0 0.0
    %2605 = vmatpush1.msra.mxu0 0.0
    %2606 = vmatprep.subr.mxu0 0.0
    %2607 = vmatpush1.msra.mxu0 0.0
    %2608 = vmatprep.subr.mxu0 0.0
    %2609 = vmatpush1.msra.mxu0 0.0
    %2610 = vmatprep.subr.mxu0 0.0
    %2611 = vmatpush1.msra.mxu0 0.0
    %2612 = vmatprep.subr.mxu0 0.0
    %2613 = vmatpush1.msra.mxu0 0.0
    %2614 = vmatprep.subr.mxu0 0.0
    %2615 = vmatpush1.msra.mxu0 0.0
    %2616 = vmatprep.subr.mxu0 0.0
    %2617 = vmatpush1.msra.mxu0 0.0
    %2618 = vmatprep.subr.mxu0 0.0
    %2619 = vmatpush1.msra.mxu0 0.0
    %2620 = vmatprep.subr.mxu0 0.0
    %2621 = vmatpush1.msra.mxu0 0.0
    %2622 = vmatprep.subr.mxu0 0.0
    %2623 = vmatpush1.msra.mxu0 0.0
    %2624 = vmatprep.subr.mxu0 0.0
    %2625 = vmatpush1.msra.mxu0 0.0
    %2626 = vmatprep.subr.mxu0 0.0
    %2627 = vmatpush1.msra.mxu0 0.0
    %2628 = vmatprep.subr.mxu0 0.0
    %2629 = vmatpush1.msra.mxu0 0.0
    %2630 = vmatprep.subr.mxu0 0.0
    %2631 = vmatpush1.msra.mxu0 0.0
    %2632 = vmatprep.subr.mxu0 0.0
    %2633 = vmatpush1.msra.mxu0 0.0
    %2634 = vmatprep.subr.mxu0 0.0
    %2635 = vmatpush1.msra.mxu0 0.0
    %2636 = vmatprep.subr.mxu0 0.0
    %2637 = vmatpush1.msra.mxu0 0.0
    %2638 = vmatprep.subr.mxu0 0.0
    %2639 = vmatpush1.msra.mxu0 0.0
    %2640 = vmatprep.mubr.f32.mxu0 0.0
    %2641 = vmatmul.mubr.f32.gmra.mrb[0].mxu0 %v2574
    %v2642 = vpop.f32.mrb[0].mxu0
    %v2643 = vadd.f32 %v2571, %v2642
    %v2644 = vpop.f32.mrb[0].mxu0
    %2645 = vdwg.mxu0
    %v2646 = vld [vmem:[%s12] sm:$0xff]
    %v2647 = vld [vmem:[%s12 + $0x8] sm:$0xff]
    %v2648 = vld [vmem:[%s13] sm:$0x1]
    %v2650 = vlaneseq
    %v2651 = vshrl.u32 %v2650, 7
    %v2652 = vsub.s32 0, %v2651
    %v2653 = vrot.slane %v2648, %v2652
    %v2656 = vsel %vm77, %v2643, 0
    %2658 = vmatprep.subr.mxu0 0.0
    %2659 = vmatpush1.msra.mxu0 %v2646
    %2660 = vmatprep.subr.mxu0 0.0
    %2661 = vmatpush1.msra.mxu0 %v2647
    %2662 = vmatprep.subr.mxu0 0.0
    %2663 = vmatpush1.msra.mxu0 0.0
    %2664 = vmatprep.subr.mxu0 0.0
    %2665 = vmatpush1.msra.mxu0 0.0
    %2666 = vmatprep.subr.mxu0 0.0
    %2667 = vmatpush1.msra.mxu0 0.0
    %2668 = vmatprep.subr.mxu0 0.0
    %2669 = vmatpush1.msra.mxu0 0.0
    %2670 = vmatprep.subr.mxu0 0.0
    %2671 = vmatpush1.msra.mxu0 0.0
    %2672 = vmatprep.subr.mxu0 0.0
    %2673 = vmatpush1.msra.mxu0 0.0
    %2674 = vmatprep.subr.mxu0 0.0
    %2675 = vmatpush1.msra.mxu0 0.0
    %2676 = vmatprep.subr.mxu0 0.0
    %2677 = vmatpush1.msra.mxu0 0.0
    %2678 = vmatprep.subr.mxu0 0.0
    %2679 = vmatpush1.msra.mxu0 0.0
    %2680 = vmatprep.subr.mxu0 0.0
    %2681 = vmatpush1.msra.mxu0 0.0
    %2682 = vmatprep.subr.mxu0 0.0
    %2683 = vmatpush1.msra.mxu0 0.0
    %2684 = vmatprep.subr.mxu0 0.0
    %2685 = vmatpush1.msra.mxu0 0.0
    %2686 = vmatprep.subr.mxu0 0.0
    %2687 = vmatpush1.msra.mxu0 0.0
    %2688 = vmatprep.subr.mxu0 0.0
    %2689 = vmatpush1.msra.mxu0 0.0
    %2690 = vmatprep.subr.mxu0 0.0
    %2691 = vmatpush1.msra.mxu0 0.0
    %2692 = vmatprep.subr.mxu0 0.0
    %2693 = vmatpush1.msra.mxu0 0.0
    %2694 = vmatprep.subr.mxu0 0.0
    %2695 = vmatpush1.msra.mxu0 0.0
    %2696 = vmatprep.subr.mxu0 0.0
    %2697 = vmatpush1.msra.mxu0 0.0
    %2698 = vmatprep.subr.mxu0 0.0
    %2699 = vmatpush1.msra.mxu0 0.0
    %2700 = vmatprep.subr.mxu0 0.0
    %2701 = vmatpush1.msra.mxu0 0.0
    %2702 = vmatprep.subr.mxu0 0.0
    %2703 = vmatpush1.msra.mxu0 0.0
    %2704 = vmatprep.subr.mxu0 0.0
    %2705 = vmatpush1.msra.mxu0 0.0
    %2706 = vmatprep.subr.mxu0 0.0
    %2707 = vmatpush1.msra.mxu0 0.0
    %2708 = vmatprep.subr.mxu0 0.0
    %2709 = vmatpush1.msra.mxu0 0.0
    %2710 = vmatprep.subr.mxu0 0.0
    %2711 = vmatpush1.msra.mxu0 0.0
    %2712 = vmatprep.subr.mxu0 0.0
    %2713 = vmatpush1.msra.mxu0 0.0
    %2714 = vmatprep.subr.mxu0 0.0
    %2715 = vmatpush1.msra.mxu0 0.0
    %2716 = vmatprep.subr.mxu0 0.0
    %2717 = vmatpush1.msra.mxu0 0.0
    %2718 = vmatprep.subr.mxu0 0.0
    %2719 = vmatpush1.msra.mxu0 0.0
    %2720 = vmatprep.subr.mxu0 0.0
    %2721 = vmatpush1.msra.mxu0 0.0
    %2722 = vmatprep.mubr.f32.mxu0 0.0
    %2723 = vmatmul.mubr.f32.gmra.mrb[0].mxu0 %v2656
    %v2724 = vpop.f32.mrb[0].mxu0
    %v2725 = vadd.f32 %v2653, %v2724
    %v2726 = vpop.f32.mrb[0].mxu0
    %2727 = vdwg.mxu0
    %vm2728 = vcmask 25600
    %2729 = vst.msk [vmem:[#allocation6] sm:$0x3] %vm2728, %v2725
    // Predicated region
    $region62: #{tpu_custom_call.1} parent=1 // pred_check
      _
    $region63: #{tpu_custom_call.1} parent=1 // pred_check_branch
      %2731 = sbr.rel (0) target = $region65
    $region64: #{tpu_custom_call.1} parent=1 // pred_region
      %s2733 = ssub.s32 32, 32
      %2734 = vsyncadd [#allocation4], %s2733
      %s2736 = sshll.u32 [#allocation6], 4
      %s2737 = int_to_ptr.vmem [resolvable:$true] %s2736
      %2739 = dma.vmem_to_hbm [thread:$0]  %s2737, 32, %s14, [#allocation4]
    $region65: #{tpu_custom_call.1} parent=1 // pred_fallthru
      _
    // Predicated region
    $region66: #{tpu_custom_call.1} parent=1 // pred_check
      _
    $region67: #{tpu_custom_call.1} parent=1 // pred_check_branch
      %2741 = sbr.rel (0) target = $region69
    $region68: #{tpu_custom_call.1} parent=1 // pred_region
      %2742 = dma.done [#allocation4], 32
    $region69: #{tpu_custom_call.1} parent=1 // pred_fallthru
      _
    %2743 = vsyncpa [#allocation4], 1
    %2744 = vsyncpa [#allocation5], 1

</llo_original>
